<compile_context>
chip_gen: v6e
topology: v6e:2x2x1
jax: 0.10.0
libtpu: 0.0.40
codegen_flags: <defaults>
</compile_context>

<pallas_src>
import functools

import jax
import jax.numpy as jnp
from jax.experimental import pallas as pl
from jax.experimental.pallas import tpu as pltpu


# ----------------------------------------------------------------------------
# helpers
# ----------------------------------------------------------------------------
def _round_up(x, m):
    return (x + m - 1) // m * m


def _cdiv(a, b):
    return -(-a // b)


_VMEM_BUDGET = 16 * 1024 * 1024   # per-call tile budget (incl. double buffers)
_VMEM_LIMIT = 32 * 1024 * 1024    # scoped VMEM limit handed to Mosaic (safe on v5e/v6e/v7x)


# ----------------------------------------------------------------------------
# Pallas kernels
# ----------------------------------------------------------------------------
def _matmul_kernel(a_ref, b_ref, o_ref, acc_ref, *, apply_lrelu):
    """Batched tiled matmul. grid=(G, Mt, Nt, Kt); bf16 x bf16 -> f32 accum."""
    @pl.when(pl.program_id(3) == 0)
    def _():
        acc_ref[...] = jnp.zeros_like(acc_ref)

    acc_ref[...] += jnp.dot(a_ref[0], b_ref[0],
                            preferred_element_type=jnp.float32)

    @pl.when(pl.program_id(3) == pl.num_programs(3) - 1)
    def _():
        y = acc_ref[...]
        if apply_lrelu:           # fused LeakyReLU(0.2) epilogue (down1/down8)
            y = jnp.where(y >= 0, y, 0.2 * y)
        o_ref[0] = y.astype(o_ref.dtype)


def _inorm_lrelu_kernel(x_ref, o_ref):
    # x_ref: (1, HW, C) f32 -- InstanceNorm over HW per channel + LeakyReLU(0.2)
    x = x_ref[...]
    mean = jnp.mean(x, axis=1, keepdims=True)
    var = jnp.maximum(jnp.mean(x * x, axis=1, keepdims=True) - mean * mean, 0.0)
    y = (x - mean) * jax.lax.rsqrt(var + 1e-5)
    o_ref[...] = jnp.where(y >= 0, y, 0.2 * y)


def _mul_kernel(a_ref, b_ref, o_ref):
    o_ref[...] = a_ref[...] * b_ref[...]


# ----------------------------------------------------------------------------
# Pallas wrappers
# ----------------------------------------------------------------------------
@functools.partial(jax.jit, static_argnames=("apply_lrelu",))
def matmul_g(a, b, apply_lrelu=False):
    """a: (G, M, K), b: (G, K, N) -> (G, M, N) f32. bf16 MXU, f32 accumulator."""
    G, M, K = a.shape
    _, _, N = b.shape

    Kp0 = _round_up(K, 128)
    Np = _round_up(N, 128)
    tn = min(512, Np)
    Np = _round_up(Np, tn)

    # Larger M tiles when K is small (keeps step count low, MXU well fed).
    tm = 512
    for cand in (2048, 1024):
        if 4 * cand * Kp0 <= 8 * 1024 * 1024 and 12 * cand * tn <= 8 * 1024 * 1024:
            tm = cand
            break
    Mp = _round_up(M, 16)
    tm = min(tm, Mp)
    Mp = _round_up(Mp, tm)

    # Size tk so double-buffered A/B tiles + out/acc fit the VMEM budget.
    rem = _VMEM_BUDGET - 12 * tm * tn
    tk_max = max(128, rem // (4 * (tm + tn)) // 128 * 128)
    ksteps = _cdiv(Kp0, tk_max)
    tk = _round_up(_cdiv(Kp0, ksteps), 128)
    Kp = tk * ksteps

    a = jnp.pad(a.astype(jnp.bfloat16), ((0, 0), (0, Mp - M), (0, Kp - K)))
    b = jnp.pad(b.astype(jnp.bfloat16), ((0, 0), (0, Kp - K), (0, Np - N)))

    kernel = functools.partial(_matmul_kernel, apply_lrelu=apply_lrelu)
    out = pl.pallas_call(
        kernel,
        out_shape=jax.ShapeDtypeStruct((G, Mp, Np), jnp.float32),
        grid_spec=pltpu.PrefetchScalarGridSpec(
            num_scalar_prefetch=0,
            grid=(G, Mp // tm, Np // tn, Kp // tk),
            in_specs=[pl.BlockSpec((1, tm, tk), lambda g, i, j, k: (g, i, k)),
                      pl.BlockSpec((1, tk, tn), lambda g, i, j, k: (g, k, j))],
            out_specs=pl.BlockSpec((1, tm, tn), lambda g, i, j, k: (g, i, j)),
            scratch_shapes=[pltpu.VMEM((tm, tn), jnp.float32)]),
        compiler_params=pltpu.CompilerParams(
            dimension_semantics=("parallel", "parallel", "parallel", "arbitrary"),
            vmem_limit_bytes=_VMEM_LIMIT),
    )(a, b)
    return out[:, :M, :N]


@jax.jit
def inorm_lrelu(x):
    """x: (B, HW, C) f32 -> InstanceNorm (per B, per C over HW) + LeakyReLU."""
    B, HW, C = x.shape
    return pl.pallas_call(
        _inorm_lrelu_kernel,
        out_shape=jax.ShapeDtypeStruct((B, HW, C), jnp.float32),
        grid=(B,),
        in_specs=[pl.BlockSpec((1, HW, C), lambda b: (b, 0, 0))],
        out_specs=pl.BlockSpec((1, HW, C), lambda b: (b, 0, 0)),
        compiler_params=pltpu.CompilerParams(
            dimension_semantics=("parallel",),
            vmem_limit_bytes=_VMEM_LIMIT),
    )(x)


@jax.jit
def pallas_mul(a, b):
    """Elementwise multiply (bottleneck d8 * r8). a, b: (R, C) f32."""
    R, C = a.shape
    return pl.pallas_call(
        _mul_kernel,
        out_shape=jax.ShapeDtypeStruct((R, C), jnp.float32),
        grid=(1,),
        in_specs=[pl.BlockSpec((R, C), lambda i: (0, 0)),
                  pl.BlockSpec((R, C), lambda i: (0, 0))],
        out_specs=pl.BlockSpec((R, C), lambda i: (0, 0)),
    )(a, b)


# ----------------------------------------------------------------------------
# Conv lowering glue (bf16 patch extraction; pure slicing/reshapes)
# ----------------------------------------------------------------------------
def _im2col(xpad, k, stride, Ho, Wo):
    """xpad: (B, Hp, Wp, C) -> (B*Ho*Wo, k*k*C); K ordering (ki, kj, ci)."""
    B, _, _, C = xpad.shape
    cols = []
    for ki in range(k):
        for kj in range(k):
            cols.append(jax.lax.slice(
                xpad,
                (0, ki, kj, 0),
                (B, ki + (Ho - 1) * stride + 1, kj + (Wo - 1) * stride + 1, C),
                (1, stride, stride, 1)))
    patches = jnp.concatenate(cols, axis=-1)
    return patches.reshape(B * Ho * Wo, k * k * C)


@functools.partial(jax.jit, static_argnames=("normalize",))
def conv_down_pair(x2, w_pair, normalize):
    """Two-stream UNetDown: Conv2d(k=4,s=2,p=1,bias=False) [+IN] + LeakyReLU.

    x2: (2, N, H, W, Cin) f32 (stream 0 = image path, stream 1 = mask path);
    w_pair: (2, Cout, Cin, 4, 4)."""
    S, N, H, W, C = x2.shape
    Cout = w_pair.shape[1]
    Ho, Wo = H // 2, W // 2
    xp = jnp.pad(x2.reshape(S * N, H, W, C).astype(jnp.bfloat16),
                 ((0, 0), (1, 1), (1, 1), (0, 0)))
    A = _im2col(xp, 4, 2, Ho, Wo).reshape(S, N * Ho * Wo, 16 * C)
    B = jnp.transpose(w_pair, (0, 3, 4, 2, 1)).reshape(S, 16 * C, Cout)
    y = matmul_g(A, B.astype(jnp.bfloat16), apply_lrelu=not normalize)
    if normalize:
        y = inorm_lrelu(y.reshape(S * N, Ho * Wo, Cout))
    return y.reshape(S, N, Ho, Wo, Cout)


@jax.jit
def conv_transpose_up(x, w):
    """UNetUp body: ConvTranspose2d(Cin,Cout,4,2,1,bias=False) + IN + LeakyReLU.

    Folded into a 3x3/pad-1 conv on x producing 4*Cout phase channels, then a
    pixel shuffle (exact equivalence; no zero-dilated input is ever built).

    x: (N, H, W, Cin) f32; w: (Cin, Cout, 4, 4) -> (N, 2H, 2W, Cout)."""
    N, H, W, Cin = x.shape
    Cout = w.shape[1]
    # window-row -> transposed-conv kernel-row selection per output parity a:
    #   a=0: taps (dh=-1 -> ki=3, dh=0 -> ki=1); a=1: (dh=0 -> ki=2, dh=+1 -> ki=0)
    s0 = jnp.array([[0., 0., 0., 1.], [0., 1., 0., 0.], [0., 0., 0., 0.]], jnp.float32)
    s1 = jnp.array([[0., 0., 0., 0.], [0., 0., 1., 0.], [1., 0., 0., 0.]], jnp.float32)
    sel = (s0, s1)
    cols = []
    for a in range(2):
        for b in range(2):
            we = jnp.einsum("hk,wl,iokl->hwio", sel[a], sel[b], w)  # (3,3,Cin,Cout)
            cols.append(we.reshape(9 * Cin, Cout))
    wmat = jnp.concatenate(cols, axis=1).astype(jnp.bfloat16)       # (9Cin, 4Cout)

    xp = jnp.pad(x.astype(jnp.bfloat16), ((0, 0), (1, 1), (1, 1), (0, 0)))
    A = _im2col(xp, 3, 1, H, W)                                     # (N*H*W, 9Cin)
    y = matmul_g(A[None], wmat[None], apply_lrelu=False)[0]         # (N*H*W, 4Cout)
    y = y.reshape(N, H, W, 2, 2, Cout)
    y = jnp.transpose(y, (0, 1, 3, 2, 4, 5)).reshape(N, 2 * H, 2 * W, Cout)
    y = inorm_lrelu(y.reshape(N, 4 * H * W, Cout))
    return y.reshape(N, 2 * H, 2 * W, Cout)


@jax.jit
def final_block(u, w, bias):
    """final: Upsample(x2, nearest) + ZeroPad2d((1,0,1,0)) + Conv2d(192,n_ch,4,p=1).

    The nearest upsample + asymmetric pad are folded into per-parity collapsed
    3x3 weights over u, so neither the upsampled tensor nor its im2col exist.

    u: (N, H, W, Cin) f32; w: (Cout, Cin, 4, 4); bias: (Cout,)."""
    N, H, W, Cin = u.shape
    Cout = w.shape[0]
    t0 = jnp.array([[1., 1., 0., 0.], [0., 0., 1., 1.], [0., 0., 0., 0.]], jnp.float32)
    t1 = jnp.array([[1., 0., 0., 0.], [0., 1., 1., 0.], [0., 0., 0., 1.]], jnp.float32)
    tt = (t0, t1)
    cols = []
    for a in range(2):
        for b in range(2):
            we = jnp.einsum("hk,wl,oikl->hwio", tt[a], tt[b], w)    # (3,3,Cin,Cout)
            cols.append(we.reshape(9 * Cin, Cout))
    wmat = jnp.concatenate(cols, axis=1).astype(jnp.bfloat16)       # (9Cin, 4Cout)

    up = jnp.pad(u.astype(jnp.bfloat16), ((0, 0), (1, 1), (1, 1), (0, 0)))
    A = _im2col(up, 3, 1, H, W)
    y = matmul_g(A[None], wmat[None], apply_lrelu=False)[0]         # (N*H*W, 4Cout)
    y = y + jnp.tile(bias, 4)[None, :]
    y = y.reshape(N, H, W, 2, 2, Cout)
    y = jnp.transpose(y, (0, 1, 3, 2, 4, 5)).reshape(N, 2 * H, 2 * W, Cout)
    return y


# ----------------------------------------------------------------------------
# Parameters (deterministic synthetic init; shapes follow the PyTorch module)
# ----------------------------------------------------------------------------
def init_params(key, n_channels=1):
    params = {}

    def conv_w(k, cout, cin):
        return (jax.random.normal(k, (cout, cin, 4, 4), jnp.float32)
                / jnp.sqrt(cin * 16.0))

    def convT_w(k, cin, cout):
        return (jax.random.normal(k, (cin, cout, 4, 4), jnp.float32)
                / jnp.sqrt(cin * 16.0))

    down_io = [(n_channels, 64), (64, 128), (128, 256), (256, 512),
               (512, 512), (512, 512), (512, 512), (512, 512)]
    up_io = [(512, 512), (1536, 512), (1536, 512), (1536, 512),
             (1536, 256), (768, 128), (384, 64)]

    keys = jax.random.split(key, 2 * len(down_io) + len(up_io) + 2)
    idx = 0
    for i, (ci, co) in enumerate(down_io):
        params[f"down{i + 1}"] = conv_w(keys[idx], co, ci); idx += 1
    for i, (ci, co) in enumerate(down_io):
        params[f"rep{i + 1}"] = conv_w(keys[idx], co, ci); idx += 1
    for i, (ci, co) in enumerate(up_io):
        params[f"up{i + 1}"] = convT_w(keys[idx], ci, co); idx += 1
    params["final_w"] = conv_w(keys[idx], n_channels, 128 + 64); idx += 1
    params["final_b"] = 0.01 * jax.random.normal(keys[idx], (n_channels,),
                                                 jnp.float32)
    return params


# ----------------------------------------------------------------------------
# Forward pass (mirrors Generator_Mask_R_UNet.forward, inference mode)
# ----------------------------------------------------------------------------
def generator_forward(x_nchw, m_nchw, params):
    x = jnp.transpose(x_nchw, (0, 2, 3, 1)).astype(jnp.float32)   # NCHW -> NHWC
    m = jnp.transpose(m_nchw, (0, 2, 3, 1)).astype(jnp.float32)
    N = x.shape[0]

    norms = [False, True, True, True, True, True, True, False]
    cur = jnp.stack([x, m], axis=0)       # both encoder streams on one grid axis
    d_feats, r_feats = [], []
    for i in range(8):
        w_pair = jnp.stack([params[f"down{i + 1}"], params[f"rep{i + 1}"]], 0)
        cur = conv_down_pair(cur, w_pair, normalize=norms[i])
        # TODO(synk): Dropout(0.5) on down4..8 / rep4..8 is identity in eval mode.
        d_feats.append(cur[0])
        r_feats.append(cur[1])

    d8 = d_feats[7].reshape(N, -1)
    r8 = r_feats[7].reshape(N, -1)
    u = pallas_mul(d8, r8).reshape(d_feats[7].shape)              # mult = d8 * r8

    for i in range(7):
        y = conv_transpose_up(u, params[f"up{i + 1}"])
        # TODO(synk): Dropout(0.5) on up1..up4 is identity in eval mode.
        u = jnp.concatenate([y, d_feats[6 - i], r_feats[6 - i]], axis=-1)

    out = final_block(u, params["final_w"], params["final_b"])
    return jnp.transpose(out, (0, 3, 1, 2))                        # NHWC -> NCHW


# ----------------------------------------------------------------------------
if __name__ == "__main__":
    # The 8-level stride-2 encoder makes 256x256 the smallest legal input for
    # this module (deepest feature map is 1x1). Batch=1, n_channels=1.
    key = jax.random.PRNGKey(0)
    kx, km, kp = jax.random.split(key, 3)
    x = jax.random.normal(kx, (1, 1, 256, 256), jnp.float32)
    m = jax.random.normal(km, (1, 1, 256, 256), jnp.float32)
    params = init_params(kp, n_channels=1)

    out = generator_forward(x, m, params)
    out = jax.block_until_ready(out)
    assert out.shape == (1, 1, 256, 256), out.shape
    assert bool(jnp.all(jnp.isfinite(out)))
    print("KERNEL_OK")
</pallas_src>

<mosaic_0001>
module attributes {stable_mosaic.version = 11 : i64} {
  func.func @_matmul_kernel(%arg0: i32, %arg1: i32, %arg2: i32, %arg3: i32, %arg4: memref<1x2048x128xbf16, #tpu.memory_space<vmem>>, %arg5: memref<1x128x128xbf16, #tpu.memory_space<vmem>>, %arg6: memref<1x2048x128xf32, #tpu.memory_space<vmem>>, %arg7: memref<2048x128xf32, #tpu.memory_space<vmem>>) attributes {dimension_semantics = [#tpu.dimension_semantics<parallel>, #tpu.dimension_semantics<parallel>, #tpu.dimension_semantics<parallel>, #tpu.dimension_semantics<arbitrary>], iteration_bounds = array<i64: 2, 8, 1, 1>, scalar_prefetch = 0 : i64, scratch_operands = 1 : i64, tpu.core_type = #tpu.core_type<tc>, window_params = [{transform_indices = @transform_0, window_bounds = array<i64: 1, 2048, 128>}, {transform_indices = @transform_1, window_bounds = array<i64: 1, 128, 128>}, {transform_indices = @transform_2, window_bounds = array<i64: 1, 2048, 128>}]} {
    %c0_i32 = arith.constant 0 : i32
    %0 = arith.cmpi eq, %arg3, %c0_i32 : i32
    %1 = arith.extui %0 : i1 to i32
    %c0_i32_0 = arith.constant 0 : i32
    %2 = arith.cmpi ne, %1, %c0_i32_0 : i32
    scf.if %2 {
      %cst_12 = arith.constant 0.000000e+00 : f32
      %14 = vector.broadcast %cst_12 : f32 to vector<2048x128xf32>
      %c0_13 = arith.constant 0 : index
      %c0_14 = arith.constant 0 : index
      %15 = vector.load %arg7[%c0_13, %c0_14] : memref<2048x128xf32, #tpu.memory_space<vmem>>, vector<2048x128xf32>
      tpu.vector_store %arg7[%c0_13, %c0_14], %14 {strides = array<i32>} : memref<2048x128xf32, #tpu.memory_space<vmem>>, vector<2048x128xf32>,
    } else {
    }
    %c0 = arith.constant 0 : index
    %c0_1 = arith.constant 0 : index
    %3 = vector.load %arg7[%c0, %c0_1] : memref<2048x128xf32, #tpu.memory_space<vmem>>, vector<2048x128xf32>
    %c0_2 = arith.constant 0 : index
    %c0_3 = arith.constant 0 : index
    %c0_4 = arith.constant 0 : index
    %4 = vector.load %arg4[%c0_2, %c0_3, %c0_4] : memref<1x2048x128xbf16, #tpu.memory_space<vmem>>, vector<1x2048x128xbf16>
    %5 = vector.shape_cast %4 : vector<1x2048x128xbf16> to vector<2048x128xbf16>
    %c0_5 = arith.constant 0 : index
    %c0_6 = arith.constant 0 : index
    %c0_7 = arith.constant 0 : index
    %6 = vector.load %arg5[%c0_5, %c0_6, %c0_7] : memref<1x128x128xbf16, #tpu.memory_space<vmem>>, vector<1x128x128xbf16>
    %7 = vector.shape_cast %6 : vector<1x128x128xbf16> to vector<128x128xbf16>
    %cst = arith.constant dense<0.000000e+00> : vector<2048x128xf32>
    %8 = tpu.matmul %5, %7, %cst {dimension_numbers = #tpu.dot_dimension_numbers<[1], [0], [0], [1], [0, 0, 1, 1], [], []>} : vector<2048x128xbf16>, vector<128x128xbf16>, vector<2048x128xf32> -> vector<2048x128xf32>
    %9 = arith.addf %3, %8 : vector<2048x128xf32>
    %c0_8 = arith.constant 0 : index
    %c0_9 = arith.constant 0 : index
    %10 = vector.load %arg7[%c0_8, %c0_9] : memref<2048x128xf32, #tpu.memory_space<vmem>>, vector<2048x128xf32>
    tpu.vector_store %arg7[%c0_8, %c0_9], %9 {strides = array<i32>} : memref<2048x128xf32, #tpu.memory_space<vmem>>, vector<2048x128xf32>,
    %c0_i32_10 = arith.constant 0 : i32
    %11 = arith.cmpi eq, %arg3, %c0_i32_10 : i32
    %12 = arith.extui %11 : i1 to i32
    %c0_i32_11 = arith.constant 0 : i32
    %13 = arith.cmpi ne, %12, %c0_i32_11 : i32
    scf.if %13 {
      %c0_12 = arith.constant 0 : index
      %c0_13 = arith.constant 0 : index
      %14 = vector.load %arg7[%c0_12, %c0_13] : memref<2048x128xf32, #tpu.memory_space<vmem>>, vector<2048x128xf32>
      %cst_14 = arith.constant 0.000000e+00 : f32
      %15 = vector.broadcast %cst_14 : f32 to vector<2048x128xf32>
      %16 = arith.cmpf oge, %14, %15 : vector<2048x128xf32>
      %cst_15 = arith.constant 2.000000e-01 : f32
      %17 = vector.broadcast %cst_15 : f32 to vector<2048x128xf32>
      %18 = arith.mulf %17, %14 : vector<2048x128xf32>
      %19 = arith.select %16, %14, %18 : vector<2048x128xi1>, vector<2048x128xf32>
      %c0_16 = arith.constant 0 : index
      %c0_17 = arith.constant 0 : index
      %c0_18 = arith.constant 0 : index
      %20 = vector.load %arg6[%c0_16, %c0_17, %c0_18] : memref<1x2048x128xf32, #tpu.memory_space<vmem>>, vector<1x2048x128xf32>
      %21 = vector.shape_cast %20 : vector<1x2048x128xf32> to vector<2048x128xf32>
      %22 = vector.shape_cast %19 : vector<2048x128xf32> to vector<1x2048x128xf32>
      tpu.vector_store %arg6[%c0_16, %c0_17, %c0_18], %22 {strides = array<i32>} : memref<1x2048x128xf32, #tpu.memory_space<vmem>>, vector<1x2048x128xf32>,
    } else {
    }
    return
  }
  func.func @transform_0(%arg0: i32, %arg1: i32, %arg2: i32, %arg3: i32) -> (i32, i32, i32) {
    %c0_i32 = arith.constant 0 : i32
    return %arg0, %arg1, %arg3 : i32, i32, i32
  }
  func.func @transform_1(%arg0: i32, %arg1: i32, %arg2: i32, %arg3: i32) -> (i32, i32, i32) {
    %c0_i32 = arith.constant 0 : i32
    return %arg0, %arg3, %arg2 : i32, i32, i32
  }
  func.func @transform_2(%arg0: i32, %arg1: i32, %arg2: i32, %arg3: i32) -> (i32, i32, i32) {
    %c0_i32 = arith.constant 0 : i32
    return %arg0, %arg1, %arg2 : i32, i32, i32
  }
}

</mosaic_0001>

<llo_original>
// kernel: matmul_g.1
$region0: #{matmul_g.1}
  #allocation0 [shape = 'u32[]', space=smem, size = 0x4, offset = 0x4, fixed_abs, tag = 'smem constant byte address 0x4 - core index']
  #allocation1 [shape = 'u32[144,128]{1,0:T(1,128)}', space=vmem, size = 0x12000, scoped, tag = 'internal scratch']
  #allocation2 [shape = 'f32[2048,128]{1,0:T(8,128)}', space=vmem, size = 0x100000, scoped, tag = 'scratch operand']
  %s0 = inlined_call_operand.vmem [shape: bf16[2,16384,128], index: 0, kind: input, shape index: {}]
  %s1 = inlined_call_operand.vmem [shape: bf16[2,128,128], index: 1, kind: input, shape index: {}]
  %s2 = inlined_call_operand.vmem [shape: f32[2,16384,128], index: 2, kind: output, shape index: {}]
  %s3 = sld [smem:[#allocation0]]
  $region49: #{matmul_g.1} parent=0
    _
  %s5 = ssub.s32 1, %s3
  %s6 = scalar_select 0, %s5, %s3
  loop: start=0, step=1, limit=18
  $region2: #{matmul_g.1} parent=0 // loop_pre_header
    _
  $region3: #{matmul_g.1} parent=0 // loop_header
    %s8 = sphi 0, %s12
    %p9 = scmp.ge.s32.totalorder %s8, 18
    %s15 = sphi 0, %s41
    %s16 = sphi 0, %s37
    %s17 = sphi 0, %s33
    %s18 = sphi 0, %s29
    %s19 = sphi 0, %s15
    %s20 = sphi 0, %s16
    %s21 = sphi 0, %s17
    %s22 = sphi 0, %s18
    %s23 = sphi 0, %s19
    %s24 = sphi 0, %s20
    %s25 = sphi 0, %s21
    %s26 = sphi 0, %s22
    %s48 = sphi 0, %s50
    %s51 = sphi 0, %s48
    %s52 = sphi 0, %s51
    %s68 = sphi 0, %s52
    %s78 = sphi 0, %s80
    %s81 = sphi 0, %s78
    %s82 = sphi 0, %s81
    %s98 = sphi 0, %s82
    %s108 = sphi 0, %s110
    %s111 = sphi 0, %s108
    %s112 = sphi 0, %s111
    %s128 = sphi 0, %s112
  $region4: #{matmul_g.1} parent=0 // loop_header_branch
    %11 = sbr.rel (%p9) target = $region8
  $region5: #{matmul_g.1} parent=0 // loop_body
    %s13 = ssub.s32 %s8, 1
    %s14 = ssub.s32 %s8, 2
    %s27 = sadd.s32 1, %s18
    %p28 = scmp.ge.s32.totalorder %s27, 1
    %s29 = scalar_select %p28, 0, %s27
    %s30 = sadd.s32 1, %s17
    %s31 = scalar_select %p28, %s30, %s17
    %p32 = scmp.ge.s32.totalorder %s31, 1
    %s33 = scalar_select %p32, 0, %s31
    %s34 = sadd.s32 1, %s16
    %s35 = scalar_select %p32, %s34, %s16
    %p36 = scmp.ge.s32.totalorder %s35, 8
    %s37 = scalar_select %p36, 0, %s35
    %s38 = sadd.s32 1, %s15
    %s39 = scalar_select %p36, %s38, %s15
    %p40 = scmp.ge.s32.totalorder %s39, 2
    %s41 = scalar_select %p40, 0, %s39
    %s42 = ssub.s32 %s15, %s41
    %s43 = ssub.s32 %s16, %s37
    %s44 = sor.u32 %s42, %s43
    %s45 = ssub.s32 %s18, %s29
    %s46 = sor.u32 %s44, %s45
    %p47 = scmp.eq.s32.totalorder %s46, 0
    %s49 = sadd.s32 %s48, 1
    %s50 = scalar_select %p47, %s48, %s49
    %p53 = pneg %p47
    %p54 = scmp.eq.s32.totalorder %s8, 15
    %p55 = por %p53, %p54
    %p56 = scmp.ne.s32.totalorder %s48, %s51
    %p57 = scmp.eq.s32.totalorder %s8, 0
    %p58 = por %p56, %p57
    %p59 = scmp.ne.s32.totalorder %s48, %s51
    %p60 = scmp.eq.s32.totalorder %s13, 15
    %p61 = por %p59, %p60
    %p62 = scmp.ne.s32.totalorder %s51, %s52
    %p63 = scmp.eq.s32.totalorder %s13, 0
    %p64 = por %p62, %p63
    %p65 = scmp.ne.s32.totalorder %s51, %s52
    %p66 = scmp.eq.s32.totalorder %s14, 15
    %p67 = por %p65, %p66
    %p69 = scmp.ne.s32.totalorder %s52, %s68
    %p70 = scmp.eq.s32.totalorder %s14, 0
    %p71 = por %p69, %p70
    %s72 = ssub.s32 %s15, %s41
    %s73 = ssub.s32 %s18, %s29
    %s74 = sor.u32 %s72, %s73
    %s75 = ssub.s32 %s17, %s33
    %s76 = sor.u32 %s74, %s75
    %p77 = scmp.eq.s32.totalorder %s76, 0
    %s79 = sadd.s32 %s78, 1
    %s80 = scalar_select %p77, %s78, %s79
    %p83 = pneg %p77
    %p84 = scmp.eq.s32.totalorder %s8, 15
    %p85 = por %p83, %p84
    %p86 = scmp.ne.s32.totalorder %s78, %s81
    %p87 = scmp.eq.s32.totalorder %s8, 0
    %p88 = por %p86, %p87
    %p89 = scmp.ne.s32.totalorder %s78, %s81
    %p90 = scmp.eq.s32.totalorder %s13, 15
    %p91 = por %p89, %p90
    %p92 = scmp.ne.s32.totalorder %s81, %s82
    %p93 = scmp.eq.s32.totalorder %s13, 0
    %p94 = por %p92, %p93
    %p95 = scmp.ne.s32.totalorder %s81, %s82
    %p96 = scmp.eq.s32.totalorder %s14, 15
    %p97 = por %p95, %p96
    %p99 = scmp.ne.s32.totalorder %s82, %s98
    %p100 = scmp.eq.s32.totalorder %s14, 0
    %p101 = por %p99, %p100
    %s102 = ssub.s32 %s15, %s41
    %s103 = ssub.s32 %s16, %s37
    %s104 = sor.u32 %s102, %s103
    %s105 = ssub.s32 %s17, %s33
    %s106 = sor.u32 %s104, %s105
    %p107 = scmp.eq.s32.totalorder %s106, 0
    %s109 = sadd.s32 %s108, 1
    %s110 = scalar_select %p107, %s108, %s109
    %p113 = pneg %p107
    %p114 = scmp.eq.s32.totalorder %s8, 15
    %p115 = por %p113, %p114
    %p116 = scmp.ne.s32.totalorder %s108, %s111
    %p117 = scmp.eq.s32.totalorder %s8, 0
    %p118 = por %p116, %p117
    %p119 = scmp.ne.s32.totalorder %s108, %s111
    %p120 = scmp.eq.s32.totalorder %s13, 15
    %p121 = por %p119, %p120
    %p122 = scmp.ne.s32.totalorder %s111, %s112
    %p123 = scmp.eq.s32.totalorder %s13, 0
    %p124 = por %p122, %p123
    %p125 = scmp.ne.s32.totalorder %s111, %s112
    %p126 = scmp.eq.s32.totalorder %s14, 15
    %p127 = por %p125, %p126
    %p129 = scmp.ne.s32.totalorder %s112, %s128
    %p130 = scmp.eq.s32.totalorder %s14, 0
    %p131 = por %p129, %p130
    %p132 = scmp.le.s32.totalorder 1, %s8
    %p133 = scmp.lt.s32.totalorder %s8, 17
    %p134 = pnand %p132, %p133
    %p135 = pneg %p134
    // Predicated region
    $region9: #{matmul_g.1} parent=5 // pred_check
      _
    $region10: #{matmul_g.1} parent=5 // pred_check_branch
      %137 = sbr.rel (%p134) target = $region12
    $region11: #{matmul_g.1} parent=5 // pred_region
      %s138 = ssub.s32 %s8, 1
    $region12: #{matmul_g.1} parent=5 // pred_fallthru
      _
    %p139 = scmp.lt.s32.totalorder %s8, 16
    // Predicated region
    $region13: #{matmul_g.1} parent=5 // pred_check
      %p140 = pneg %p139
    $region14: #{matmul_g.1} parent=5 // pred_check_branch
      %142 = sbr.rel (%p140) target = $region16
    $region15: #{matmul_g.1} parent=5 // pred_region
      // Predicated region
      $region17: #{matmul_g.1} parent=15 // pred_check
        %p143 = pneg %p58
      $region18: #{matmul_g.1} parent=15 // pred_check_branch
        %145 = sbr.rel (%p143) target = $region20
      $region19: #{matmul_g.1} parent=15 // pred_region
        %s146 = smul.u32 256, %s16
        %p147 = scmp.lt.s32.totalorder %s15, 1
        %s148 = scalar_select %p147, %s15, 1
        %p149 = scmp.lt.s32.totalorder %s146, 2047
        %s150 = scalar_select %p149, %s146, 2047
        %p151 = scmp.lt.s32.totalorder %s18, 0
        %s152 = scalar_select %p151, %s18, 0
        %s153 = sadd.s32 %s152, %s150
        %s154 = smul.addr %s148, 2048
        %s155 = sadd.s32 %s153, %s154
        %s156 = smul.addr %s155, 4
        %s157 = scalar_lea.vmem %s0, %s156
        %s158 = smul.u32 256, %s16
      $region20: #{matmul_g.1} parent=15 // pred_fallthru
        _
      // Predicated region
      $region21: #{matmul_g.1} parent=15 // pred_check
        %p159 = pneg %p88
      $region22: #{matmul_g.1} parent=15 // pred_check_branch
        %161 = sbr.rel (%p159) target = $region24
      $region23: #{matmul_g.1} parent=15 // pred_region
        %s162 = smul.u32 16, %s18
        %p163 = scmp.lt.s32.totalorder %s15, 1
        %s164 = scalar_select %p163, %s15, 1
        %p165 = scmp.lt.s32.totalorder %s162, 15
        %s166 = scalar_select %p165, %s162, 15
        %p167 = scmp.lt.s32.totalorder %s17, 0
        %s168 = scalar_select %p167, %s17, 0
        %s169 = sadd.s32 %s168, %s166
        %s170 = smul.addr %s164, 16
        %s171 = sadd.s32 %s169, %s170
        %s172 = smul.addr %s171, 4
        %s173 = scalar_lea.vmem %s1, %s172
        %s174 = smul.u32 16, %s18
      $region24: #{matmul_g.1} parent=15 // pred_fallthru
        _
    $region16: #{matmul_g.1} parent=5 // pred_fallthru
      _
    %p175 = scmp.le.s32.totalorder 1, %s8
    %p176 = scmp.lt.s32.totalorder %s8, 17
    %p177 = pnand %p175, %p176
    %p178 = pneg %p177
    // Predicated region
    $region25: #{matmul_g.1} parent=5 // pred_check
      _
    $region26: #{matmul_g.1} parent=5 // pred_check_branch
      %180 = sbr.rel (%p177) target = $region28
    $region27: #{matmul_g.1} parent=5 // pred_region
      %s181 = ssub.s32 %s8, 1
      %s182 = smul.u32 256, %s20
      %p183 = scmp.lt.s32.totalorder %s19, 1
      %s184 = scalar_select %p183, %s19, 1
      %p185 = scmp.lt.s32.totalorder %s182, 2047
      %s186 = scalar_select %p185, %s182, 2047
      %p187 = scmp.lt.s32.totalorder %s22, 0
      %s188 = scalar_select %p187, %s22, 0
      %s189 = sadd.s32 %s188, %s186
      %s190 = smul.addr %s184, 2048
      %s191 = sadd.s32 %s189, %s190
      %s192 = smul.addr %s191, 4
      %s193 = scalar_lea.vmem %s0, %s192
      %p194 = pneg %p64
      %p195 = pneg %p61
      %s196 = smul.u32 16, %s22
      %p197 = scmp.lt.s32.totalorder %s19, 1
      %s198 = scalar_select %p197, %s19, 1
      %p199 = scmp.lt.s32.totalorder %s196, 15
      %s200 = scalar_select %p199, %s196, 15
      %p201 = scmp.lt.s32.totalorder %s21, 0
      %s202 = scalar_select %p201, %s21, 0
      %s203 = sadd.s32 %s202, %s200
      %s204 = smul.addr %s198, 16
      %s205 = sadd.s32 %s203, %s204
      %s206 = smul.addr %s205, 4
      %s207 = scalar_lea.vmem %s1, %s206
      %p208 = pneg %p94
      %p209 = pneg %p91
      %p210 = pneg %p124
      %p211 = pneg %p121
      %s212 = smul.u32 256, %s20
      %p213 = scmp.lt.s32.totalorder %s19, 1
      %s214 = scalar_select %p213, %s19, 1
      %p215 = scmp.lt.s32.totalorder %s212, 2047
      %s216 = scalar_select %p215, %s212, 2047
      %p217 = scmp.lt.s32.totalorder %s21, 0
      %s218 = scalar_select %p217, %s21, 0
      %s219 = sadd.s32 %s218, %s216
      %s220 = smul.addr %s214, 2048
      %s221 = sadd.s32 %s219, %s220
      %s222 = smul.addr %s221, 8
      %s223 = scalar_lea.vmem %s2, %s222
      %s224 = smul.u32 256, %s20
      %p225 = scmp.lt.s32.totalorder %s19, 1
      %s226 = scalar_select %p225, %s19, 1
      %p227 = scmp.lt.s32.totalorder %s224, 2047
      %s228 = scalar_select %p227, %s224, 2047
      %p229 = scmp.lt.s32.totalorder %s22, 0
      %s230 = scalar_select %p229, %s22, 0
      %s231 = sadd.s32 %s230, %s228
      %s232 = smul.addr %s226, 2048
      %s233 = sadd.s32 %s231, %s232
      %s234 = smul.addr %s233, 4
      %s235 = scalar_lea.vmem %s0, %s234
      %s236 = smul.u32 256, %s20
      %s237 = smul.u32 16, %s22
      %p238 = scmp.lt.s32.totalorder %s19, 1
      %s239 = scalar_select %p238, %s19, 1
      %p240 = scmp.lt.s32.totalorder %s237, 15
      %s241 = scalar_select %p240, %s237, 15
      %p242 = scmp.lt.s32.totalorder %s21, 0
      %s243 = scalar_select %p242, %s21, 0
      %s244 = sadd.s32 %s243, %s241
      %s245 = smul.addr %s239, 16
      %s246 = sadd.s32 %s244, %s245
      %s247 = smul.addr %s246, 4
      %s248 = scalar_lea.vmem %s1, %s247
      %s249 = smul.u32 16, %s22
      %s250 = smul.u32 256, %s20
      %p251 = scmp.lt.s32.totalorder %s19, 1
      %s252 = scalar_select %p251, %s19, 1
      %p253 = scmp.lt.s32.totalorder %s250, 2047
      %s254 = scalar_select %p253, %s250, 2047
      %p255 = scmp.lt.s32.totalorder %s21, 0
      %s256 = scalar_select %p255, %s21, 0
      %s257 = sadd.s32 %s256, %s254
      %s258 = smul.addr %s252, 2048
      %s259 = sadd.s32 %s257, %s258
      %s260 = smul.addr %s259, 8
      %s261 = scalar_lea.vmem %s2, %s260
      %s262 = smul.u32 256, %s20
      %p264 = scmp.eq.s32.totalorder %s22, 0
      // Predicated region
      $region29: #{matmul_g.1} parent=27 // pred_check
        %p265 = pneg %p264
      $region30: #{matmul_g.1} parent=27 // pred_check_branch
        %267 = sbr.rel (%p265) target = $region32
      $region31: #{matmul_g.1} parent=27 // pred_region
        %268 = vst [vmem:[#allocation2] sm:$0xff] 0.0
        %269 = vst [vmem:[#allocation2 + $0x8] sm:$0xff] 0.0
        %270 = vst [vmem:[#allocation2 + $0x10] sm:$0xff] 0.0
        %271 = vst [vmem:[#allocation2 + $0x18] sm:$0xff] 0.0
        %272 = vst [vmem:[#allocation2 + $0x20] sm:$0xff] 0.0
        %273 = vst [vmem:[#allocation2 + $0x28] sm:$0xff] 0.0
        %274 = vst [vmem:[#allocation2 + $0x30] sm:$0xff] 0.0
        %275 = vst [vmem:[#allocation2 + $0x38] sm:$0xff] 0.0
        %276 = vst [vmem:[#allocation2 + $0x40] sm:$0xff] 0.0
        %277 = vst [vmem:[#allocation2 + $0x48] sm:$0xff] 0.0
        %278 = vst [vmem:[#allocation2 + $0x50] sm:$0xff] 0.0
        %279 = vst [vmem:[#allocation2 + $0x58] sm:$0xff] 0.0
        %280 = vst [vmem:[#allocation2 + $0x60] sm:$0xff] 0.0
        %281 = vst [vmem:[#allocation2 + $0x68] sm:$0xff] 0.0
        %282 = vst [vmem:[#allocation2 + $0x70] sm:$0xff] 0.0
        %283 = vst [vmem:[#allocation2 + $0x78] sm:$0xff] 0.0
        %284 = vst [vmem:[#allocation2 + $0x80] sm:$0xff] 0.0
        %285 = vst [vmem:[#allocation2 + $0x88] sm:$0xff] 0.0
        %286 = vst [vmem:[#allocation2 + $0x90] sm:$0xff] 0.0
        %287 = vst [vmem:[#allocation2 + $0x98] sm:$0xff] 0.0
        %288 = vst [vmem:[#allocation2 + $0xa0] sm:$0xff] 0.0
        %289 = vst [vmem:[#allocation2 + $0xa8] sm:$0xff] 0.0
        %290 = vst [vmem:[#allocation2 + $0xb0] sm:$0xff] 0.0
        %291 = vst [vmem:[#allocation2 + $0xb8] sm:$0xff] 0.0
        %292 = vst [vmem:[#allocation2 + $0xc0] sm:$0xff] 0.0
        %293 = vst [vmem:[#allocation2 + $0xc8] sm:$0xff] 0.0
        %294 = vst [vmem:[#allocation2 + $0xd0] sm:$0xff] 0.0
        %295 = vst [vmem:[#allocation2 + $0xd8] sm:$0xff] 0.0
        %296 = vst [vmem:[#allocation2 + $0xe0] sm:$0xff] 0.0
        %297 = vst [vmem:[#allocation2 + $0xe8] sm:$0xff] 0.0
        %298 = vst [vmem:[#allocation2 + $0xf0] sm:$0xff] 0.0
        %299 = vst [vmem:[#allocation2 + $0xf8] sm:$0xff] 0.0
        %300 = vst [vmem:[#allocation2 + $0x100] sm:$0xff] 0.0
        %301 = vst [vmem:[#allocation2 + $0x108] sm:$0xff] 0.0
        %302 = vst [vmem:[#allocation2 + $0x110] sm:$0xff] 0.0
        %303 = vst [vmem:[#allocation2 + $0x118] sm:$0xff] 0.0
        %304 = vst [vmem:[#allocation2 + $0x120] sm:$0xff] 0.0
        %305 = vst [vmem:[#allocation2 + $0x128] sm:$0xff] 0.0
        %306 = vst [vmem:[#allocation2 + $0x130] sm:$0xff] 0.0
        %307 = vst [vmem:[#allocation2 + $0x138] sm:$0xff] 0.0
        %308 = vst [vmem:[#allocation2 + $0x140] sm:$0xff] 0.0
        %309 = vst [vmem:[#allocation2 + $0x148] sm:$0xff] 0.0
        %310 = vst [vmem:[#allocation2 + $0x150] sm:$0xff] 0.0
        %311 = vst [vmem:[#allocation2 + $0x158] sm:$0xff] 0.0
        %312 = vst [vmem:[#allocation2 + $0x160] sm:$0xff] 0.0
        %313 = vst [vmem:[#allocation2 + $0x168] sm:$0xff] 0.0
        %314 = vst [vmem:[#allocation2 + $0x170] sm:$0xff] 0.0
        %315 = vst [vmem:[#allocation2 + $0x178] sm:$0xff] 0.0
        %316 = vst [vmem:[#allocation2 + $0x180] sm:$0xff] 0.0
        %317 = vst [vmem:[#allocation2 + $0x188] sm:$0xff] 0.0
        %318 = vst [vmem:[#allocation2 + $0x190] sm:$0xff] 0.0
        %319 = vst [vmem:[#allocation2 + $0x198] sm:$0xff] 0.0
        %320 = vst [vmem:[#allocation2 + $0x1a0] sm:$0xff] 0.0
        %321 = vst [vmem:[#allocation2 + $0x1a8] sm:$0xff] 0.0
        %322 = vst [vmem:[#allocation2 + $0x1b0] sm:$0xff] 0.0
        %323 = vst [vmem:[#allocation2 + $0x1b8] sm:$0xff] 0.0
        %324 = vst [vmem:[#allocation2 + $0x1c0] sm:$0xff] 0.0
        %325 = vst [vmem:[#allocation2 + $0x1c8] sm:$0xff] 0.0
        %326 = vst [vmem:[#allocation2 + $0x1d0] sm:$0xff] 0.0
        %327 = vst [vmem:[#allocation2 + $0x1d8] sm:$0xff] 0.0
        %328 = vst [vmem:[#allocation2 + $0x1e0] sm:$0xff] 0.0
        %329 = vst [vmem:[#allocation2 + $0x1e8] sm:$0xff] 0.0
        %330 = vst [vmem:[#allocation2 + $0x1f0] sm:$0xff] 0.0
        %331 = vst [vmem:[#allocation2 + $0x1f8] sm:$0xff] 0.0
        %332 = vst [vmem:[#allocation2 + $0x200] sm:$0xff] 0.0
        %333 = vst [vmem:[#allocation2 + $0x208] sm:$0xff] 0.0
        %334 = vst [vmem:[#allocation2 + $0x210] sm:$0xff] 0.0
        %335 = vst [vmem:[#allocation2 + $0x218] sm:$0xff] 0.0
        %336 = vst [vmem:[#allocation2 + $0x220] sm:$0xff] 0.0
        %337 = vst [vmem:[#allocation2 + $0x228] sm:$0xff] 0.0
        %338 = vst [vmem:[#allocation2 + $0x230] sm:$0xff] 0.0
        %339 = vst [vmem:[#allocation2 + $0x238] sm:$0xff] 0.0
        %340 = vst [vmem:[#allocation2 + $0x240] sm:$0xff] 0.0
        %341 = vst [vmem:[#allocation2 + $0x248] sm:$0xff] 0.0
        %342 = vst [vmem:[#allocation2 + $0x250] sm:$0xff] 0.0
        %343 = vst [vmem:[#allocation2 + $0x258] sm:$0xff] 0.0
        %344 = vst [vmem:[#allocation2 + $0x260] sm:$0xff] 0.0
        %345 = vst [vmem:[#allocation2 + $0x268] sm:$0xff] 0.0
        %346 = vst [vmem:[#allocation2 + $0x270] sm:$0xff] 0.0
        %347 = vst [vmem:[#allocation2 + $0x278] sm:$0xff] 0.0
        %348 = vst [vmem:[#allocation2 + $0x280] sm:$0xff] 0.0
        %349 = vst [vmem:[#allocation2 + $0x288] sm:$0xff] 0.0
        %350 = vst [vmem:[#allocation2 + $0x290] sm:$0xff] 0.0
        %351 = vst [vmem:[#allocation2 + $0x298] sm:$0xff] 0.0
        %352 = vst [vmem:[#allocation2 + $0x2a0] sm:$0xff] 0.0
        %353 = vst [vmem:[#allocation2 + $0x2a8] sm:$0xff] 0.0
        %354 = vst [vmem:[#allocation2 + $0x2b0] sm:$0xff] 0.0
        %355 = vst [vmem:[#allocation2 + $0x2b8] sm:$0xff] 0.0
        %356 = vst [vmem:[#allocation2 + $0x2c0] sm:$0xff] 0.0
        %357 = vst [vmem:[#allocation2 + $0x2c8] sm:$0xff] 0.0
        %358 = vst [vmem:[#allocation2 + $0x2d0] sm:$0xff] 0.0
        %359 = vst [vmem:[#allocation2 + $0x2d8] sm:$0xff] 0.0
        %360 = vst [vmem:[#allocation2 + $0x2e0] sm:$0xff] 0.0
        %361 = vst [vmem:[#allocation2 + $0x2e8] sm:$0xff] 0.0
        %362 = vst [vmem:[#allocation2 + $0x2f0] sm:$0xff] 0.0
        %363 = vst [vmem:[#allocation2 + $0x2f8] sm:$0xff] 0.0
        %364 = vst [vmem:[#allocation2 + $0x300] sm:$0xff] 0.0
        %365 = vst [vmem:[#allocation2 + $0x308] sm:$0xff] 0.0
        %366 = vst [vmem:[#allocation2 + $0x310] sm:$0xff] 0.0
        %367 = vst [vmem:[#allocation2 + $0x318] sm:$0xff] 0.0
        %368 = vst [vmem:[#allocation2 + $0x320] sm:$0xff] 0.0
        %369 = vst [vmem:[#allocation2 + $0x328] sm:$0xff] 0.0
        %370 = vst [vmem:[#allocation2 + $0x330] sm:$0xff] 0.0
        %371 = vst [vmem:[#allocation2 + $0x338] sm:$0xff] 0.0
        %372 = vst [vmem:[#allocation2 + $0x340] sm:$0xff] 0.0
        %373 = vst [vmem:[#allocation2 + $0x348] sm:$0xff] 0.0
        %374 = vst [vmem:[#allocation2 + $0x350] sm:$0xff] 0.0
        %375 = vst [vmem:[#allocation2 + $0x358] sm:$0xff] 0.0
        %376 = vst [vmem:[#allocation2 + $0x360] sm:$0xff] 0.0
        %377 = vst [vmem:[#allocation2 + $0x368] sm:$0xff] 0.0
        %378 = vst [vmem:[#allocation2 + $0x370] sm:$0xff] 0.0
        %379 = vst [vmem:[#allocation2 + $0x378] sm:$0xff] 0.0
        %380 = vst [vmem:[#allocation2 + $0x380] sm:$0xff] 0.0
        %381 = vst [vmem:[#allocation2 + $0x388] sm:$0xff] 0.0
        %382 = vst [vmem:[#allocation2 + $0x390] sm:$0xff] 0.0
        %383 = vst [vmem:[#allocation2 + $0x398] sm:$0xff] 0.0
        %384 = vst [vmem:[#allocation2 + $0x3a0] sm:$0xff] 0.0
        %385 = vst [vmem:[#allocation2 + $0x3a8] sm:$0xff] 0.0
        %386 = vst [vmem:[#allocation2 + $0x3b0] sm:$0xff] 0.0
        %387 = vst [vmem:[#allocation2 + $0x3b8] sm:$0xff] 0.0
        %388 = vst [vmem:[#allocation2 + $0x3c0] sm:$0xff] 0.0
        %389 = vst [vmem:[#allocation2 + $0x3c8] sm:$0xff] 0.0
        %390 = vst [vmem:[#allocation2 + $0x3d0] sm:$0xff] 0.0
        %391 = vst [vmem:[#allocation2 + $0x3d8] sm:$0xff] 0.0
        %392 = vst [vmem:[#allocation2 + $0x3e0] sm:$0xff] 0.0
        %393 = vst [vmem:[#allocation2 + $0x3e8] sm:$0xff] 0.0
        %394 = vst [vmem:[#allocation2 + $0x3f0] sm:$0xff] 0.0
        %395 = vst [vmem:[#allocation2 + $0x3f8] sm:$0xff] 0.0
        %396 = vst [vmem:[#allocation2 + $0x400] sm:$0xff] 0.0
        %397 = vst [vmem:[#allocation2 + $0x408] sm:$0xff] 0.0
        %398 = vst [vmem:[#allocation2 + $0x410] sm:$0xff] 0.0
        %399 = vst [vmem:[#allocation2 + $0x418] sm:$0xff] 0.0
        %400 = vst [vmem:[#allocation2 + $0x420] sm:$0xff] 0.0
        %401 = vst [vmem:[#allocation2 + $0x428] sm:$0xff] 0.0
        %402 = vst [vmem:[#allocation2 + $0x430] sm:$0xff] 0.0
        %403 = vst [vmem:[#allocation2 + $0x438] sm:$0xff] 0.0
        %404 = vst [vmem:[#allocation2 + $0x440] sm:$0xff] 0.0
        %405 = vst [vmem:[#allocation2 + $0x448] sm:$0xff] 0.0
        %406 = vst [vmem:[#allocation2 + $0x450] sm:$0xff] 0.0
        %407 = vst [vmem:[#allocation2 + $0x458] sm:$0xff] 0.0
        %408 = vst [vmem:[#allocation2 + $0x460] sm:$0xff] 0.0
        %409 = vst [vmem:[#allocation2 + $0x468] sm:$0xff] 0.0
        %410 = vst [vmem:[#allocation2 + $0x470] sm:$0xff] 0.0
        %411 = vst [vmem:[#allocation2 + $0x478] sm:$0xff] 0.0
        %412 = vst [vmem:[#allocation2 + $0x480] sm:$0xff] 0.0
        %413 = vst [vmem:[#allocation2 + $0x488] sm:$0xff] 0.0
        %414 = vst [vmem:[#allocation2 + $0x490] sm:$0xff] 0.0
        %415 = vst [vmem:[#allocation2 + $0x498] sm:$0xff] 0.0
        %416 = vst [vmem:[#allocation2 + $0x4a0] sm:$0xff] 0.0
        %417 = vst [vmem:[#allocation2 + $0x4a8] sm:$0xff] 0.0
        %418 = vst [vmem:[#allocation2 + $0x4b0] sm:$0xff] 0.0
        %419 = vst [vmem:[#allocation2 + $0x4b8] sm:$0xff] 0.0
        %420 = vst [vmem:[#allocation2 + $0x4c0] sm:$0xff] 0.0
        %421 = vst [vmem:[#allocation2 + $0x4c8] sm:$0xff] 0.0
        %422 = vst [vmem:[#allocation2 + $0x4d0] sm:$0xff] 0.0
        %423 = vst [vmem:[#allocation2 + $0x4d8] sm:$0xff] 0.0
        %424 = vst [vmem:[#allocation2 + $0x4e0] sm:$0xff] 0.0
        %425 = vst [vmem:[#allocation2 + $0x4e8] sm:$0xff] 0.0
        %426 = vst [vmem:[#allocation2 + $0x4f0] sm:$0xff] 0.0
        %427 = vst [vmem:[#allocation2 + $0x4f8] sm:$0xff] 0.0
        %428 = vst [vmem:[#allocation2 + $0x500] sm:$0xff] 0.0
        %429 = vst [vmem:[#allocation2 + $0x508] sm:$0xff] 0.0
        %430 = vst [vmem:[#allocation2 + $0x510] sm:$0xff] 0.0
        %431 = vst [vmem:[#allocation2 + $0x518] sm:$0xff] 0.0
        %432 = vst [vmem:[#allocation2 + $0x520] sm:$0xff] 0.0
        %433 = vst [vmem:[#allocation2 + $0x528] sm:$0xff] 0.0
        %434 = vst [vmem:[#allocation2 + $0x530] sm:$0xff] 0.0
        %435 = vst [vmem:[#allocation2 + $0x538] sm:$0xff] 0.0
        %436 = vst [vmem:[#allocation2 + $0x540] sm:$0xff] 0.0
        %437 = vst [vmem:[#allocation2 + $0x548] sm:$0xff] 0.0
        %438 = vst [vmem:[#allocation2 + $0x550] sm:$0xff] 0.0
        %439 = vst [vmem:[#allocation2 + $0x558] sm:$0xff] 0.0
        %440 = vst [vmem:[#allocation2 + $0x560] sm:$0xff] 0.0
        %441 = vst [vmem:[#allocation2 + $0x568] sm:$0xff] 0.0
        %442 = vst [vmem:[#allocation2 + $0x570] sm:$0xff] 0.0
        %443 = vst [vmem:[#allocation2 + $0x578] sm:$0xff] 0.0
        %444 = vst [vmem:[#allocation2 + $0x580] sm:$0xff] 0.0
        %445 = vst [vmem:[#allocation2 + $0x588] sm:$0xff] 0.0
        %446 = vst [vmem:[#allocation2 + $0x590] sm:$0xff] 0.0
        %447 = vst [vmem:[#allocation2 + $0x598] sm:$0xff] 0.0
        %448 = vst [vmem:[#allocation2 + $0x5a0] sm:$0xff] 0.0
        %449 = vst [vmem:[#allocation2 + $0x5a8] sm:$0xff] 0.0
        %450 = vst [vmem:[#allocation2 + $0x5b0] sm:$0xff] 0.0
        %451 = vst [vmem:[#allocation2 + $0x5b8] sm:$0xff] 0.0
        %452 = vst [vmem:[#allocation2 + $0x5c0] sm:$0xff] 0.0
        %453 = vst [vmem:[#allocation2 + $0x5c8] sm:$0xff] 0.0
        %454 = vst [vmem:[#allocation2 + $0x5d0] sm:$0xff] 0.0
        %455 = vst [vmem:[#allocation2 + $0x5d8] sm:$0xff] 0.0
        %456 = vst [vmem:[#allocation2 + $0x5e0] sm:$0xff] 0.0
        %457 = vst [vmem:[#allocation2 + $0x5e8] sm:$0xff] 0.0
        %458 = vst [vmem:[#allocation2 + $0x5f0] sm:$0xff] 0.0
        %459 = vst [vmem:[#allocation2 + $0x5f8] sm:$0xff] 0.0
        %460 = vst [vmem:[#allocation2 + $0x600] sm:$0xff] 0.0
        %461 = vst [vmem:[#allocation2 + $0x608] sm:$0xff] 0.0
        %462 = vst [vmem:[#allocation2 + $0x610] sm:$0xff] 0.0
        %463 = vst [vmem:[#allocation2 + $0x618] sm:$0xff] 0.0
        %464 = vst [vmem:[#allocation2 + $0x620] sm:$0xff] 0.0
        %465 = vst [vmem:[#allocation2 + $0x628] sm:$0xff] 0.0
        %466 = vst [vmem:[#allocation2 + $0x630] sm:$0xff] 0.0
        %467 = vst [vmem:[#allocation2 + $0x638] sm:$0xff] 0.0
        %468 = vst [vmem:[#allocation2 + $0x640] sm:$0xff] 0.0
        %469 = vst [vmem:[#allocation2 + $0x648] sm:$0xff] 0.0
        %470 = vst [vmem:[#allocation2 + $0x650] sm:$0xff] 0.0
        %471 = vst [vmem:[#allocation2 + $0x658] sm:$0xff] 0.0
        %472 = vst [vmem:[#allocation2 + $0x660] sm:$0xff] 0.0
        %473 = vst [vmem:[#allocation2 + $0x668] sm:$0xff] 0.0
        %474 = vst [vmem:[#allocation2 + $0x670] sm:$0xff] 0.0
        %475 = vst [vmem:[#allocation2 + $0x678] sm:$0xff] 0.0
        %476 = vst [vmem:[#allocation2 + $0x680] sm:$0xff] 0.0
        %477 = vst [vmem:[#allocation2 + $0x688] sm:$0xff] 0.0
        %478 = vst [vmem:[#allocation2 + $0x690] sm:$0xff] 0.0
        %479 = vst [vmem:[#allocation2 + $0x698] sm:$0xff] 0.0
        %480 = vst [vmem:[#allocation2 + $0x6a0] sm:$0xff] 0.0
        %481 = vst [vmem:[#allocation2 + $0x6a8] sm:$0xff] 0.0
        %482 = vst [vmem:[#allocation2 + $0x6b0] sm:$0xff] 0.0
        %483 = vst [vmem:[#allocation2 + $0x6b8] sm:$0xff] 0.0
        %484 = vst [vmem:[#allocation2 + $0x6c0] sm:$0xff] 0.0
        %485 = vst [vmem:[#allocation2 + $0x6c8] sm:$0xff] 0.0
        %486 = vst [vmem:[#allocation2 + $0x6d0] sm:$0xff] 0.0
        %487 = vst [vmem:[#allocation2 + $0x6d8] sm:$0xff] 0.0
        %488 = vst [vmem:[#allocation2 + $0x6e0] sm:$0xff] 0.0
        %489 = vst [vmem:[#allocation2 + $0x6e8] sm:$0xff] 0.0
        %490 = vst [vmem:[#allocation2 + $0x6f0] sm:$0xff] 0.0
        %491 = vst [vmem:[#allocation2 + $0x6f8] sm:$0xff] 0.0
        %492 = vst [vmem:[#allocation2 + $0x700] sm:$0xff] 0.0
        %493 = vst [vmem:[#allocation2 + $0x708] sm:$0xff] 0.0
        %494 = vst [vmem:[#allocation2 + $0x710] sm:$0xff] 0.0
        %495 = vst [vmem:[#allocation2 + $0x718] sm:$0xff] 0.0
        %496 = vst [vmem:[#allocation2 + $0x720] sm:$0xff] 0.0
        %497 = vst [vmem:[#allocation2 + $0x728] sm:$0xff] 0.0
        %498 = vst [vmem:[#allocation2 + $0x730] sm:$0xff] 0.0
        %499 = vst [vmem:[#allocation2 + $0x738] sm:$0xff] 0.0
        %500 = vst [vmem:[#allocation2 + $0x740] sm:$0xff] 0.0
        %501 = vst [vmem:[#allocation2 + $0x748] sm:$0xff] 0.0
        %502 = vst [vmem:[#allocation2 + $0x750] sm:$0xff] 0.0
        %503 = vst [vmem:[#allocation2 + $0x758] sm:$0xff] 0.0
        %504 = vst [vmem:[#allocation2 + $0x760] sm:$0xff] 0.0
        %505 = vst [vmem:[#allocation2 + $0x768] sm:$0xff] 0.0
        %506 = vst [vmem:[#allocation2 + $0x770] sm:$0xff] 0.0
        %507 = vst [vmem:[#allocation2 + $0x778] sm:$0xff] 0.0
        %508 = vst [vmem:[#allocation2 + $0x780] sm:$0xff] 0.0
        %509 = vst [vmem:[#allocation2 + $0x788] sm:$0xff] 0.0
        %510 = vst [vmem:[#allocation2 + $0x790] sm:$0xff] 0.0
        %511 = vst [vmem:[#allocation2 + $0x798] sm:$0xff] 0.0
        %512 = vst [vmem:[#allocation2 + $0x7a0] sm:$0xff] 0.0
        %513 = vst [vmem:[#allocation2 + $0x7a8] sm:$0xff] 0.0
        %514 = vst [vmem:[#allocation2 + $0x7b0] sm:$0xff] 0.0
        %515 = vst [vmem:[#allocation2 + $0x7b8] sm:$0xff] 0.0
        %516 = vst [vmem:[#allocation2 + $0x7c0] sm:$0xff] 0.0
        %517 = vst [vmem:[#allocation2 + $0x7c8] sm:$0xff] 0.0
        %518 = vst [vmem:[#allocation2 + $0x7d0] sm:$0xff] 0.0
        %519 = vst [vmem:[#allocation2 + $0x7d8] sm:$0xff] 0.0
        %520 = vst [vmem:[#allocation2 + $0x7e0] sm:$0xff] 0.0
        %521 = vst [vmem:[#allocation2 + $0x7e8] sm:$0xff] 0.0
        %522 = vst [vmem:[#allocation2 + $0x7f0] sm:$0xff] 0.0
        %523 = vst [vmem:[#allocation2 + $0x7f8] sm:$0xff] 0.0
      $region32: #{matmul_g.1} parent=27 // pred_fallthru
        _
      %v524 = vld [vmem:[#allocation2] sm:$0xff]
      %v525 = vld [vmem:[#allocation2 + $0x8] sm:$0xff]
      %v526 = vld [vmem:[#allocation2 + $0x10] sm:$0xff]
      %v527 = vld [vmem:[#allocation2 + $0x18] sm:$0xff]
      %v528 = vld [vmem:[#allocation2 + $0x20] sm:$0xff]
      %v529 = vld [vmem:[#allocation2 + $0x28] sm:$0xff]
      %v530 = vld [vmem:[#allocation2 + $0x30] sm:$0xff]
      %v531 = vld [vmem:[#allocation2 + $0x38] sm:$0xff]
      %v532 = vld [vmem:[#allocation2 + $0x40] sm:$0xff]
      %v533 = vld [vmem:[#allocation2 + $0x48] sm:$0xff]
      %v534 = vld [vmem:[#allocation2 + $0x50] sm:$0xff]
      %v535 = vld [vmem:[#allocation2 + $0x58] sm:$0xff]
      %v536 = vld [vmem:[#allocation2 + $0x60] sm:$0xff]
      %v537 = vld [vmem:[#allocation2 + $0x68] sm:$0xff]
      %v538 = vld [vmem:[#allocation2 + $0x70] sm:$0xff]
      %v539 = vld [vmem:[#allocation2 + $0x78] sm:$0xff]
      %v540 = vld [vmem:[#allocation2 + $0x80] sm:$0xff]
      %v541 = vld [vmem:[#allocation2 + $0x88] sm:$0xff]
      %v542 = vld [vmem:[#allocation2 + $0x90] sm:$0xff]
      %v543 = vld [vmem:[#allocation2 + $0x98] sm:$0xff]
      %v544 = vld [vmem:[#allocation2 + $0xa0] sm:$0xff]
      %v545 = vld [vmem:[#allocation2 + $0xa8] sm:$0xff]
      %v546 = vld [vmem:[#allocation2 + $0xb0] sm:$0xff]
      %v547 = vld [vmem:[#allocation2 + $0xb8] sm:$0xff]
      %v548 = vld [vmem:[#allocation2 + $0xc0] sm:$0xff]
      %v549 = vld [vmem:[#allocation2 + $0xc8] sm:$0xff]
      %v550 = vld [vmem:[#allocation2 + $0xd0] sm:$0xff]
      %v551 = vld [vmem:[#allocation2 + $0xd8] sm:$0xff]
      %v552 = vld [vmem:[#allocation2 + $0xe0] sm:$0xff]
      %v553 = vld [vmem:[#allocation2 + $0xe8] sm:$0xff]
      %v554 = vld [vmem:[#allocation2 + $0xf0] sm:$0xff]
      %v555 = vld [vmem:[#allocation2 + $0xf8] sm:$0xff]
      %v556 = vld [vmem:[#allocation2 + $0x100] sm:$0xff]
      %v557 = vld [vmem:[#allocation2 + $0x108] sm:$0xff]
      %v558 = vld [vmem:[#allocation2 + $0x110] sm:$0xff]
      %v559 = vld [vmem:[#allocation2 + $0x118] sm:$0xff]
      %v560 = vld [vmem:[#allocation2 + $0x120] sm:$0xff]
      %v561 = vld [vmem:[#allocation2 + $0x128] sm:$0xff]
      %v562 = vld [vmem:[#allocation2 + $0x130] sm:$0xff]
      %v563 = vld [vmem:[#allocation2 + $0x138] sm:$0xff]
      %v564 = vld [vmem:[#allocation2 + $0x140] sm:$0xff]
      %v565 = vld [vmem:[#allocation2 + $0x148] sm:$0xff]
      %v566 = vld [vmem:[#allocation2 + $0x150] sm:$0xff]
      %v567 = vld [vmem:[#allocation2 + $0x158] sm:$0xff]
      %v568 = vld [vmem:[#allocation2 + $0x160] sm:$0xff]
      %v569 = vld [vmem:[#allocation2 + $0x168] sm:$0xff]
      %v570 = vld [vmem:[#allocation2 + $0x170] sm:$0xff]
      %v571 = vld [vmem:[#allocation2 + $0x178] sm:$0xff]
      %v572 = vld [vmem:[#allocation2 + $0x180] sm:$0xff]
      %v573 = vld [vmem:[#allocation2 + $0x188] sm:$0xff]
      %v574 = vld [vmem:[#allocation2 + $0x190] sm:$0xff]
      %v575 = vld [vmem:[#allocation2 + $0x198] sm:$0xff]
      %v576 = vld [vmem:[#allocation2 + $0x1a0] sm:$0xff]
      %v577 = vld [vmem:[#allocation2 + $0x1a8] sm:$0xff]
      %v578 = vld [vmem:[#allocation2 + $0x1b0] sm:$0xff]
      %v579 = vld [vmem:[#allocation2 + $0x1b8] sm:$0xff]
      %v580 = vld [vmem:[#allocation2 + $0x1c0] sm:$0xff]
      %v581 = vld [vmem:[#allocation2 + $0x1c8] sm:$0xff]
      %v582 = vld [vmem:[#allocation2 + $0x1d0] sm:$0xff]
      %v583 = vld [vmem:[#allocation2 + $0x1d8] sm:$0xff]
      %v584 = vld [vmem:[#allocation2 + $0x1e0] sm:$0xff]
      %v585 = vld [vmem:[#allocation2 + $0x1e8] sm:$0xff]
      %v586 = vld [vmem:[#allocation2 + $0x1f0] sm:$0xff]
      %v587 = vld [vmem:[#allocation2 + $0x1f8] sm:$0xff]
      %v588 = vld [vmem:[#allocation2 + $0x200] sm:$0xff]
      %v589 = vld [vmem:[#allocation2 + $0x208] sm:$0xff]
      %v590 = vld [vmem:[#allocation2 + $0x210] sm:$0xff]
      %v591 = vld [vmem:[#allocation2 + $0x218] sm:$0xff]
      %v592 = vld [vmem:[#allocation2 + $0x220] sm:$0xff]
      %v593 = vld [vmem:[#allocation2 + $0x228] sm:$0xff]
      %v594 = vld [vmem:[#allocation2 + $0x230] sm:$0xff]
      %v595 = vld [vmem:[#allocation2 + $0x238] sm:$0xff]
      %v596 = vld [vmem:[#allocation2 + $0x240] sm:$0xff]
      %v597 = vld [vmem:[#allocation2 + $0x248] sm:$0xff]
      %v598 = vld [vmem:[#allocation2 + $0x250] sm:$0xff]
      %v599 = vld [vmem:[#allocation2 + $0x258] sm:$0xff]
      %v600 = vld [vmem:[#allocation2 + $0x260] sm:$0xff]
      %v601 = vld [vmem:[#allocation2 + $0x268] sm:$0xff]
      %v602 = vld [vmem:[#allocation2 + $0x270] sm:$0xff]
      %v603 = vld [vmem:[#allocation2 + $0x278] sm:$0xff]
      %v604 = vld [vmem:[#allocation2 + $0x280] sm:$0xff]
      %v605 = vld [vmem:[#allocation2 + $0x288] sm:$0xff]
      %v606 = vld [vmem:[#allocation2 + $0x290] sm:$0xff]
      %v607 = vld [vmem:[#allocation2 + $0x298] sm:$0xff]
      %v608 = vld [vmem:[#allocation2 + $0x2a0] sm:$0xff]
      %v609 = vld [vmem:[#allocation2 + $0x2a8] sm:$0xff]
      %v610 = vld [vmem:[#allocation2 + $0x2b0] sm:$0xff]
      %v611 = vld [vmem:[#allocation2 + $0x2b8] sm:$0xff]
      %v612 = vld [vmem:[#allocation2 + $0x2c0] sm:$0xff]
      %v613 = vld [vmem:[#allocation2 + $0x2c8] sm:$0xff]
      %v614 = vld [vmem:[#allocation2 + $0x2d0] sm:$0xff]
      %v615 = vld [vmem:[#allocation2 + $0x2d8] sm:$0xff]
      %v616 = vld [vmem:[#allocation2 + $0x2e0] sm:$0xff]
      %v617 = vld [vmem:[#allocation2 + $0x2e8] sm:$0xff]
      %v618 = vld [vmem:[#allocation2 + $0x2f0] sm:$0xff]
      %v619 = vld [vmem:[#allocation2 + $0x2f8] sm:$0xff]
      %v620 = vld [vmem:[#allocation2 + $0x300] sm:$0xff]
      %v621 = vld [vmem:[#allocation2 + $0x308] sm:$0xff]
      %v622 = vld [vmem:[#allocation2 + $0x310] sm:$0xff]
      %v623 = vld [vmem:[#allocation2 + $0x318] sm:$0xff]
      %v624 = vld [vmem:[#allocation2 + $0x320] sm:$0xff]
      %v625 = vld [vmem:[#allocation2 + $0x328] sm:$0xff]
      %v626 = vld [vmem:[#allocation2 + $0x330] sm:$0xff]
      %v627 = vld [vmem:[#allocation2 + $0x338] sm:$0xff]
      %v628 = vld [vmem:[#allocation2 + $0x340] sm:$0xff]
      %v629 = vld [vmem:[#allocation2 + $0x348] sm:$0xff]
      %v630 = vld [vmem:[#allocation2 + $0x350] sm:$0xff]
      %v631 = vld [vmem:[#allocation2 + $0x358] sm:$0xff]
      %v632 = vld [vmem:[#allocation2 + $0x360] sm:$0xff]
      %v633 = vld [vmem:[#allocation2 + $0x368] sm:$0xff]
      %v634 = vld [vmem:[#allocation2 + $0x370] sm:$0xff]
      %v635 = vld [vmem:[#allocation2 + $0x378] sm:$0xff]
      %v636 = vld [vmem:[#allocation2 + $0x380] sm:$0xff]
      %v637 = vld [vmem:[#allocation2 + $0x388] sm:$0xff]
      %v638 = vld [vmem:[#allocation2 + $0x390] sm:$0xff]
      %v639 = vld [vmem:[#allocation2 + $0x398] sm:$0xff]
      %v640 = vld [vmem:[#allocation2 + $0x3a0] sm:$0xff]
      %v641 = vld [vmem:[#allocation2 + $0x3a8] sm:$0xff]
      %v642 = vld [vmem:[#allocation2 + $0x3b0] sm:$0xff]
      %v643 = vld [vmem:[#allocation2 + $0x3b8] sm:$0xff]
      %v644 = vld [vmem:[#allocation2 + $0x3c0] sm:$0xff]
      %v645 = vld [vmem:[#allocation2 + $0x3c8] sm:$0xff]
      %v646 = vld [vmem:[#allocation2 + $0x3d0] sm:$0xff]
      %v647 = vld [vmem:[#allocation2 + $0x3d8] sm:$0xff]
      %v648 = vld [vmem:[#allocation2 + $0x3e0] sm:$0xff]
      %v649 = vld [vmem:[#allocation2 + $0x3e8] sm:$0xff]
      %v650 = vld [vmem:[#allocation2 + $0x3f0] sm:$0xff]
      %v651 = vld [vmem:[#allocation2 + $0x3f8] sm:$0xff]
      %v652 = vld [vmem:[#allocation2 + $0x400] sm:$0xff]
      %v653 = vld [vmem:[#allocation2 + $0x408] sm:$0xff]
      %v654 = vld [vmem:[#allocation2 + $0x410] sm:$0xff]
      %v655 = vld [vmem:[#allocation2 + $0x418] sm:$0xff]
      %v656 = vld [vmem:[#allocation2 + $0x420] sm:$0xff]
      %v657 = vld [vmem:[#allocation2 + $0x428] sm:$0xff]
      %v658 = vld [vmem:[#allocation2 + $0x430] sm:$0xff]
      %v659 = vld [vmem:[#allocation2 + $0x438] sm:$0xff]
      %v660 = vld [vmem:[#allocation2 + $0x440] sm:$0xff]
      %v661 = vld [vmem:[#allocation2 + $0x448] sm:$0xff]
      %v662 = vld [vmem:[#allocation2 + $0x450] sm:$0xff]
      %v663 = vld [vmem:[#allocation2 + $0x458] sm:$0xff]
      %v664 = vld [vmem:[#allocation2 + $0x460] sm:$0xff]
      %v665 = vld [vmem:[#allocation2 + $0x468] sm:$0xff]
      %v666 = vld [vmem:[#allocation2 + $0x470] sm:$0xff]
      %v667 = vld [vmem:[#allocation2 + $0x478] sm:$0xff]
      %v668 = vld [vmem:[#allocation2 + $0x480] sm:$0xff]
      %v669 = vld [vmem:[#allocation2 + $0x488] sm:$0xff]
      %v670 = vld [vmem:[#allocation2 + $0x490] sm:$0xff]
      %v671 = vld [vmem:[#allocation2 + $0x498] sm:$0xff]
      %v672 = vld [vmem:[#allocation2 + $0x4a0] sm:$0xff]
      %v673 = vld [vmem:[#allocation2 + $0x4a8] sm:$0xff]
      %v674 = vld [vmem:[#allocation2 + $0x4b0] sm:$0xff]
      %v675 = vld [vmem:[#allocation2 + $0x4b8] sm:$0xff]
      %v676 = vld [vmem:[#allocation2 + $0x4c0] sm:$0xff]
      %v677 = vld [vmem:[#allocation2 + $0x4c8] sm:$0xff]
      %v678 = vld [vmem:[#allocation2 + $0x4d0] sm:$0xff]
      %v679 = vld [vmem:[#allocation2 + $0x4d8] sm:$0xff]
      %v680 = vld [vmem:[#allocation2 + $0x4e0] sm:$0xff]
      %v681 = vld [vmem:[#allocation2 + $0x4e8] sm:$0xff]
      %v682 = vld [vmem:[#allocation2 + $0x4f0] sm:$0xff]
      %v683 = vld [vmem:[#allocation2 + $0x4f8] sm:$0xff]
      %v684 = vld [vmem:[#allocation2 + $0x500] sm:$0xff]
      %v685 = vld [vmem:[#allocation2 + $0x508] sm:$0xff]
      %v686 = vld [vmem:[#allocation2 + $0x510] sm:$0xff]
      %v687 = vld [vmem:[#allocation2 + $0x518] sm:$0xff]
      %v688 = vld [vmem:[#allocation2 + $0x520] sm:$0xff]
      %v689 = vld [vmem:[#allocation2 + $0x528] sm:$0xff]
      %v690 = vld [vmem:[#allocation2 + $0x530] sm:$0xff]
      %v691 = vld [vmem:[#allocation2 + $0x538] sm:$0xff]
      %v692 = vld [vmem:[#allocation2 + $0x540] sm:$0xff]
      %v693 = vld [vmem:[#allocation2 + $0x548] sm:$0xff]
      %v694 = vld [vmem:[#allocation2 + $0x550] sm:$0xff]
      %v695 = vld [vmem:[#allocation2 + $0x558] sm:$0xff]
      %v696 = vld [vmem:[#allocation2 + $0x560] sm:$0xff]
      %v697 = vld [vmem:[#allocation2 + $0x568] sm:$0xff]
      %v698 = vld [vmem:[#allocation2 + $0x570] sm:$0xff]
      %v699 = vld [vmem:[#allocation2 + $0x578] sm:$0xff]
      %v700 = vld [vmem:[#allocation2 + $0x580] sm:$0xff]
      %v701 = vld [vmem:[#allocation2 + $0x588] sm:$0xff]
      %v702 = vld [vmem:[#allocation2 + $0x590] sm:$0xff]
      %v703 = vld [vmem:[#allocation2 + $0x598] sm:$0xff]
      %v704 = vld [vmem:[#allocation2 + $0x5a0] sm:$0xff]
      %v705 = vld [vmem:[#allocation2 + $0x5a8] sm:$0xff]
      %v706 = vld [vmem:[#allocation2 + $0x5b0] sm:$0xff]
      %v707 = vld [vmem:[#allocation2 + $0x5b8] sm:$0xff]
      %v708 = vld [vmem:[#allocation2 + $0x5c0] sm:$0xff]
      %v709 = vld [vmem:[#allocation2 + $0x5c8] sm:$0xff]
      %v710 = vld [vmem:[#allocation2 + $0x5d0] sm:$0xff]
      %v711 = vld [vmem:[#allocation2 + $0x5d8] sm:$0xff]
      %v712 = vld [vmem:[#allocation2 + $0x5e0] sm:$0xff]
      %v713 = vld [vmem:[#allocation2 + $0x5e8] sm:$0xff]
      %v714 = vld [vmem:[#allocation2 + $0x5f0] sm:$0xff]
      %v715 = vld [vmem:[#allocation2 + $0x5f8] sm:$0xff]
      %v716 = vld [vmem:[#allocation2 + $0x600] sm:$0xff]
      %v717 = vld [vmem:[#allocation2 + $0x608] sm:$0xff]
      %v718 = vld [vmem:[#allocation2 + $0x610] sm:$0xff]
      %v719 = vld [vmem:[#allocation2 + $0x618] sm:$0xff]
      %v720 = vld [vmem:[#allocation2 + $0x620] sm:$0xff]
      %v721 = vld [vmem:[#allocation2 + $0x628] sm:$0xff]
      %v722 = vld [vmem:[#allocation2 + $0x630] sm:$0xff]
      %v723 = vld [vmem:[#allocation2 + $0x638] sm:$0xff]
      %v724 = vld [vmem:[#allocation2 + $0x640] sm:$0xff]
      %v725 = vld [vmem:[#allocation2 + $0x648] sm:$0xff]
      %v726 = vld [vmem:[#allocation2 + $0x650] sm:$0xff]
      %v727 = vld [vmem:[#allocation2 + $0x658] sm:$0xff]
      %v728 = vld [vmem:[#allocation2 + $0x660] sm:$0xff]
      %v729 = vld [vmem:[#allocation2 + $0x668] sm:$0xff]
      %v730 = vld [vmem:[#allocation2 + $0x670] sm:$0xff]
      %v731 = vld [vmem:[#allocation2 + $0x678] sm:$0xff]
      %v732 = vld [vmem:[#allocation2 + $0x680] sm:$0xff]
      %v733 = vld [vmem:[#allocation2 + $0x688] sm:$0xff]
      %v734 = vld [vmem:[#allocation2 + $0x690] sm:$0xff]
      %v735 = vld [vmem:[#allocation2 + $0x698] sm:$0xff]
      %v736 = vld [vmem:[#allocation2 + $0x6a0] sm:$0xff]
      %v737 = vld [vmem:[#allocation2 + $0x6a8] sm:$0xff]
      %v738 = vld [vmem:[#allocation2 + $0x6b0] sm:$0xff]
      %v739 = vld [vmem:[#allocation2 + $0x6b8] sm:$0xff]
      %v740 = vld [vmem:[#allocation2 + $0x6c0] sm:$0xff]
      %v741 = vld [vmem:[#allocation2 + $0x6c8] sm:$0xff]
      %v742 = vld [vmem:[#allocation2 + $0x6d0] sm:$0xff]
      %v743 = vld [vmem:[#allocation2 + $0x6d8] sm:$0xff]
      %v744 = vld [vmem:[#allocation2 + $0x6e0] sm:$0xff]
      %v745 = vld [vmem:[#allocation2 + $0x6e8] sm:$0xff]
      %v746 = vld [vmem:[#allocation2 + $0x6f0] sm:$0xff]
      %v747 = vld [vmem:[#allocation2 + $0x6f8] sm:$0xff]
      %v748 = vld [vmem:[#allocation2 + $0x700] sm:$0xff]
      %v749 = vld [vmem:[#allocation2 + $0x708] sm:$0xff]
      %v750 = vld [vmem:[#allocation2 + $0x710] sm:$0xff]
      %v751 = vld [vmem:[#allocation2 + $0x718] sm:$0xff]
      %v752 = vld [vmem:[#allocation2 + $0x720] sm:$0xff]
      %v753 = vld [vmem:[#allocation2 + $0x728] sm:$0xff]
      %v754 = vld [vmem:[#allocation2 + $0x730] sm:$0xff]
      %v755 = vld [vmem:[#allocation2 + $0x738] sm:$0xff]
      %v756 = vld [vmem:[#allocation2 + $0x740] sm:$0xff]
      %v757 = vld [vmem:[#allocation2 + $0x748] sm:$0xff]
      %v758 = vld [vmem:[#allocation2 + $0x750] sm:$0xff]
      %v759 = vld [vmem:[#allocation2 + $0x758] sm:$0xff]
      %v760 = vld [vmem:[#allocation2 + $0x760] sm:$0xff]
      %v761 = vld [vmem:[#allocation2 + $0x768] sm:$0xff]
      %v762 = vld [vmem:[#allocation2 + $0x770] sm:$0xff]
      %v763 = vld [vmem:[#allocation2 + $0x778] sm:$0xff]
      %v764 = vld [vmem:[#allocation2 + $0x780] sm:$0xff]
      %v765 = vld [vmem:[#allocation2 + $0x788] sm:$0xff]
      %v766 = vld [vmem:[#allocation2 + $0x790] sm:$0xff]
      %v767 = vld [vmem:[#allocation2 + $0x798] sm:$0xff]
      %v768 = vld [vmem:[#allocation2 + $0x7a0] sm:$0xff]
      %v769 = vld [vmem:[#allocation2 + $0x7a8] sm:$0xff]
      %v770 = vld [vmem:[#allocation2 + $0x7b0] sm:$0xff]
      %v771 = vld [vmem:[#allocation2 + $0x7b8] sm:$0xff]
      %v772 = vld [vmem:[#allocation2 + $0x7c0] sm:$0xff]
      %v773 = vld [vmem:[#allocation2 + $0x7c8] sm:$0xff]
      %v774 = vld [vmem:[#allocation2 + $0x7d0] sm:$0xff]
      %v775 = vld [vmem:[#allocation2 + $0x7d8] sm:$0xff]
      %v776 = vld [vmem:[#allocation2 + $0x7e0] sm:$0xff]
      %v777 = vld [vmem:[#allocation2 + $0x7e8] sm:$0xff]
      %v778 = vld [vmem:[#allocation2 + $0x7f0] sm:$0xff]
      %v779 = vld [vmem:[#allocation2 + $0x7f8] sm:$0xff]
      %v780 = vld [vmem:[%s235] sm:$0xf]
      %v781 = vld [vmem:[%s235 + $0x4] sm:$0xf]
      %v782 = vld [vmem:[%s235 + $0x8] sm:$0xf]
      %v783 = vld [vmem:[%s235 + $0xc] sm:$0xf]
      %v784 = vld [vmem:[%s235 + $0x10] sm:$0xf]
      %v785 = vld [vmem:[%s235 + $0x14] sm:$0xf]
      %v786 = vld [vmem:[%s235 + $0x18] sm:$0xf]
      %v787 = vld [vmem:[%s235 + $0x1c] sm:$0xf]
      %v788 = vld [vmem:[%s235 + $0x20] sm:$0xf]
      %v789 = vld [vmem:[%s235 + $0x24] sm:$0xf]
      %v790 = vld [vmem:[%s235 + $0x28] sm:$0xf]
      %v791 = vld [vmem:[%s235 + $0x2c] sm:$0xf]
      %v792 = vld [vmem:[%s235 + $0x30] sm:$0xf]
      %v793 = vld [vmem:[%s235 + $0x34] sm:$0xf]
      %v794 = vld [vmem:[%s235 + $0x38] sm:$0xf]
      %v795 = vld [vmem:[%s235 + $0x3c] sm:$0xf]
      %v796 = vld [vmem:[%s235 + $0x40] sm:$0xf]
      %v797 = vld [vmem:[%s235 + $0x44] sm:$0xf]
      %v798 = vld [vmem:[%s235 + $0x48] sm:$0xf]
      %v799 = vld [vmem:[%s235 + $0x4c] sm:$0xf]
      %v800 = vld [vmem:[%s235 + $0x50] sm:$0xf]
      %v801 = vld [vmem:[%s235 + $0x54] sm:$0xf]
      %v802 = vld [vmem:[%s235 + $0x58] sm:$0xf]
      %v803 = vld [vmem:[%s235 + $0x5c] sm:$0xf]
      %v804 = vld [vmem:[%s235 + $0x60] sm:$0xf]
      %v805 = vld [vmem:[%s235 + $0x64] sm:$0xf]
      %v806 = vld [vmem:[%s235 + $0x68] sm:$0xf]
      %v807 = vld [vmem:[%s235 + $0x6c] sm:$0xf]
      %v808 = vld [vmem:[%s235 + $0x70] sm:$0xf]
      %v809 = vld [vmem:[%s235 + $0x74] sm:$0xf]
      %v810 = vld [vmem:[%s235 + $0x78] sm:$0xf]
      %v811 = vld [vmem:[%s235 + $0x7c] sm:$0xf]
      %v812 = vld [vmem:[%s235 + $0x80] sm:$0xf]
      %v813 = vld [vmem:[%s235 + $0x84] sm:$0xf]
      %v814 = vld [vmem:[%s235 + $0x88] sm:$0xf]
      %v815 = vld [vmem:[%s235 + $0x8c] sm:$0xf]
      %v816 = vld [vmem:[%s235 + $0x90] sm:$0xf]
      %v817 = vld [vmem:[%s235 + $0x94] sm:$0xf]
      %v818 = vld [vmem:[%s235 + $0x98] sm:$0xf]
      %v819 = vld [vmem:[%s235 + $0x9c] sm:$0xf]
      %v820 = vld [vmem:[%s235 + $0xa0] sm:$0xf]
      %v821 = vld [vmem:[%s235 + $0xa4] sm:$0xf]
      %v822 = vld [vmem:[%s235 + $0xa8] sm:$0xf]
      %v823 = vld [vmem:[%s235 + $0xac] sm:$0xf]
      %v824 = vld [vmem:[%s235 + $0xb0] sm:$0xf]
      %v825 = vld [vmem:[%s235 + $0xb4] sm:$0xf]
      %v826 = vld [vmem:[%s235 + $0xb8] sm:$0xf]
      %v827 = vld [vmem:[%s235 + $0xbc] sm:$0xf]
      %v828 = vld [vmem:[%s235 + $0xc0] sm:$0xf]
      %v829 = vld [vmem:[%s235 + $0xc4] sm:$0xf]
      %v830 = vld [vmem:[%s235 + $0xc8] sm:$0xf]
      %v831 = vld [vmem:[%s235 + $0xcc] sm:$0xf]
      %v832 = vld [vmem:[%s235 + $0xd0] sm:$0xf]
      %v833 = vld [vmem:[%s235 + $0xd4] sm:$0xf]
      %v834 = vld [vmem:[%s235 + $0xd8] sm:$0xf]
      %v835 = vld [vmem:[%s235 + $0xdc] sm:$0xf]
      %v836 = vld [vmem:[%s235 + $0xe0] sm:$0xf]
      %v837 = vld [vmem:[%s235 + $0xe4] sm:$0xf]
      %v838 = vld [vmem:[%s235 + $0xe8] sm:$0xf]
      %v839 = vld [vmem:[%s235 + $0xec] sm:$0xf]
      %v840 = vld [vmem:[%s235 + $0xf0] sm:$0xf]
      %v841 = vld [vmem:[%s235 + $0xf4] sm:$0xf]
      %v842 = vld [vmem:[%s235 + $0xf8] sm:$0xf]
      %v843 = vld [vmem:[%s235 + $0xfc] sm:$0xf]
      %v844 = vld [vmem:[%s235 + $0x100] sm:$0xf]
      %v845 = vld [vmem:[%s235 + $0x104] sm:$0xf]
      %v846 = vld [vmem:[%s235 + $0x108] sm:$0xf]
      %v847 = vld [vmem:[%s235 + $0x10c] sm:$0xf]
      %v848 = vld [vmem:[%s235 + $0x110] sm:$0xf]
      %v849 = vld [vmem:[%s235 + $0x114] sm:$0xf]
      %v850 = vld [vmem:[%s235 + $0x118] sm:$0xf]
      %v851 = vld [vmem:[%s235 + $0x11c] sm:$0xf]
      %v852 = vld [vmem:[%s235 + $0x120] sm:$0xf]
      %v853 = vld [vmem:[%s235 + $0x124] sm:$0xf]
      %v854 = vld [vmem:[%s235 + $0x128] sm:$0xf]
      %v855 = vld [vmem:[%s235 + $0x12c] sm:$0xf]
      %v856 = vld [vmem:[%s235 + $0x130] sm:$0xf]
      %v857 = vld [vmem:[%s235 + $0x134] sm:$0xf]
      %v858 = vld [vmem:[%s235 + $0x138] sm:$0xf]
      %v859 = vld [vmem:[%s235 + $0x13c] sm:$0xf]
      %v860 = vld [vmem:[%s235 + $0x140] sm:$0xf]
      %v861 = vld [vmem:[%s235 + $0x144] sm:$0xf]
      %v862 = vld [vmem:[%s235 + $0x148] sm:$0xf]
      %v863 = vld [vmem:[%s235 + $0x14c] sm:$0xf]
      %v864 = vld [vmem:[%s235 + $0x150] sm:$0xf]
      %v865 = vld [vmem:[%s235 + $0x154] sm:$0xf]
      %v866 = vld [vmem:[%s235 + $0x158] sm:$0xf]
      %v867 = vld [vmem:[%s235 + $0x15c] sm:$0xf]
      %v868 = vld [vmem:[%s235 + $0x160] sm:$0xf]
      %v869 = vld [vmem:[%s235 + $0x164] sm:$0xf]
      %v870 = vld [vmem:[%s235 + $0x168] sm:$0xf]
      %v871 = vld [vmem:[%s235 + $0x16c] sm:$0xf]
      %v872 = vld [vmem:[%s235 + $0x170] sm:$0xf]
      %v873 = vld [vmem:[%s235 + $0x174] sm:$0xf]
      %v874 = vld [vmem:[%s235 + $0x178] sm:$0xf]
      %v875 = vld [vmem:[%s235 + $0x17c] sm:$0xf]
      %v876 = vld [vmem:[%s235 + $0x180] sm:$0xf]
      %v877 = vld [vmem:[%s235 + $0x184] sm:$0xf]
      %v878 = vld [vmem:[%s235 + $0x188] sm:$0xf]
      %v879 = vld [vmem:[%s235 + $0x18c] sm:$0xf]
      %v880 = vld [vmem:[%s235 + $0x190] sm:$0xf]
      %v881 = vld [vmem:[%s235 + $0x194] sm:$0xf]
      %v882 = vld [vmem:[%s235 + $0x198] sm:$0xf]
      %v883 = vld [vmem:[%s235 + $0x19c] sm:$0xf]
      %v884 = vld [vmem:[%s235 + $0x1a0] sm:$0xf]
      %v885 = vld [vmem:[%s235 + $0x1a4] sm:$0xf]
      %v886 = vld [vmem:[%s235 + $0x1a8] sm:$0xf]
      %v887 = vld [vmem:[%s235 + $0x1ac] sm:$0xf]
      %v888 = vld [vmem:[%s235 + $0x1b0] sm:$0xf]
      %v889 = vld [vmem:[%s235 + $0x1b4] sm:$0xf]
      %v890 = vld [vmem:[%s235 + $0x1b8] sm:$0xf]
      %v891 = vld [vmem:[%s235 + $0x1bc] sm:$0xf]
      %v892 = vld [vmem:[%s235 + $0x1c0] sm:$0xf]
      %v893 = vld [vmem:[%s235 + $0x1c4] sm:$0xf]
      %v894 = vld [vmem:[%s235 + $0x1c8] sm:$0xf]
      %v895 = vld [vmem:[%s235 + $0x1cc] sm:$0xf]
      %v896 = vld [vmem:[%s235 + $0x1d0] sm:$0xf]
      %v897 = vld [vmem:[%s235 + $0x1d4] sm:$0xf]
      %v898 = vld [vmem:[%s235 + $0x1d8] sm:$0xf]
      %v899 = vld [vmem:[%s235 + $0x1dc] sm:$0xf]
      %v900 = vld [vmem:[%s235 + $0x1e0] sm:$0xf]
      %v901 = vld [vmem:[%s235 + $0x1e4] sm:$0xf]
      %v902 = vld [vmem:[%s235 + $0x1e8] sm:$0xf]
      %v903 = vld [vmem:[%s235 + $0x1ec] sm:$0xf]
      %v904 = vld [vmem:[%s235 + $0x1f0] sm:$0xf]
      %v905 = vld [vmem:[%s235 + $0x1f4] sm:$0xf]
      %v906 = vld [vmem:[%s235 + $0x1f8] sm:$0xf]
      %v907 = vld [vmem:[%s235 + $0x1fc] sm:$0xf]
      %v908 = vld [vmem:[%s235 + $0x200] sm:$0xf]
      %v909 = vld [vmem:[%s235 + $0x204] sm:$0xf]
      %v910 = vld [vmem:[%s235 + $0x208] sm:$0xf]
      %v911 = vld [vmem:[%s235 + $0x20c] sm:$0xf]
      %v912 = vld [vmem:[%s235 + $0x210] sm:$0xf]
      %v913 = vld [vmem:[%s235 + $0x214] sm:$0xf]
      %v914 = vld [vmem:[%s235 + $0x218] sm:$0xf]
      %v915 = vld [vmem:[%s235 + $0x21c] sm:$0xf]
      %v916 = vld [vmem:[%s235 + $0x220] sm:$0xf]
      %v917 = vld [vmem:[%s235 + $0x224] sm:$0xf]
      %v918 = vld [vmem:[%s235 + $0x228] sm:$0xf]
      %v919 = vld [vmem:[%s235 + $0x22c] sm:$0xf]
      %v920 = vld [vmem:[%s235 + $0x230] sm:$0xf]
      %v921 = vld [vmem:[%s235 + $0x234] sm:$0xf]
      %v922 = vld [vmem:[%s235 + $0x238] sm:$0xf]
      %v923 = vld [vmem:[%s235 + $0x23c] sm:$0xf]
      %v924 = vld [vmem:[%s235 + $0x240] sm:$0xf]
      %v925 = vld [vmem:[%s235 + $0x244] sm:$0xf]
      %v926 = vld [vmem:[%s235 + $0x248] sm:$0xf]
      %v927 = vld [vmem:[%s235 + $0x24c] sm:$0xf]
      %v928 = vld [vmem:[%s235 + $0x250] sm:$0xf]
      %v929 = vld [vmem:[%s235 + $0x254] sm:$0xf]
      %v930 = vld [vmem:[%s235 + $0x258] sm:$0xf]
      %v931 = vld [vmem:[%s235 + $0x25c] sm:$0xf]
      %v932 = vld [vmem:[%s235 + $0x260] sm:$0xf]
      %v933 = vld [vmem:[%s235 + $0x264] sm:$0xf]
      %v934 = vld [vmem:[%s235 + $0x268] sm:$0xf]
      %v935 = vld [vmem:[%s235 + $0x26c] sm:$0xf]
      %v936 = vld [vmem:[%s235 + $0x270] sm:$0xf]
      %v937 = vld [vmem:[%s235 + $0x274] sm:$0xf]
      %v938 = vld [vmem:[%s235 + $0x278] sm:$0xf]
      %v939 = vld [vmem:[%s235 + $0x27c] sm:$0xf]
      %v940 = vld [vmem:[%s235 + $0x280] sm:$0xf]
      %v941 = vld [vmem:[%s235 + $0x284] sm:$0xf]
      %v942 = vld [vmem:[%s235 + $0x288] sm:$0xf]
      %v943 = vld [vmem:[%s235 + $0x28c] sm:$0xf]
      %v944 = vld [vmem:[%s235 + $0x290] sm:$0xf]
      %v945 = vld [vmem:[%s235 + $0x294] sm:$0xf]
      %v946 = vld [vmem:[%s235 + $0x298] sm:$0xf]
      %v947 = vld [vmem:[%s235 + $0x29c] sm:$0xf]
      %v948 = vld [vmem:[%s235 + $0x2a0] sm:$0xf]
      %v949 = vld [vmem:[%s235 + $0x2a4] sm:$0xf]
      %v950 = vld [vmem:[%s235 + $0x2a8] sm:$0xf]
      %v951 = vld [vmem:[%s235 + $0x2ac] sm:$0xf]
      %v952 = vld [vmem:[%s235 + $0x2b0] sm:$0xf]
      %v953 = vld [vmem:[%s235 + $0x2b4] sm:$0xf]
      %v954 = vld [vmem:[%s235 + $0x2b8] sm:$0xf]
      %v955 = vld [vmem:[%s235 + $0x2bc] sm:$0xf]
      %v956 = vld [vmem:[%s235 + $0x2c0] sm:$0xf]
      %v957 = vld [vmem:[%s235 + $0x2c4] sm:$0xf]
      %v958 = vld [vmem:[%s235 + $0x2c8] sm:$0xf]
      %v959 = vld [vmem:[%s235 + $0x2cc] sm:$0xf]
      %v960 = vld [vmem:[%s235 + $0x2d0] sm:$0xf]
      %v961 = vld [vmem:[%s235 + $0x2d4] sm:$0xf]
      %v962 = vld [vmem:[%s235 + $0x2d8] sm:$0xf]
      %v963 = vld [vmem:[%s235 + $0x2dc] sm:$0xf]
      %v964 = vld [vmem:[%s235 + $0x2e0] sm:$0xf]
      %v965 = vld [vmem:[%s235 + $0x2e4] sm:$0xf]
      %v966 = vld [vmem:[%s235 + $0x2e8] sm:$0xf]
      %v967 = vld [vmem:[%s235 + $0x2ec] sm:$0xf]
      %v968 = vld [vmem:[%s235 + $0x2f0] sm:$0xf]
      %v969 = vld [vmem:[%s235 + $0x2f4] sm:$0xf]
      %v970 = vld [vmem:[%s235 + $0x2f8] sm:$0xf]
      %v971 = vld [vmem:[%s235 + $0x2fc] sm:$0xf]
      %v972 = vld [vmem:[%s235 + $0x300] sm:$0xf]
      %v973 = vld [vmem:[%s235 + $0x304] sm:$0xf]
      %v974 = vld [vmem:[%s235 + $0x308] sm:$0xf]
      %v975 = vld [vmem:[%s235 + $0x30c] sm:$0xf]
      %v976 = vld [vmem:[%s235 + $0x310] sm:$0xf]
      %v977 = vld [vmem:[%s235 + $0x314] sm:$0xf]
      %v978 = vld [vmem:[%s235 + $0x318] sm:$0xf]
      %v979 = vld [vmem:[%s235 + $0x31c] sm:$0xf]
      %v980 = vld [vmem:[%s235 + $0x320] sm:$0xf]
      %v981 = vld [vmem:[%s235 + $0x324] sm:$0xf]
      %v982 = vld [vmem:[%s235 + $0x328] sm:$0xf]
      %v983 = vld [vmem:[%s235 + $0x32c] sm:$0xf]
      %v984 = vld [vmem:[%s235 + $0x330] sm:$0xf]
      %v985 = vld [vmem:[%s235 + $0x334] sm:$0xf]
      %v986 = vld [vmem:[%s235 + $0x338] sm:$0xf]
      %v987 = vld [vmem:[%s235 + $0x33c] sm:$0xf]
      %v988 = vld [vmem:[%s235 + $0x340] sm:$0xf]
      %v989 = vld [vmem:[%s235 + $0x344] sm:$0xf]
      %v990 = vld [vmem:[%s235 + $0x348] sm:$0xf]
      %v991 = vld [vmem:[%s235 + $0x34c] sm:$0xf]
      %v992 = vld [vmem:[%s235 + $0x350] sm:$0xf]
      %v993 = vld [vmem:[%s235 + $0x354] sm:$0xf]
      %v994 = vld [vmem:[%s235 + $0x358] sm:$0xf]
      %v995 = vld [vmem:[%s235 + $0x35c] sm:$0xf]
      %v996 = vld [vmem:[%s235 + $0x360] sm:$0xf]
      %v997 = vld [vmem:[%s235 + $0x364] sm:$0xf]
      %v998 = vld [vmem:[%s235 + $0x368] sm:$0xf]
      %v999 = vld [vmem:[%s235 + $0x36c] sm:$0xf]
      %v1000 = vld [vmem:[%s235 + $0x370] sm:$0xf]
      %v1001 = vld [vmem:[%s235 + $0x374] sm:$0xf]
      %v1002 = vld [vmem:[%s235 + $0x378] sm:$0xf]
      %v1003 = vld [vmem:[%s235 + $0x37c] sm:$0xf]
      %v1004 = vld [vmem:[%s235 + $0x380] sm:$0xf]
      %v1005 = vld [vmem:[%s235 + $0x384] sm:$0xf]
      %v1006 = vld [vmem:[%s235 + $0x388] sm:$0xf]
      %v1007 = vld [vmem:[%s235 + $0x38c] sm:$0xf]
      %v1008 = vld [vmem:[%s235 + $0x390] sm:$0xf]
      %v1009 = vld [vmem:[%s235 + $0x394] sm:$0xf]
      %v1010 = vld [vmem:[%s235 + $0x398] sm:$0xf]
      %v1011 = vld [vmem:[%s235 + $0x39c] sm:$0xf]
      %v1012 = vld [vmem:[%s235 + $0x3a0] sm:$0xf]
      %v1013 = vld [vmem:[%s235 + $0x3a4] sm:$0xf]
      %v1014 = vld [vmem:[%s235 + $0x3a8] sm:$0xf]
      %v1015 = vld [vmem:[%s235 + $0x3ac] sm:$0xf]
      %v1016 = vld [vmem:[%s235 + $0x3b0] sm:$0xf]
      %v1017 = vld [vmem:[%s235 + $0x3b4] sm:$0xf]
      %v1018 = vld [vmem:[%s235 + $0x3b8] sm:$0xf]
      %v1019 = vld [vmem:[%s235 + $0x3bc] sm:$0xf]
      %v1020 = vld [vmem:[%s235 + $0x3c0] sm:$0xf]
      %v1021 = vld [vmem:[%s235 + $0x3c4] sm:$0xf]
      %v1022 = vld [vmem:[%s235 + $0x3c8] sm:$0xf]
      %v1023 = vld [vmem:[%s235 + $0x3cc] sm:$0xf]
      %v1024 = vld [vmem:[%s235 + $0x3d0] sm:$0xf]
      %v1025 = vld [vmem:[%s235 + $0x3d4] sm:$0xf]
      %v1026 = vld [vmem:[%s235 + $0x3d8] sm:$0xf]
      %v1027 = vld [vmem:[%s235 + $0x3dc] sm:$0xf]
      %v1028 = vld [vmem:[%s235 + $0x3e0] sm:$0xf]
      %v1029 = vld [vmem:[%s235 + $0x3e4] sm:$0xf]
      %v1030 = vld [vmem:[%s235 + $0x3e8] sm:$0xf]
      %v1031 = vld [vmem:[%s235 + $0x3ec] sm:$0xf]
      %v1032 = vld [vmem:[%s235 + $0x3f0] sm:$0xf]
      %v1033 = vld [vmem:[%s235 + $0x3f4] sm:$0xf]
      %v1034 = vld [vmem:[%s235 + $0x3f8] sm:$0xf]
      %v1035 = vld [vmem:[%s235 + $0x3fc] sm:$0xf]
      %v1036 = vld [vmem:[%s248] sm:$0xf]
      %v1037 = vld [vmem:[%s248 + $0x4] sm:$0xf]
      %v1038 = vld [vmem:[%s248 + $0x8] sm:$0xf]
      %v1039 = vld [vmem:[%s248 + $0xc] sm:$0xf]
      %v1040 = vld [vmem:[%s248 + $0x10] sm:$0xf]
      %v1041 = vld [vmem:[%s248 + $0x14] sm:$0xf]
      %v1042 = vld [vmem:[%s248 + $0x18] sm:$0xf]
      %v1043 = vld [vmem:[%s248 + $0x1c] sm:$0xf]
      %v1044 = vld [vmem:[%s248 + $0x20] sm:$0xf]
      %v1045 = vld [vmem:[%s248 + $0x24] sm:$0xf]
      %v1046 = vld [vmem:[%s248 + $0x28] sm:$0xf]
      %v1047 = vld [vmem:[%s248 + $0x2c] sm:$0xf]
      %v1048 = vld [vmem:[%s248 + $0x30] sm:$0xf]
      %v1049 = vld [vmem:[%s248 + $0x34] sm:$0xf]
      %v1050 = vld [vmem:[%s248 + $0x38] sm:$0xf]
      %v1051 = vld [vmem:[%s248 + $0x3c] sm:$0xf]
      %v1308 = vunpack.c.l.b16 %v780
      %v1309 = vunpack.c.l.b16 %v781
      %v1310 = vunpack.c.l.b16 %v782
      %v1311 = vunpack.c.l.b16 %v783
      %v1312 = vunpack.c.l.b16 %v784
      %v1313 = vunpack.c.l.b16 %v785
      %v1314 = vunpack.c.l.b16 %v786
      %v1315 = vunpack.c.l.b16 %v787
      %v1316 = vunpack.c.l.b16 %v788
      %v1317 = vunpack.c.l.b16 %v789
      %v1318 = vunpack.c.l.b16 %v790
      %v1319 = vunpack.c.l.b16 %v791
      %v1320 = vunpack.c.l.b16 %v792
      %v1321 = vunpack.c.l.b16 %v793
      %v1322 = vunpack.c.l.b16 %v794
      %v1323 = vunpack.c.l.b16 %v795
      %v1324 = vunpack.c.l.b16 %v796
      %v1325 = vunpack.c.l.b16 %v797
      %v1326 = vunpack.c.l.b16 %v798
      %v1327 = vunpack.c.l.b16 %v799
      %v1328 = vunpack.c.l.b16 %v800
      %v1329 = vunpack.c.l.b16 %v801
      %v1330 = vunpack.c.l.b16 %v802
      %v1331 = vunpack.c.l.b16 %v803
      %v1332 = vunpack.c.l.b16 %v804
      %v1333 = vunpack.c.l.b16 %v805
      %v1334 = vunpack.c.l.b16 %v806
      %v1335 = vunpack.c.l.b16 %v807
      %v1336 = vunpack.c.l.b16 %v808
      %v1337 = vunpack.c.l.b16 %v809
      %v1338 = vunpack.c.l.b16 %v810
      %v1339 = vunpack.c.l.b16 %v811
      %v1340 = vunpack.c.l.b16 %v812
      %v1341 = vunpack.c.l.b16 %v813
      %v1342 = vunpack.c.l.b16 %v814
      %v1343 = vunpack.c.l.b16 %v815
      %v1344 = vunpack.c.l.b16 %v816
      %v1345 = vunpack.c.l.b16 %v817
      %v1346 = vunpack.c.l.b16 %v818
      %v1347 = vunpack.c.l.b16 %v819
      %v1348 = vunpack.c.l.b16 %v820
      %v1349 = vunpack.c.l.b16 %v821
      %v1350 = vunpack.c.l.b16 %v822
      %v1351 = vunpack.c.l.b16 %v823
      %v1352 = vunpack.c.l.b16 %v824
      %v1353 = vunpack.c.l.b16 %v825
      %v1354 = vunpack.c.l.b16 %v826
      %v1355 = vunpack.c.l.b16 %v827
      %v1356 = vunpack.c.l.b16 %v828
      %v1357 = vunpack.c.l.b16 %v829
      %v1358 = vunpack.c.l.b16 %v830
      %v1359 = vunpack.c.l.b16 %v831
      %v1360 = vunpack.c.l.b16 %v832
      %v1361 = vunpack.c.l.b16 %v833
      %v1362 = vunpack.c.l.b16 %v834
      %v1363 = vunpack.c.l.b16 %v835
      %v1364 = vunpack.c.l.b16 %v836
      %v1365 = vunpack.c.l.b16 %v837
      %v1366 = vunpack.c.l.b16 %v838
      %v1367 = vunpack.c.l.b16 %v839
      %v1368 = vunpack.c.l.b16 %v840
      %v1369 = vunpack.c.l.b16 %v841
      %v1370 = vunpack.c.l.b16 %v842
      %v1371 = vunpack.c.l.b16 %v843
      %v1372 = vunpack.c.l.b16 %v844
      %v1373 = vunpack.c.l.b16 %v845
      %v1374 = vunpack.c.l.b16 %v846
      %v1375 = vunpack.c.l.b16 %v847
      %v1376 = vunpack.c.l.b16 %v848
      %v1377 = vunpack.c.l.b16 %v849
      %v1378 = vunpack.c.l.b16 %v850
      %v1379 = vunpack.c.l.b16 %v851
      %v1380 = vunpack.c.l.b16 %v852
      %v1381 = vunpack.c.l.b16 %v853
      %v1382 = vunpack.c.l.b16 %v854
      %v1383 = vunpack.c.l.b16 %v855
      %v1384 = vunpack.c.l.b16 %v856
      %v1385 = vunpack.c.l.b16 %v857
      %v1386 = vunpack.c.l.b16 %v858
      %v1387 = vunpack.c.l.b16 %v859
      %v1388 = vunpack.c.l.b16 %v860
      %v1389 = vunpack.c.l.b16 %v861
      %v1390 = vunpack.c.l.b16 %v862
      %v1391 = vunpack.c.l.b16 %v863
      %v1392 = vunpack.c.l.b16 %v864
      %v1393 = vunpack.c.l.b16 %v865
      %v1394 = vunpack.c.l.b16 %v866
      %v1395 = vunpack.c.l.b16 %v867
      %v1396 = vunpack.c.l.b16 %v868
      %v1397 = vunpack.c.l.b16 %v869
      %v1398 = vunpack.c.l.b16 %v870
      %v1399 = vunpack.c.l.b16 %v871
      %v1400 = vunpack.c.l.b16 %v872
      %v1401 = vunpack.c.l.b16 %v873
      %v1402 = vunpack.c.l.b16 %v874
      %v1403 = vunpack.c.l.b16 %v875
      %v1404 = vunpack.c.l.b16 %v876
      %v1405 = vunpack.c.l.b16 %v877
      %v1406 = vunpack.c.l.b16 %v878
      %v1407 = vunpack.c.l.b16 %v879
      %v1408 = vunpack.c.l.b16 %v880
      %v1409 = vunpack.c.l.b16 %v881
      %v1410 = vunpack.c.l.b16 %v882
      %v1411 = vunpack.c.l.b16 %v883
      %v1412 = vunpack.c.l.b16 %v884
      %v1413 = vunpack.c.l.b16 %v885
      %v1414 = vunpack.c.l.b16 %v886
      %v1415 = vunpack.c.l.b16 %v887
      %v1416 = vunpack.c.l.b16 %v888
      %v1417 = vunpack.c.l.b16 %v889
      %v1418 = vunpack.c.l.b16 %v890
      %v1419 = vunpack.c.l.b16 %v891
      %v1420 = vunpack.c.l.b16 %v892
      %v1421 = vunpack.c.l.b16 %v893
      %v1422 = vunpack.c.l.b16 %v894
      %v1423 = vunpack.c.l.b16 %v895
      %v1424 = vunpack.c.l.b16 %v896
      %v1425 = vunpack.c.l.b16 %v897
      %v1426 = vunpack.c.l.b16 %v898
      %v1427 = vunpack.c.l.b16 %v899
      %v1428 = vunpack.c.l.b16 %v900
      %v1429 = vunpack.c.l.b16 %v901
      %v1430 = vunpack.c.l.b16 %v902
      %v1431 = vunpack.c.l.b16 %v903
      %v1432 = vunpack.c.l.b16 %v904
      %v1433 = vunpack.c.l.b16 %v905
      %v1434 = vunpack.c.l.b16 %v906
      %v1435 = vunpack.c.l.b16 %v907
      %v1436 = vunpack.c.l.b16 %v908
      %v1437 = vunpack.c.l.b16 %v909
      %v1438 = vunpack.c.l.b16 %v910
      %v1439 = vunpack.c.l.b16 %v911
      %v1440 = vunpack.c.l.b16 %v912
      %v1441 = vunpack.c.l.b16 %v913
      %v1442 = vunpack.c.l.b16 %v914
      %v1443 = vunpack.c.l.b16 %v915
      %v1444 = vunpack.c.l.b16 %v916
      %v1445 = vunpack.c.l.b16 %v917
      %v1446 = vunpack.c.l.b16 %v918
      %v1447 = vunpack.c.l.b16 %v919
      %v1448 = vunpack.c.l.b16 %v920
      %v1449 = vunpack.c.l.b16 %v921
      %v1450 = vunpack.c.l.b16 %v922
      %v1451 = vunpack.c.l.b16 %v923
      %v1452 = vunpack.c.l.b16 %v924
      %v1453 = vunpack.c.l.b16 %v925
      %v1454 = vunpack.c.l.b16 %v926
      %v1455 = vunpack.c.l.b16 %v927
      %v1456 = vunpack.c.l.b16 %v928
      %v1457 = vunpack.c.l.b16 %v929
      %v1458 = vunpack.c.l.b16 %v930
      %v1459 = vunpack.c.l.b16 %v931
      %v1460 = vunpack.c.l.b16 %v932
      %v1461 = vunpack.c.l.b16 %v933
      %v1462 = vunpack.c.l.b16 %v934
      %v1463 = vunpack.c.l.b16 %v935
      %v1464 = vunpack.c.l.b16 %v936
      %v1465 = vunpack.c.l.b16 %v937
      %v1466 = vunpack.c.l.b16 %v938
      %v1467 = vunpack.c.l.b16 %v939
      %v1468 = vunpack.c.l.b16 %v940
      %v1469 = vunpack.c.l.b16 %v941
      %v1470 = vunpack.c.l.b16 %v942
      %v1471 = vunpack.c.l.b16 %v943
      %v1472 = vunpack.c.l.b16 %v944
      %v1473 = vunpack.c.l.b16 %v945
      %v1474 = vunpack.c.l.b16 %v946
      %v1475 = vunpack.c.l.b16 %v947
      %v1476 = vunpack.c.l.b16 %v948
      %v1477 = vunpack.c.l.b16 %v949
      %v1478 = vunpack.c.l.b16 %v950
      %v1479 = vunpack.c.l.b16 %v951
      %v1480 = vunpack.c.l.b16 %v952
      %v1481 = vunpack.c.l.b16 %v953
      %v1482 = vunpack.c.l.b16 %v954
      %v1483 = vunpack.c.l.b16 %v955
      %v1484 = vunpack.c.l.b16 %v956
      %v1485 = vunpack.c.l.b16 %v957
      %v1486 = vunpack.c.l.b16 %v958
      %v1487 = vunpack.c.l.b16 %v959
      %v1488 = vunpack.c.l.b16 %v960
      %v1489 = vunpack.c.l.b16 %v961
      %v1490 = vunpack.c.l.b16 %v962
      %v1491 = vunpack.c.l.b16 %v963
      %v1492 = vunpack.c.l.b16 %v964
      %v1493 = vunpack.c.l.b16 %v965
      %v1494 = vunpack.c.l.b16 %v966
      %v1495 = vunpack.c.l.b16 %v967
      %v1496 = vunpack.c.l.b16 %v968
      %v1497 = vunpack.c.l.b16 %v969
      %v1498 = vunpack.c.l.b16 %v970
      %v1499 = vunpack.c.l.b16 %v971
      %v1500 = vunpack.c.l.b16 %v972
      %v1501 = vunpack.c.l.b16 %v973
      %v1502 = vunpack.c.l.b16 %v974
      %v1503 = vunpack.c.l.b16 %v975
      %v1504 = vunpack.c.l.b16 %v976
      %v1505 = vunpack.c.l.b16 %v977
      %v1506 = vunpack.c.l.b16 %v978
      %v1507 = vunpack.c.l.b16 %v979
      %v1508 = vunpack.c.l.b16 %v980
      %v1509 = vunpack.c.l.b16 %v981
      %v1510 = vunpack.c.l.b16 %v982
      %v1511 = vunpack.c.l.b16 %v983
      %v1512 = vunpack.c.l.b16 %v984
      %v1513 = vunpack.c.l.b16 %v985
      %v1514 = vunpack.c.l.b16 %v986
      %v1515 = vunpack.c.l.b16 %v987
      %v1516 = vunpack.c.l.b16 %v988
      %v1517 = vunpack.c.l.b16 %v989
      %v1518 = vunpack.c.l.b16 %v990
      %v1519 = vunpack.c.l.b16 %v991
      %v1520 = vunpack.c.l.b16 %v992
      %v1521 = vunpack.c.l.b16 %v993
      %v1522 = vunpack.c.l.b16 %v994
      %v1523 = vunpack.c.l.b16 %v995
      %v1524 = vunpack.c.l.b16 %v996
      %v1525 = vunpack.c.l.b16 %v997
      %v1526 = vunpack.c.l.b16 %v998
      %v1527 = vunpack.c.l.b16 %v999
      %v1528 = vunpack.c.l.b16 %v1000
      %v1529 = vunpack.c.l.b16 %v1001
      %v1530 = vunpack.c.l.b16 %v1002
      %v1531 = vunpack.c.l.b16 %v1003
      %v1532 = vunpack.c.l.b16 %v1004
      %v1533 = vunpack.c.l.b16 %v1005
      %v1534 = vunpack.c.l.b16 %v1006
      %v1535 = vunpack.c.l.b16 %v1007
      %v1536 = vunpack.c.l.b16 %v1008
      %v1537 = vunpack.c.l.b16 %v1009
      %v1538 = vunpack.c.l.b16 %v1010
      %v1539 = vunpack.c.l.b16 %v1011
      %v1540 = vunpack.c.l.b16 %v1012
      %v1541 = vunpack.c.l.b16 %v1013
      %v1542 = vunpack.c.l.b16 %v1014
      %v1543 = vunpack.c.l.b16 %v1015
      %v1544 = vunpack.c.l.b16 %v1016
      %v1545 = vunpack.c.l.b16 %v1017
      %v1546 = vunpack.c.l.b16 %v1018
      %v1547 = vunpack.c.l.b16 %v1019
      %v1548 = vunpack.c.l.b16 %v1020
      %v1549 = vunpack.c.l.b16 %v1021
      %v1550 = vunpack.c.l.b16 %v1022
      %v1551 = vunpack.c.l.b16 %v1023
      %v1552 = vunpack.c.l.b16 %v1024
      %v1553 = vunpack.c.l.b16 %v1025
      %v1554 = vunpack.c.l.b16 %v1026
      %v1555 = vunpack.c.l.b16 %v1027
      %v1556 = vunpack.c.l.b16 %v1028
      %v1557 = vunpack.c.l.b16 %v1029
      %v1558 = vunpack.c.l.b16 %v1030
      %v1559 = vunpack.c.l.b16 %v1031
      %v1560 = vunpack.c.l.b16 %v1032
      %v1561 = vunpack.c.l.b16 %v1033
      %v1562 = vunpack.c.l.b16 %v1034
      %v1563 = vunpack.c.l.b16 %v1035
      %v1564 = vpack.c.b16 %v1309, %v1308
      %v1565 = vpack.c.b16 %v1311, %v1310
      %v1566 = vpack.c.b16 %v1313, %v1312
      %v1567 = vpack.c.b16 %v1315, %v1314
      %v1568 = vpack.c.b16 %v1317, %v1316
      %v1569 = vpack.c.b16 %v1319, %v1318
      %v1570 = vpack.c.b16 %v1321, %v1320
      %v1571 = vpack.c.b16 %v1323, %v1322
      %v1572 = vpack.c.b16 %v1325, %v1324
      %v1573 = vpack.c.b16 %v1327, %v1326
      %v1574 = vpack.c.b16 %v1329, %v1328
      %v1575 = vpack.c.b16 %v1331, %v1330
      %v1576 = vpack.c.b16 %v1333, %v1332
      %v1577 = vpack.c.b16 %v1335, %v1334
      %v1578 = vpack.c.b16 %v1337, %v1336
      %v1579 = vpack.c.b16 %v1339, %v1338
      %v1580 = vpack.c.b16 %v1341, %v1340
      %v1581 = vpack.c.b16 %v1343, %v1342
      %v1582 = vpack.c.b16 %v1345, %v1344
      %v1583 = vpack.c.b16 %v1347, %v1346
      %v1584 = vpack.c.b16 %v1349, %v1348
      %v1585 = vpack.c.b16 %v1351, %v1350
      %v1586 = vpack.c.b16 %v1353, %v1352
      %v1587 = vpack.c.b16 %v1355, %v1354
      %v1588 = vpack.c.b16 %v1357, %v1356
      %v1589 = vpack.c.b16 %v1359, %v1358
      %v1590 = vpack.c.b16 %v1361, %v1360
      %v1591 = vpack.c.b16 %v1363, %v1362
      %v1592 = vpack.c.b16 %v1365, %v1364
      %v1593 = vpack.c.b16 %v1367, %v1366
      %v1594 = vpack.c.b16 %v1369, %v1368
      %v1595 = vpack.c.b16 %v1371, %v1370
      %v1596 = vpack.c.b16 %v1373, %v1372
      %v1597 = vpack.c.b16 %v1375, %v1374
      %v1598 = vpack.c.b16 %v1377, %v1376
      %v1599 = vpack.c.b16 %v1379, %v1378
      %v1600 = vpack.c.b16 %v1381, %v1380
      %v1601 = vpack.c.b16 %v1383, %v1382
      %v1602 = vpack.c.b16 %v1385, %v1384
      %v1603 = vpack.c.b16 %v1387, %v1386
      %v1604 = vpack.c.b16 %v1389, %v1388
      %v1605 = vpack.c.b16 %v1391, %v1390
      %v1606 = vpack.c.b16 %v1393, %v1392
      %v1607 = vpack.c.b16 %v1395, %v1394
      %v1608 = vpack.c.b16 %v1397, %v1396
      %v1609 = vpack.c.b16 %v1399, %v1398
      %v1610 = vpack.c.b16 %v1401, %v1400
      %v1611 = vpack.c.b16 %v1403, %v1402
      %v1612 = vpack.c.b16 %v1405, %v1404
      %v1613 = vpack.c.b16 %v1407, %v1406
      %v1614 = vpack.c.b16 %v1409, %v1408
      %v1615 = vpack.c.b16 %v1411, %v1410
      %v1616 = vpack.c.b16 %v1413, %v1412
      %v1617 = vpack.c.b16 %v1415, %v1414
      %v1618 = vpack.c.b16 %v1417, %v1416
      %v1619 = vpack.c.b16 %v1419, %v1418
      %v1620 = vpack.c.b16 %v1421, %v1420
      %v1621 = vpack.c.b16 %v1423, %v1422
      %v1622 = vpack.c.b16 %v1425, %v1424
      %v1623 = vpack.c.b16 %v1427, %v1426
      %v1624 = vpack.c.b16 %v1429, %v1428
      %v1625 = vpack.c.b16 %v1431, %v1430
      %v1626 = vpack.c.b16 %v1433, %v1432
      %v1627 = vpack.c.b16 %v1435, %v1434
      %v1628 = vpack.c.b16 %v1437, %v1436
      %v1629 = vpack.c.b16 %v1439, %v1438
      %v1630 = vpack.c.b16 %v1441, %v1440
      %v1631 = vpack.c.b16 %v1443, %v1442
      %v1632 = vpack.c.b16 %v1445, %v1444
      %v1633 = vpack.c.b16 %v1447, %v1446
      %v1634 = vpack.c.b16 %v1449, %v1448
      %v1635 = vpack.c.b16 %v1451, %v1450
      %v1636 = vpack.c.b16 %v1453, %v1452
      %v1637 = vpack.c.b16 %v1455, %v1454
      %v1638 = vpack.c.b16 %v1457, %v1456
      %v1639 = vpack.c.b16 %v1459, %v1458
      %v1640 = vpack.c.b16 %v1461, %v1460
      %v1641 = vpack.c.b16 %v1463, %v1462
      %v1642 = vpack.c.b16 %v1465, %v1464
      %v1643 = vpack.c.b16 %v1467, %v1466
      %v1644 = vpack.c.b16 %v1469, %v1468
      %v1645 = vpack.c.b16 %v1471, %v1470
      %v1646 = vpack.c.b16 %v1473, %v1472
      %v1647 = vpack.c.b16 %v1475, %v1474
      %v1648 = vpack.c.b16 %v1477, %v1476
      %v1649 = vpack.c.b16 %v1479, %v1478
      %v1650 = vpack.c.b16 %v1481, %v1480
      %v1651 = vpack.c.b16 %v1483, %v1482
      %v1652 = vpack.c.b16 %v1485, %v1484
      %v1653 = vpack.c.b16 %v1487, %v1486
      %v1654 = vpack.c.b16 %v1489, %v1488
      %v1655 = vpack.c.b16 %v1491, %v1490
      %v1656 = vpack.c.b16 %v1493, %v1492
      %v1657 = vpack.c.b16 %v1495, %v1494
      %v1658 = vpack.c.b16 %v1497, %v1496
      %v1659 = vpack.c.b16 %v1499, %v1498
      %v1660 = vpack.c.b16 %v1501, %v1500
      %v1661 = vpack.c.b16 %v1503, %v1502
      %v1662 = vpack.c.b16 %v1505, %v1504
      %v1663 = vpack.c.b16 %v1507, %v1506
      %v1664 = vpack.c.b16 %v1509, %v1508
      %v1665 = vpack.c.b16 %v1511, %v1510
      %v1666 = vpack.c.b16 %v1513, %v1512
      %v1667 = vpack.c.b16 %v1515, %v1514
      %v1668 = vpack.c.b16 %v1517, %v1516
      %v1669 = vpack.c.b16 %v1519, %v1518
      %v1670 = vpack.c.b16 %v1521, %v1520
      %v1671 = vpack.c.b16 %v1523, %v1522
      %v1672 = vpack.c.b16 %v1525, %v1524
      %v1673 = vpack.c.b16 %v1527, %v1526
      %v1674 = vpack.c.b16 %v1529, %v1528
      %v1675 = vpack.c.b16 %v1531, %v1530
      %v1676 = vpack.c.b16 %v1533, %v1532
      %v1677 = vpack.c.b16 %v1535, %v1534
      %v1678 = vpack.c.b16 %v1537, %v1536
      %v1679 = vpack.c.b16 %v1539, %v1538
      %v1680 = vpack.c.b16 %v1541, %v1540
      %v1681 = vpack.c.b16 %v1543, %v1542
      %v1682 = vpack.c.b16 %v1545, %v1544
      %v1683 = vpack.c.b16 %v1547, %v1546
      %v1684 = vpack.c.b16 %v1549, %v1548
      %v1685 = vpack.c.b16 %v1551, %v1550
      %v1686 = vpack.c.b16 %v1553, %v1552
      %v1687 = vpack.c.b16 %v1555, %v1554
      %v1688 = vpack.c.b16 %v1557, %v1556
      %v1689 = vpack.c.b16 %v1559, %v1558
      %v1690 = vpack.c.b16 %v1561, %v1560
      %v1691 = vpack.c.b16 %v1563, %v1562
      %v1836 = vunpack.c.l.b16 %v1036
      %v1837 = vunpack.c.l.b16 %v1037
      %v1838 = vunpack.c.l.b16 %v1038
      %v1839 = vunpack.c.l.b16 %v1039
      %v1840 = vunpack.c.l.b16 %v1040
      %v1841 = vunpack.c.l.b16 %v1041
      %v1842 = vunpack.c.l.b16 %v1042
      %v1843 = vunpack.c.l.b16 %v1043
      %v1844 = vunpack.c.l.b16 %v1044
      %v1845 = vunpack.c.l.b16 %v1045
      %v1846 = vunpack.c.l.b16 %v1046
      %v1847 = vunpack.c.l.b16 %v1047
      %v1848 = vunpack.c.l.b16 %v1048
      %v1849 = vunpack.c.l.b16 %v1049
      %v1850 = vunpack.c.l.b16 %v1050
      %v1851 = vunpack.c.l.b16 %v1051
      %v1852 = vpack.c.b16 %v1837, %v1836
      %v1853 = vpack.c.b16 %v1839, %v1838
      %v1854 = vpack.c.b16 %v1841, %v1840
      %v1855 = vpack.c.b16 %v1843, %v1842
      %v1856 = vpack.c.b16 %v1845, %v1844
      %v1857 = vpack.c.b16 %v1847, %v1846
      %v1858 = vpack.c.b16 %v1849, %v1848
      %v1859 = vpack.c.b16 %v1851, %v1850
      %1868 = vmatprep.subr.bf16.mxu0 0
      %1869 = vmatpush1.bf16.msra.mxu0 %v1859
      %1870 = vmatprep.subr.bf16.mxu0 0
      %1871 = vmatpush1.bf16.msra.mxu0 %v1858
      %1872 = vmatprep.subr.bf16.mxu0 0
      %1873 = vmatpush1.bf16.msra.mxu0 %v1857
      %1874 = vmatprep.subr.bf16.mxu0 0
      %1875 = vmatpush1.bf16.msra.mxu0 %v1856
      %1876 = vmatprep.subr.bf16.mxu0 0
      %1877 = vmatpush1.bf16.msra.mxu0 %v1855
      %1878 = vmatprep.subr.bf16.mxu0 0
      %1879 = vmatpush1.bf16.msra.mxu0 %v1854
      %1880 = vmatprep.subr.bf16.mxu0 0
      %1881 = vmatpush1.bf16.msra.mxu0 %v1853
      %1882 = vmatprep.subr.bf16.mxu0 0
      %1883 = vmatpush1.bf16.msra.mxu0 %v1852
      %1884 = vmatprep.subr.bf16.mxu0 0
      %1885 = vmatpush2.bf16.msra.mxu0 0
      %1886 = vmatprep.subr.bf16.mxu0 0
      %1887 = vmatpush2.bf16.msra.mxu0 0
      %1888 = vmatprep.subr.bf16.mxu0 0
      %1889 = vmatpush2.bf16.msra.mxu0 0
      %1890 = vmatprep.subr.bf16.mxu0 0
      %1891 = vmatpush2.bf16.msra.mxu0 0
      %1892 = vmatprep.subr.bf16.mxu0 0
      %1893 = vmatpush2.bf16.msra.mxu0 0
      %1894 = vmatprep.subr.bf16.mxu0 0
      %1895 = vmatpush2.bf16.msra.mxu0 0
      %1896 = vmatprep.subr.bf16.mxu0 0
      %1897 = vmatpush2.bf16.msra.mxu0 0
      %1898 = vmatprep.subr.bf16.mxu0 0
      %1899 = vmatpush2.bf16.msra.mxu0 0
      %1900 = vmatprep.mubr.bf16.mxu0 0
      %1901 = vmatmul.mubr.bf16.gmra.mxu0 %v1564
      %v1902 = vpop.f32.mrf.mxu0
      %v1903 = vadd.f32 0.0, %v1902
      %v1904 = vpop.f32.mrf.mxu0
      %v1905 = vpop.f32.mrf.mxu0
      %v1906 = vadd.f32 0.0, %v1905
      %v1907 = vpop.f32.mrf.mxu0
      %1908 = vmatprep.mubr.bf16.mxu0 0
      %1909 = vmatmul.mubr.bf16.gmra.mxu0 %v1565
      %v1910 = vpop.f32.mrf.mxu0
      %v1911 = vadd.f32 0.0, %v1910
      %v1912 = vpop.f32.mrf.mxu0
      %v1913 = vpop.f32.mrf.mxu0
      %v1914 = vadd.f32 0.0, %v1913
      %v1915 = vpop.f32.mrf.mxu0
      %1916 = vmatprep.mubr.bf16.mxu0 0
      %1917 = vmatmul.mubr.bf16.gmra.mxu0 %v1566
      %v1918 = vpop.f32.mrf.mxu0
      %v1919 = vadd.f32 0.0, %v1918
      %v1920 = vpop.f32.mrf.mxu0
      %v1921 = vpop.f32.mrf.mxu0
      %v1922 = vadd.f32 0.0, %v1921
      %v1923 = vpop.f32.mrf.mxu0
      %1924 = vmatprep.mubr.bf16.mxu0 0
      %1925 = vmatmul.mubr.bf16.gmra.mxu0 %v1567
      %v1926 = vpop.f32.mrf.mxu0
      %v1927 = vadd.f32 0.0, %v1926
      %v1928 = vpop.f32.mrf.mxu0
      %v1929 = vpop.f32.mrf.mxu0
      %v1930 = vadd.f32 0.0, %v1929
      %v1931 = vpop.f32.mrf.mxu0
      %1932 = vmatprep.mubr.bf16.mxu0 0
      %1933 = vmatmul.mubr.bf16.gmra.mxu0 %v1568
      %v1934 = vpop.f32.mrf.mxu0
      %v1935 = vadd.f32 0.0, %v1934
      %v1936 = vpop.f32.mrf.mxu0
      %v1937 = vpop.f32.mrf.mxu0
      %v1938 = vadd.f32 0.0, %v1937
      %v1939 = vpop.f32.mrf.mxu0
      %1940 = vmatprep.mubr.bf16.mxu0 0
      %1941 = vmatmul.mubr.bf16.gmra.mxu0 %v1569
      %v1942 = vpop.f32.mrf.mxu0
      %v1943 = vadd.f32 0.0, %v1942
      %v1944 = vpop.f32.mrf.mxu0
      %v1945 = vpop.f32.mrf.mxu0
      %v1946 = vadd.f32 0.0, %v1945
      %v1947 = vpop.f32.mrf.mxu0
      %1948 = vmatprep.mubr.bf16.mxu0 0
      %1949 = vmatmul.mubr.bf16.gmra.mxu0 %v1570
      %v1950 = vpop.f32.mrf.mxu0
      %v1951 = vadd.f32 0.0, %v1950
      %v1952 = vpop.f32.mrf.mxu0
      %v1953 = vpop.f32.mrf.mxu0
      %v1954 = vadd.f32 0.0, %v1953
      %v1955 = vpop.f32.mrf.mxu0
      %1956 = vmatprep.mubr.bf16.mxu0 0
      %1957 = vmatmul.mubr.bf16.gmra.mxu0 %v1571
      %v1958 = vpop.f32.mrf.mxu0
      %v1959 = vadd.f32 0.0, %v1958
      %v1960 = vpop.f32.mrf.mxu0
      %v1961 = vpop.f32.mrf.mxu0
      %v1962 = vadd.f32 0.0, %v1961
      %v1963 = vpop.f32.mrf.mxu0
      %1964 = vmatprep.mubr.bf16.mxu0 0
      %1965 = vmatmul.mubr.bf16.gmra.mxu0 %v1572
      %v1966 = vpop.f32.mrf.mxu0
      %v1967 = vadd.f32 0.0, %v1966
      %v1968 = vpop.f32.mrf.mxu0
      %v1969 = vpop.f32.mrf.mxu0
      %v1970 = vadd.f32 0.0, %v1969
      %v1971 = vpop.f32.mrf.mxu0
      %1972 = vmatprep.mubr.bf16.mxu0 0
      %1973 = vmatmul.mubr.bf16.gmra.mxu0 %v1573
      %v1974 = vpop.f32.mrf.mxu0
      %v1975 = vadd.f32 0.0, %v1974
      %v1976 = vpop.f32.mrf.mxu0
      %v1977 = vpop.f32.mrf.mxu0
      %v1978 = vadd.f32 0.0, %v1977
      %v1979 = vpop.f32.mrf.mxu0
      %1980 = vmatprep.mubr.bf16.mxu0 0
      %1981 = vmatmul.mubr.bf16.gmra.mxu0 %v1574
      %v1982 = vpop.f32.mrf.mxu0
      %v1983 = vadd.f32 0.0, %v1982
      %v1984 = vpop.f32.mrf.mxu0
      %v1985 = vpop.f32.mrf.mxu0
      %v1986 = vadd.f32 0.0, %v1985
      %v1987 = vpop.f32.mrf.mxu0
      %1988 = vmatprep.mubr.bf16.mxu0 0
      %1989 = vmatmul.mubr.bf16.gmra.mxu0 %v1575
      %v1990 = vpop.f32.mrf.mxu0
      %v1991 = vadd.f32 0.0, %v1990
      %v1992 = vpop.f32.mrf.mxu0
      %v1993 = vpop.f32.mrf.mxu0
      %v1994 = vadd.f32 0.0, %v1993
      %v1995 = vpop.f32.mrf.mxu0
      %1996 = vmatprep.mubr.bf16.mxu0 0
      %1997 = vmatmul.mubr.bf16.gmra.mxu0 %v1576
      %v1998 = vpop.f32.mrf.mxu0
      %v1999 = vadd.f32 0.0, %v1998
      %v2000 = vpop.f32.mrf.mxu0
      %v2001 = vpop.f32.mrf.mxu0
      %v2002 = vadd.f32 0.0, %v2001
      %v2003 = vpop.f32.mrf.mxu0
      %2004 = vmatprep.mubr.bf16.mxu0 0
      %2005 = vmatmul.mubr.bf16.gmra.mxu0 %v1577
      %v2006 = vpop.f32.mrf.mxu0
      %v2007 = vadd.f32 0.0, %v2006
      %v2008 = vpop.f32.mrf.mxu0
      %v2009 = vpop.f32.mrf.mxu0
      %v2010 = vadd.f32 0.0, %v2009
      %v2011 = vpop.f32.mrf.mxu0
      %2012 = vmatprep.mubr.bf16.mxu0 0
      %2013 = vmatmul.mubr.bf16.gmra.mxu0 %v1578
      %v2014 = vpop.f32.mrf.mxu0
      %v2015 = vadd.f32 0.0, %v2014
      %v2016 = vpop.f32.mrf.mxu0
      %v2017 = vpop.f32.mrf.mxu0
      %v2018 = vadd.f32 0.0, %v2017
      %v2019 = vpop.f32.mrf.mxu0
      %2020 = vmatprep.mubr.bf16.mxu0 0
      %2021 = vmatmul.mubr.bf16.gmra.mxu0 %v1579
      %v2022 = vpop.f32.mrf.mxu0
      %v2023 = vadd.f32 0.0, %v2022
      %v2024 = vpop.f32.mrf.mxu0
      %v2025 = vpop.f32.mrf.mxu0
      %v2026 = vadd.f32 0.0, %v2025
      %v2027 = vpop.f32.mrf.mxu0
      %2028 = vmatprep.mubr.bf16.mxu0 0
      %2029 = vmatmul.mubr.bf16.gmra.mxu0 %v1580
      %v2030 = vpop.f32.mrf.mxu0
      %v2031 = vadd.f32 0.0, %v2030
      %v2032 = vpop.f32.mrf.mxu0
      %v2033 = vpop.f32.mrf.mxu0
      %v2034 = vadd.f32 0.0, %v2033
      %v2035 = vpop.f32.mrf.mxu0
      %2036 = vmatprep.mubr.bf16.mxu0 0
      %2037 = vmatmul.mubr.bf16.gmra.mxu0 %v1581
      %v2038 = vpop.f32.mrf.mxu0
      %v2039 = vadd.f32 0.0, %v2038
      %v2040 = vpop.f32.mrf.mxu0
      %v2041 = vpop.f32.mrf.mxu0
      %v2042 = vadd.f32 0.0, %v2041
      %v2043 = vpop.f32.mrf.mxu0
      %2044 = vmatprep.mubr.bf16.mxu0 0
      %2045 = vmatmul.mubr.bf16.gmra.mxu0 %v1582
      %v2046 = vpop.f32.mrf.mxu0
      %v2047 = vadd.f32 0.0, %v2046
      %v2048 = vpop.f32.mrf.mxu0
      %v2049 = vpop.f32.mrf.mxu0
      %v2050 = vadd.f32 0.0, %v2049
      %v2051 = vpop.f32.mrf.mxu0
      %2052 = vmatprep.mubr.bf16.mxu0 0
      %2053 = vmatmul.mubr.bf16.gmra.mxu0 %v1583
      %v2054 = vpop.f32.mrf.mxu0
      %v2055 = vadd.f32 0.0, %v2054
      %v2056 = vpop.f32.mrf.mxu0
      %v2057 = vpop.f32.mrf.mxu0
      %v2058 = vadd.f32 0.0, %v2057
      %v2059 = vpop.f32.mrf.mxu0
      %2060 = vmatprep.mubr.bf16.mxu0 0
      %2061 = vmatmul.mubr.bf16.gmra.mxu0 %v1584
      %v2062 = vpop.f32.mrf.mxu0
      %v2063 = vadd.f32 0.0, %v2062
      %v2064 = vpop.f32.mrf.mxu0
      %v2065 = vpop.f32.mrf.mxu0
      %v2066 = vadd.f32 0.0, %v2065
      %v2067 = vpop.f32.mrf.mxu0
      %2068 = vmatprep.mubr.bf16.mxu0 0
      %2069 = vmatmul.mubr.bf16.gmra.mxu0 %v1585
      %v2070 = vpop.f32.mrf.mxu0
      %v2071 = vadd.f32 0.0, %v2070
      %v2072 = vpop.f32.mrf.mxu0
      %v2073 = vpop.f32.mrf.mxu0
      %v2074 = vadd.f32 0.0, %v2073
      %v2075 = vpop.f32.mrf.mxu0
      %2076 = vmatprep.mubr.bf16.mxu0 0
      %2077 = vmatmul.mubr.bf16.gmra.mxu0 %v1586
      %v2078 = vpop.f32.mrf.mxu0
      %v2079 = vadd.f32 0.0, %v2078
      %v2080 = vpop.f32.mrf.mxu0
      %v2081 = vpop.f32.mrf.mxu0
      %v2082 = vadd.f32 0.0, %v2081
      %v2083 = vpop.f32.mrf.mxu0
      %2084 = vmatprep.mubr.bf16.mxu0 0
      %2085 = vmatmul.mubr.bf16.gmra.mxu0 %v1587
      %v2086 = vpop.f32.mrf.mxu0
      %v2087 = vadd.f32 0.0, %v2086
      %v2088 = vpop.f32.mrf.mxu0
      %v2089 = vpop.f32.mrf.mxu0
      %v2090 = vadd.f32 0.0, %v2089
      %v2091 = vpop.f32.mrf.mxu0
      %2092 = vmatprep.mubr.bf16.mxu0 0
      %2093 = vmatmul.mubr.bf16.gmra.mxu0 %v1588
      %v2094 = vpop.f32.mrf.mxu0
      %v2095 = vadd.f32 0.0, %v2094
      %v2096 = vpop.f32.mrf.mxu0
      %v2097 = vpop.f32.mrf.mxu0
      %v2098 = vadd.f32 0.0, %v2097
      %v2099 = vpop.f32.mrf.mxu0
      %2100 = vmatprep.mubr.bf16.mxu0 0
      %2101 = vmatmul.mubr.bf16.gmra.mxu0 %v1589
      %v2102 = vpop.f32.mrf.mxu0
      %v2103 = vadd.f32 0.0, %v2102
      %v2104 = vpop.f32.mrf.mxu0
      %v2105 = vpop.f32.mrf.mxu0
      %v2106 = vadd.f32 0.0, %v2105
      %v2107 = vpop.f32.mrf.mxu0
      %2108 = vmatprep.mubr.bf16.mxu0 0
      %2109 = vmatmul.mubr.bf16.gmra.mxu0 %v1590
      %v2110 = vpop.f32.mrf.mxu0
      %v2111 = vadd.f32 0.0, %v2110
      %v2112 = vpop.f32.mrf.mxu0
      %v2113 = vpop.f32.mrf.mxu0
      %v2114 = vadd.f32 0.0, %v2113
      %v2115 = vpop.f32.mrf.mxu0
      %2116 = vmatprep.mubr.bf16.mxu0 0
      %2117 = vmatmul.mubr.bf16.gmra.mxu0 %v1591
      %v2118 = vpop.f32.mrf.mxu0
      %v2119 = vadd.f32 0.0, %v2118
      %v2120 = vpop.f32.mrf.mxu0
      %v2121 = vpop.f32.mrf.mxu0
      %v2122 = vadd.f32 0.0, %v2121
      %v2123 = vpop.f32.mrf.mxu0
      %2124 = vmatprep.mubr.bf16.mxu0 0
      %2125 = vmatmul.mubr.bf16.gmra.mxu0 %v1592
      %v2126 = vpop.f32.mrf.mxu0
      %v2127 = vadd.f32 0.0, %v2126
      %v2128 = vpop.f32.mrf.mxu0
      %v2129 = vpop.f32.mrf.mxu0
      %v2130 = vadd.f32 0.0, %v2129
      %v2131 = vpop.f32.mrf.mxu0
      %2132 = vmatprep.mubr.bf16.mxu0 0
      %2133 = vmatmul.mubr.bf16.gmra.mxu0 %v1593
      %v2134 = vpop.f32.mrf.mxu0
      %v2135 = vadd.f32 0.0, %v2134
      %v2136 = vpop.f32.mrf.mxu0
      %v2137 = vpop.f32.mrf.mxu0
      %v2138 = vadd.f32 0.0, %v2137
      %v2139 = vpop.f32.mrf.mxu0
      %2140 = vmatprep.mubr.bf16.mxu0 0
      %2141 = vmatmul.mubr.bf16.gmra.mxu0 %v1594
      %v2142 = vpop.f32.mrf.mxu0
      %v2143 = vadd.f32 0.0, %v2142
      %v2144 = vpop.f32.mrf.mxu0
      %v2145 = vpop.f32.mrf.mxu0
      %v2146 = vadd.f32 0.0, %v2145
      %v2147 = vpop.f32.mrf.mxu0
      %2148 = vmatprep.mubr.bf16.mxu0 0
      %2149 = vmatmul.mubr.bf16.gmra.mxu0 %v1595
      %v2150 = vpop.f32.mrf.mxu0
      %v2151 = vadd.f32 0.0, %v2150
      %v2152 = vpop.f32.mrf.mxu0
      %v2153 = vpop.f32.mrf.mxu0
      %v2154 = vadd.f32 0.0, %v2153
      %v2155 = vpop.f32.mrf.mxu0
      %2156 = vmatprep.mubr.bf16.mxu0 0
      %2157 = vmatmul.mubr.bf16.gmra.mxu0 %v1596
      %v2158 = vpop.f32.mrf.mxu0
      %v2159 = vadd.f32 0.0, %v2158
      %v2160 = vpop.f32.mrf.mxu0
      %v2161 = vpop.f32.mrf.mxu0
      %v2162 = vadd.f32 0.0, %v2161
      %v2163 = vpop.f32.mrf.mxu0
      %2164 = vmatprep.mubr.bf16.mxu0 0
      %2165 = vmatmul.mubr.bf16.gmra.mxu0 %v1597
      %v2166 = vpop.f32.mrf.mxu0
      %v2167 = vadd.f32 0.0, %v2166
      %v2168 = vpop.f32.mrf.mxu0
      %v2169 = vpop.f32.mrf.mxu0
      %v2170 = vadd.f32 0.0, %v2169
      %v2171 = vpop.f32.mrf.mxu0
      %2172 = vmatprep.mubr.bf16.mxu0 0
      %2173 = vmatmul.mubr.bf16.gmra.mxu0 %v1598
      %v2174 = vpop.f32.mrf.mxu0
      %v2175 = vadd.f32 0.0, %v2174
      %v2176 = vpop.f32.mrf.mxu0
      %v2177 = vpop.f32.mrf.mxu0
      %v2178 = vadd.f32 0.0, %v2177
      %v2179 = vpop.f32.mrf.mxu0
      %2180 = vmatprep.mubr.bf16.mxu0 0
      %2181 = vmatmul.mubr.bf16.gmra.mxu0 %v1599
      %v2182 = vpop.f32.mrf.mxu0
      %v2183 = vadd.f32 0.0, %v2182
      %v2184 = vpop.f32.mrf.mxu0
      %v2185 = vpop.f32.mrf.mxu0
      %v2186 = vadd.f32 0.0, %v2185
      %v2187 = vpop.f32.mrf.mxu0
      %2188 = vmatprep.mubr.bf16.mxu0 0
      %2189 = vmatmul.mubr.bf16.gmra.mxu0 %v1600
      %v2190 = vpop.f32.mrf.mxu0
      %v2191 = vadd.f32 0.0, %v2190
      %v2192 = vpop.f32.mrf.mxu0
      %v2193 = vpop.f32.mrf.mxu0
      %v2194 = vadd.f32 0.0, %v2193
      %v2195 = vpop.f32.mrf.mxu0
      %2196 = vmatprep.mubr.bf16.mxu0 0
      %2197 = vmatmul.mubr.bf16.gmra.mxu0 %v1601
      %v2198 = vpop.f32.mrf.mxu0
      %v2199 = vadd.f32 0.0, %v2198
      %v2200 = vpop.f32.mrf.mxu0
      %v2201 = vpop.f32.mrf.mxu0
      %v2202 = vadd.f32 0.0, %v2201
      %v2203 = vpop.f32.mrf.mxu0
      %2204 = vmatprep.mubr.bf16.mxu0 0
      %2205 = vmatmul.mubr.bf16.gmra.mxu0 %v1602
      %v2206 = vpop.f32.mrf.mxu0
      %v2207 = vadd.f32 0.0, %v2206
      %v2208 = vpop.f32.mrf.mxu0
      %v2209 = vpop.f32.mrf.mxu0
      %v2210 = vadd.f32 0.0, %v2209
      %v2211 = vpop.f32.mrf.mxu0
      %2212 = vmatprep.mubr.bf16.mxu0 0
      %2213 = vmatmul.mubr.bf16.gmra.mxu0 %v1603
      %v2214 = vpop.f32.mrf.mxu0
      %v2215 = vadd.f32 0.0, %v2214
      %v2216 = vpop.f32.mrf.mxu0
      %v2217 = vpop.f32.mrf.mxu0
      %v2218 = vadd.f32 0.0, %v2217
      %v2219 = vpop.f32.mrf.mxu0
      %2220 = vmatprep.mubr.bf16.mxu0 0
      %2221 = vmatmul.mubr.bf16.gmra.mxu0 %v1604
      %v2222 = vpop.f32.mrf.mxu0
      %v2223 = vadd.f32 0.0, %v2222
      %v2224 = vpop.f32.mrf.mxu0
      %v2225 = vpop.f32.mrf.mxu0
      %v2226 = vadd.f32 0.0, %v2225
      %v2227 = vpop.f32.mrf.mxu0
      %2228 = vmatprep.mubr.bf16.mxu0 0
      %2229 = vmatmul.mubr.bf16.gmra.mxu0 %v1605
      %v2230 = vpop.f32.mrf.mxu0
      %v2231 = vadd.f32 0.0, %v2230
      %v2232 = vpop.f32.mrf.mxu0
      %v2233 = vpop.f32.mrf.mxu0
      %v2234 = vadd.f32 0.0, %v2233
      %v2235 = vpop.f32.mrf.mxu0
      %2236 = vmatprep.mubr.bf16.mxu0 0
      %2237 = vmatmul.mubr.bf16.gmra.mxu0 %v1606
      %v2238 = vpop.f32.mrf.mxu0
      %v2239 = vadd.f32 0.0, %v2238
      %v2240 = vpop.f32.mrf.mxu0
      %v2241 = vpop.f32.mrf.mxu0
      %v2242 = vadd.f32 0.0, %v2241
      %v2243 = vpop.f32.mrf.mxu0
      %2244 = vmatprep.mubr.bf16.mxu0 0
      %2245 = vmatmul.mubr.bf16.gmra.mxu0 %v1607
      %v2246 = vpop.f32.mrf.mxu0
      %v2247 = vadd.f32 0.0, %v2246
      %v2248 = vpop.f32.mrf.mxu0
      %v2249 = vpop.f32.mrf.mxu0
      %v2250 = vadd.f32 0.0, %v2249
      %v2251 = vpop.f32.mrf.mxu0
      %2252 = vmatprep.mubr.bf16.mxu0 0
      %2253 = vmatmul.mubr.bf16.gmra.mxu0 %v1608
      %v2254 = vpop.f32.mrf.mxu0
      %v2255 = vadd.f32 0.0, %v2254
      %v2256 = vpop.f32.mrf.mxu0
      %v2257 = vpop.f32.mrf.mxu0
      %v2258 = vadd.f32 0.0, %v2257
      %v2259 = vpop.f32.mrf.mxu0
      %2260 = vmatprep.mubr.bf16.mxu0 0
      %2261 = vmatmul.mubr.bf16.gmra.mxu0 %v1609
      %v2262 = vpop.f32.mrf.mxu0
      %v2263 = vadd.f32 0.0, %v2262
      %v2264 = vpop.f32.mrf.mxu0
      %v2265 = vpop.f32.mrf.mxu0
      %v2266 = vadd.f32 0.0, %v2265
      %v2267 = vpop.f32.mrf.mxu0
      %2268 = vmatprep.mubr.bf16.mxu0 0
      %2269 = vmatmul.mubr.bf16.gmra.mxu0 %v1610
      %v2270 = vpop.f32.mrf.mxu0
      %v2271 = vadd.f32 0.0, %v2270
      %v2272 = vpop.f32.mrf.mxu0
      %v2273 = vpop.f32.mrf.mxu0
      %v2274 = vadd.f32 0.0, %v2273
      %v2275 = vpop.f32.mrf.mxu0
      %2276 = vmatprep.mubr.bf16.mxu0 0
      %2277 = vmatmul.mubr.bf16.gmra.mxu0 %v1611
      %v2278 = vpop.f32.mrf.mxu0
      %v2279 = vadd.f32 0.0, %v2278
      %v2280 = vpop.f32.mrf.mxu0
      %v2281 = vpop.f32.mrf.mxu0
      %v2282 = vadd.f32 0.0, %v2281
      %v2283 = vpop.f32.mrf.mxu0
      %2284 = vmatprep.mubr.bf16.mxu0 0
      %2285 = vmatmul.mubr.bf16.gmra.mxu0 %v1612
      %v2286 = vpop.f32.mrf.mxu0
      %v2287 = vadd.f32 0.0, %v2286
      %v2288 = vpop.f32.mrf.mxu0
      %v2289 = vpop.f32.mrf.mxu0
      %v2290 = vadd.f32 0.0, %v2289
      %v2291 = vpop.f32.mrf.mxu0
      %2292 = vmatprep.mubr.bf16.mxu0 0
      %2293 = vmatmul.mubr.bf16.gmra.mxu0 %v1613
      %v2294 = vpop.f32.mrf.mxu0
      %v2295 = vadd.f32 0.0, %v2294
      %v2296 = vpop.f32.mrf.mxu0
      %v2297 = vpop.f32.mrf.mxu0
      %v2298 = vadd.f32 0.0, %v2297
      %v2299 = vpop.f32.mrf.mxu0
      %2300 = vmatprep.mubr.bf16.mxu0 0
      %2301 = vmatmul.mubr.bf16.gmra.mxu0 %v1614
      %v2302 = vpop.f32.mrf.mxu0
      %v2303 = vadd.f32 0.0, %v2302
      %v2304 = vpop.f32.mrf.mxu0
      %v2305 = vpop.f32.mrf.mxu0
      %v2306 = vadd.f32 0.0, %v2305
      %v2307 = vpop.f32.mrf.mxu0
      %2308 = vmatprep.mubr.bf16.mxu0 0
      %2309 = vmatmul.mubr.bf16.gmra.mxu0 %v1615
      %v2310 = vpop.f32.mrf.mxu0
      %v2311 = vadd.f32 0.0, %v2310
      %v2312 = vpop.f32.mrf.mxu0
      %v2313 = vpop.f32.mrf.mxu0
      %v2314 = vadd.f32 0.0, %v2313
      %v2315 = vpop.f32.mrf.mxu0
      %2316 = vmatprep.mubr.bf16.mxu0 0
      %2317 = vmatmul.mubr.bf16.gmra.mxu0 %v1616
      %v2318 = vpop.f32.mrf.mxu0
      %v2319 = vadd.f32 0.0, %v2318
      %v2320 = vpop.f32.mrf.mxu0
      %v2321 = vpop.f32.mrf.mxu0
      %v2322 = vadd.f32 0.0, %v2321
      %v2323 = vpop.f32.mrf.mxu0
      %2324 = vmatprep.mubr.bf16.mxu0 0
      %2325 = vmatmul.mubr.bf16.gmra.mxu0 %v1617
      %v2326 = vpop.f32.mrf.mxu0
      %v2327 = vadd.f32 0.0, %v2326
      %v2328 = vpop.f32.mrf.mxu0
      %v2329 = vpop.f32.mrf.mxu0
      %v2330 = vadd.f32 0.0, %v2329
      %v2331 = vpop.f32.mrf.mxu0
      %2332 = vmatprep.mubr.bf16.mxu0 0
      %2333 = vmatmul.mubr.bf16.gmra.mxu0 %v1618
      %v2334 = vpop.f32.mrf.mxu0
      %v2335 = vadd.f32 0.0, %v2334
      %v2336 = vpop.f32.mrf.mxu0
      %v2337 = vpop.f32.mrf.mxu0
      %v2338 = vadd.f32 0.0, %v2337
      %v2339 = vpop.f32.mrf.mxu0
      %2340 = vmatprep.mubr.bf16.mxu0 0
      %2341 = vmatmul.mubr.bf16.gmra.mxu0 %v1619
      %v2342 = vpop.f32.mrf.mxu0
      %v2343 = vadd.f32 0.0, %v2342
      %v2344 = vpop.f32.mrf.mxu0
      %v2345 = vpop.f32.mrf.mxu0
      %v2346 = vadd.f32 0.0, %v2345
      %v2347 = vpop.f32.mrf.mxu0
      %2348 = vmatprep.mubr.bf16.mxu0 0
      %2349 = vmatmul.mubr.bf16.gmra.mxu0 %v1620
      %v2350 = vpop.f32.mrf.mxu0
      %v2351 = vadd.f32 0.0, %v2350
      %v2352 = vpop.f32.mrf.mxu0
      %v2353 = vpop.f32.mrf.mxu0
      %v2354 = vadd.f32 0.0, %v2353
      %v2355 = vpop.f32.mrf.mxu0
      %2356 = vmatprep.mubr.bf16.mxu0 0
      %2357 = vmatmul.mubr.bf16.gmra.mxu0 %v1621
      %v2358 = vpop.f32.mrf.mxu0
      %v2359 = vadd.f32 0.0, %v2358
      %v2360 = vpop.f32.mrf.mxu0
      %v2361 = vpop.f32.mrf.mxu0
      %v2362 = vadd.f32 0.0, %v2361
      %v2363 = vpop.f32.mrf.mxu0
      %2364 = vmatprep.mubr.bf16.mxu0 0
      %2365 = vmatmul.mubr.bf16.gmra.mxu0 %v1622
      %v2366 = vpop.f32.mrf.mxu0
      %v2367 = vadd.f32 0.0, %v2366
      %v2368 = vpop.f32.mrf.mxu0
      %v2369 = vpop.f32.mrf.mxu0
      %v2370 = vadd.f32 0.0, %v2369
      %v2371 = vpop.f32.mrf.mxu0
      %2372 = vmatprep.mubr.bf16.mxu0 0
      %2373 = vmatmul.mubr.bf16.gmra.mxu0 %v1623
      %v2374 = vpop.f32.mrf.mxu0
      %v2375 = vadd.f32 0.0, %v2374
      %v2376 = vpop.f32.mrf.mxu0
      %v2377 = vpop.f32.mrf.mxu0
      %v2378 = vadd.f32 0.0, %v2377
      %v2379 = vpop.f32.mrf.mxu0
      %2380 = vmatprep.mubr.bf16.mxu0 0
      %2381 = vmatmul.mubr.bf16.gmra.mxu0 %v1624
      %v2382 = vpop.f32.mrf.mxu0
      %v2383 = vadd.f32 0.0, %v2382
      %v2384 = vpop.f32.mrf.mxu0
      %v2385 = vpop.f32.mrf.mxu0
      %v2386 = vadd.f32 0.0, %v2385
      %v2387 = vpop.f32.mrf.mxu0
      %2388 = vmatprep.mubr.bf16.mxu0 0
      %2389 = vmatmul.mubr.bf16.gmra.mxu0 %v1625
      %v2390 = vpop.f32.mrf.mxu0
      %v2391 = vadd.f32 0.0, %v2390
      %v2392 = vpop.f32.mrf.mxu0
      %v2393 = vpop.f32.mrf.mxu0
      %v2394 = vadd.f32 0.0, %v2393
      %v2395 = vpop.f32.mrf.mxu0
      %2396 = vmatprep.mubr.bf16.mxu0 0
      %2397 = vmatmul.mubr.bf16.gmra.mxu0 %v1626
      %v2398 = vpop.f32.mrf.mxu0
      %v2399 = vadd.f32 0.0, %v2398
      %v2400 = vpop.f32.mrf.mxu0
      %v2401 = vpop.f32.mrf.mxu0
      %v2402 = vadd.f32 0.0, %v2401
      %v2403 = vpop.f32.mrf.mxu0
      %2404 = vmatprep.mubr.bf16.mxu0 0
      %2405 = vmatmul.mubr.bf16.gmra.mxu0 %v1627
      %v2406 = vpop.f32.mrf.mxu0
      %v2407 = vadd.f32 0.0, %v2406
      %v2408 = vpop.f32.mrf.mxu0
      %v2409 = vpop.f32.mrf.mxu0
      %v2410 = vadd.f32 0.0, %v2409
      %v2411 = vpop.f32.mrf.mxu0
      %2412 = vmatprep.mubr.bf16.mxu0 0
      %2413 = vmatmul.mubr.bf16.gmra.mxu0 %v1628
      %v2414 = vpop.f32.mrf.mxu0
      %v2415 = vadd.f32 0.0, %v2414
      %v2416 = vpop.f32.mrf.mxu0
      %v2417 = vpop.f32.mrf.mxu0
      %v2418 = vadd.f32 0.0, %v2417
      %v2419 = vpop.f32.mrf.mxu0
      %2420 = vmatprep.mubr.bf16.mxu0 0
      %2421 = vmatmul.mubr.bf16.gmra.mxu0 %v1629
      %v2422 = vpop.f32.mrf.mxu0
      %v2423 = vadd.f32 0.0, %v2422
      %v2424 = vpop.f32.mrf.mxu0
      %v2425 = vpop.f32.mrf.mxu0
      %v2426 = vadd.f32 0.0, %v2425
      %v2427 = vpop.f32.mrf.mxu0
      %2428 = vmatprep.mubr.bf16.mxu0 0
      %2429 = vmatmul.mubr.bf16.gmra.mxu0 %v1630
      %v2430 = vpop.f32.mrf.mxu0
      %v2431 = vadd.f32 0.0, %v2430
      %v2432 = vpop.f32.mrf.mxu0
      %v2433 = vpop.f32.mrf.mxu0
      %v2434 = vadd.f32 0.0, %v2433
      %v2435 = vpop.f32.mrf.mxu0
      %2436 = vmatprep.mubr.bf16.mxu0 0
      %2437 = vmatmul.mubr.bf16.gmra.mxu0 %v1631
      %v2438 = vpop.f32.mrf.mxu0
      %v2439 = vadd.f32 0.0, %v2438
      %v2440 = vpop.f32.mrf.mxu0
      %v2441 = vpop.f32.mrf.mxu0
      %v2442 = vadd.f32 0.0, %v2441
      %v2443 = vpop.f32.mrf.mxu0
      %2444 = vmatprep.mubr.bf16.mxu0 0
      %2445 = vmatmul.mubr.bf16.gmra.mxu0 %v1632
      %v2446 = vpop.f32.mrf.mxu0
      %v2447 = vadd.f32 0.0, %v2446
      %v2448 = vpop.f32.mrf.mxu0
      %v2449 = vpop.f32.mrf.mxu0
      %v2450 = vadd.f32 0.0, %v2449
      %v2451 = vpop.f32.mrf.mxu0
      %2452 = vmatprep.mubr.bf16.mxu0 0
      %2453 = vmatmul.mubr.bf16.gmra.mxu0 %v1633
      %v2454 = vpop.f32.mrf.mxu0
      %v2455 = vadd.f32 0.0, %v2454
      %v2456 = vpop.f32.mrf.mxu0
      %v2457 = vpop.f32.mrf.mxu0
      %v2458 = vadd.f32 0.0, %v2457
      %v2459 = vpop.f32.mrf.mxu0
      %2460 = vmatprep.mubr.bf16.mxu0 0
      %2461 = vmatmul.mubr.bf16.gmra.mxu0 %v1634
      %v2462 = vpop.f32.mrf.mxu0
      %v2463 = vadd.f32 0.0, %v2462
      %v2464 = vpop.f32.mrf.mxu0
      %v2465 = vpop.f32.mrf.mxu0
      %v2466 = vadd.f32 0.0, %v2465
      %v2467 = vpop.f32.mrf.mxu0
      %2468 = vmatprep.mubr.bf16.mxu0 0
      %2469 = vmatmul.mubr.bf16.gmra.mxu0 %v1635
      %v2470 = vpop.f32.mrf.mxu0
      %v2471 = vadd.f32 0.0, %v2470
      %v2472 = vpop.f32.mrf.mxu0
      %v2473 = vpop.f32.mrf.mxu0
      %v2474 = vadd.f32 0.0, %v2473
      %v2475 = vpop.f32.mrf.mxu0
      %2476 = vmatprep.mubr.bf16.mxu0 0
      %2477 = vmatmul.mubr.bf16.gmra.mxu0 %v1636
      %v2478 = vpop.f32.mrf.mxu0
      %v2479 = vadd.f32 0.0, %v2478
      %v2480 = vpop.f32.mrf.mxu0
      %v2481 = vpop.f32.mrf.mxu0
      %v2482 = vadd.f32 0.0, %v2481
      %v2483 = vpop.f32.mrf.mxu0
      %2484 = vmatprep.mubr.bf16.mxu0 0
      %2485 = vmatmul.mubr.bf16.gmra.mxu0 %v1637
      %v2486 = vpop.f32.mrf.mxu0
      %v2487 = vadd.f32 0.0, %v2486
      %v2488 = vpop.f32.mrf.mxu0
      %v2489 = vpop.f32.mrf.mxu0
      %v2490 = vadd.f32 0.0, %v2489
      %v2491 = vpop.f32.mrf.mxu0
      %2492 = vmatprep.mubr.bf16.mxu0 0
      %2493 = vmatmul.mubr.bf16.gmra.mxu0 %v1638
      %v2494 = vpop.f32.mrf.mxu0
      %v2495 = vadd.f32 0.0, %v2494
      %v2496 = vpop.f32.mrf.mxu0
      %v2497 = vpop.f32.mrf.mxu0
      %v2498 = vadd.f32 0.0, %v2497
      %v2499 = vpop.f32.mrf.mxu0
      %2500 = vmatprep.mubr.bf16.mxu0 0
      %2501 = vmatmul.mubr.bf16.gmra.mxu0 %v1639
      %v2502 = vpop.f32.mrf.mxu0
      %v2503 = vadd.f32 0.0, %v2502
      %v2504 = vpop.f32.mrf.mxu0
      %v2505 = vpop.f32.mrf.mxu0
      %v2506 = vadd.f32 0.0, %v2505
      %v2507 = vpop.f32.mrf.mxu0
      %2508 = vmatprep.mubr.bf16.mxu0 0
      %2509 = vmatmul.mubr.bf16.gmra.mxu0 %v1640
      %v2510 = vpop.f32.mrf.mxu0
      %v2511 = vadd.f32 0.0, %v2510
      %v2512 = vpop.f32.mrf.mxu0
      %v2513 = vpop.f32.mrf.mxu0
      %v2514 = vadd.f32 0.0, %v2513
      %v2515 = vpop.f32.mrf.mxu0
      %2516 = vmatprep.mubr.bf16.mxu0 0
      %2517 = vmatmul.mubr.bf16.gmra.mxu0 %v1641
      %v2518 = vpop.f32.mrf.mxu0
      %v2519 = vadd.f32 0.0, %v2518
      %v2520 = vpop.f32.mrf.mxu0
      %v2521 = vpop.f32.mrf.mxu0
      %v2522 = vadd.f32 0.0, %v2521
      %v2523 = vpop.f32.mrf.mxu0
      %2524 = vmatprep.mubr.bf16.mxu0 0
      %2525 = vmatmul.mubr.bf16.gmra.mxu0 %v1642
      %v2526 = vpop.f32.mrf.mxu0
      %v2527 = vadd.f32 0.0, %v2526
      %v2528 = vpop.f32.mrf.mxu0
      %v2529 = vpop.f32.mrf.mxu0
      %v2530 = vadd.f32 0.0, %v2529
      %v2531 = vpop.f32.mrf.mxu0
      %2532 = vmatprep.mubr.bf16.mxu0 0
      %2533 = vmatmul.mubr.bf16.gmra.mxu0 %v1643
      %v2534 = vpop.f32.mrf.mxu0
      %v2535 = vadd.f32 0.0, %v2534
      %v2536 = vpop.f32.mrf.mxu0
      %v2537 = vpop.f32.mrf.mxu0
      %v2538 = vadd.f32 0.0, %v2537
      %v2539 = vpop.f32.mrf.mxu0
      %2540 = vmatprep.mubr.bf16.mxu0 0
      %2541 = vmatmul.mubr.bf16.gmra.mxu0 %v1644
      %v2542 = vpop.f32.mrf.mxu0
      %v2543 = vadd.f32 0.0, %v2542
      %v2544 = vpop.f32.mrf.mxu0
      %v2545 = vpop.f32.mrf.mxu0
      %v2546 = vadd.f32 0.0, %v2545
      %v2547 = vpop.f32.mrf.mxu0
      %2548 = vmatprep.mubr.bf16.mxu0 0
      %2549 = vmatmul.mubr.bf16.gmra.mxu0 %v1645
      %v2550 = vpop.f32.mrf.mxu0
      %v2551 = vadd.f32 0.0, %v2550
      %v2552 = vpop.f32.mrf.mxu0
      %v2553 = vpop.f32.mrf.mxu0
      %v2554 = vadd.f32 0.0, %v2553
      %v2555 = vpop.f32.mrf.mxu0
      %2556 = vmatprep.mubr.bf16.mxu0 0
      %2557 = vmatmul.mubr.bf16.gmra.mxu0 %v1646
      %v2558 = vpop.f32.mrf.mxu0
      %v2559 = vadd.f32 0.0, %v2558
      %v2560 = vpop.f32.mrf.mxu0
      %v2561 = vpop.f32.mrf.mxu0
      %v2562 = vadd.f32 0.0, %v2561
      %v2563 = vpop.f32.mrf.mxu0
      %2564 = vmatprep.mubr.bf16.mxu0 0
      %2565 = vmatmul.mubr.bf16.gmra.mxu0 %v1647
      %v2566 = vpop.f32.mrf.mxu0
      %v2567 = vadd.f32 0.0, %v2566
      %v2568 = vpop.f32.mrf.mxu0
      %v2569 = vpop.f32.mrf.mxu0
      %v2570 = vadd.f32 0.0, %v2569
      %v2571 = vpop.f32.mrf.mxu0
      %2572 = vmatprep.mubr.bf16.mxu0 0
      %2573 = vmatmul.mubr.bf16.gmra.mxu0 %v1648
      %v2574 = vpop.f32.mrf.mxu0
      %v2575 = vadd.f32 0.0, %v2574
      %v2576 = vpop.f32.mrf.mxu0
      %v2577 = vpop.f32.mrf.mxu0
      %v2578 = vadd.f32 0.0, %v2577
      %v2579 = vpop.f32.mrf.mxu0
      %2580 = vmatprep.mubr.bf16.mxu0 0
      %2581 = vmatmul.mubr.bf16.gmra.mxu0 %v1649
      %v2582 = vpop.f32.mrf.mxu0
      %v2583 = vadd.f32 0.0, %v2582
      %v2584 = vpop.f32.mrf.mxu0
      %v2585 = vpop.f32.mrf.mxu0
      %v2586 = vadd.f32 0.0, %v2585
      %v2587 = vpop.f32.mrf.mxu0
      %2588 = vmatprep.mubr.bf16.mxu0 0
      %2589 = vmatmul.mubr.bf16.gmra.mxu0 %v1650
      %v2590 = vpop.f32.mrf.mxu0
      %v2591 = vadd.f32 0.0, %v2590
      %v2592 = vpop.f32.mrf.mxu0
      %v2593 = vpop.f32.mrf.mxu0
      %v2594 = vadd.f32 0.0, %v2593
      %v2595 = vpop.f32.mrf.mxu0
      %2596 = vmatprep.mubr.bf16.mxu0 0
      %2597 = vmatmul.mubr.bf16.gmra.mxu0 %v1651
      %v2598 = vpop.f32.mrf.mxu0
      %v2599 = vadd.f32 0.0, %v2598
      %v2600 = vpop.f32.mrf.mxu0
      %v2601 = vpop.f32.mrf.mxu0
      %v2602 = vadd.f32 0.0, %v2601
      %v2603 = vpop.f32.mrf.mxu0
      %2604 = vmatprep.mubr.bf16.mxu0 0
      %2605 = vmatmul.mubr.bf16.gmra.mxu0 %v1652
      %v2606 = vpop.f32.mrf.mxu0
      %v2607 = vadd.f32 0.0, %v2606
      %v2608 = vpop.f32.mrf.mxu0
      %v2609 = vpop.f32.mrf.mxu0
      %v2610 = vadd.f32 0.0, %v2609
      %v2611 = vpop.f32.mrf.mxu0
      %2612 = vmatprep.mubr.bf16.mxu0 0
      %2613 = vmatmul.mubr.bf16.gmra.mxu0 %v1653
      %v2614 = vpop.f32.mrf.mxu0
      %v2615 = vadd.f32 0.0, %v2614
      %v2616 = vpop.f32.mrf.mxu0
      %v2617 = vpop.f32.mrf.mxu0
      %v2618 = vadd.f32 0.0, %v2617
      %v2619 = vpop.f32.mrf.mxu0
      %2620 = vmatprep.mubr.bf16.mxu0 0
      %2621 = vmatmul.mubr.bf16.gmra.mxu0 %v1654
      %v2622 = vpop.f32.mrf.mxu0
      %v2623 = vadd.f32 0.0, %v2622
      %v2624 = vpop.f32.mrf.mxu0
      %v2625 = vpop.f32.mrf.mxu0
      %v2626 = vadd.f32 0.0, %v2625
      %v2627 = vpop.f32.mrf.mxu0
      %2628 = vmatprep.mubr.bf16.mxu0 0
      %2629 = vmatmul.mubr.bf16.gmra.mxu0 %v1655
      %v2630 = vpop.f32.mrf.mxu0
      %v2631 = vadd.f32 0.0, %v2630
      %v2632 = vpop.f32.mrf.mxu0
      %v2633 = vpop.f32.mrf.mxu0
      %v2634 = vadd.f32 0.0, %v2633
      %v2635 = vpop.f32.mrf.mxu0
      %2636 = vmatprep.mubr.bf16.mxu0 0
      %2637 = vmatmul.mubr.bf16.gmra.mxu0 %v1656
      %v2638 = vpop.f32.mrf.mxu0
      %v2639 = vadd.f32 0.0, %v2638
      %v2640 = vpop.f32.mrf.mxu0
      %v2641 = vpop.f32.mrf.mxu0
      %v2642 = vadd.f32 0.0, %v2641
      %v2643 = vpop.f32.mrf.mxu0
      %2644 = vmatprep.mubr.bf16.mxu0 0
      %2645 = vmatmul.mubr.bf16.gmra.mxu0 %v1657
      %v2646 = vpop.f32.mrf.mxu0
      %v2647 = vadd.f32 0.0, %v2646
      %v2648 = vpop.f32.mrf.mxu0
      %v2649 = vpop.f32.mrf.mxu0
      %v2650 = vadd.f32 0.0, %v2649
      %v2651 = vpop.f32.mrf.mxu0
      %2652 = vmatprep.mubr.bf16.mxu0 0
      %2653 = vmatmul.mubr.bf16.gmra.mxu0 %v1658
      %v2654 = vpop.f32.mrf.mxu0
      %v2655 = vadd.f32 0.0, %v2654
      %v2656 = vpop.f32.mrf.mxu0
      %v2657 = vpop.f32.mrf.mxu0
      %v2658 = vadd.f32 0.0, %v2657
      %v2659 = vpop.f32.mrf.mxu0
      %2660 = vmatprep.mubr.bf16.mxu0 0
      %2661 = vmatmul.mubr.bf16.gmra.mxu0 %v1659
      %v2662 = vpop.f32.mrf.mxu0
      %v2663 = vadd.f32 0.0, %v2662
      %v2664 = vpop.f32.mrf.mxu0
      %v2665 = vpop.f32.mrf.mxu0
      %v2666 = vadd.f32 0.0, %v2665
      %v2667 = vpop.f32.mrf.mxu0
      %2668 = vmatprep.mubr.bf16.mxu0 0
      %2669 = vmatmul.mubr.bf16.gmra.mxu0 %v1660
      %v2670 = vpop.f32.mrf.mxu0
      %v2671 = vadd.f32 0.0, %v2670
      %v2672 = vpop.f32.mrf.mxu0
      %v2673 = vpop.f32.mrf.mxu0
      %v2674 = vadd.f32 0.0, %v2673
      %v2675 = vpop.f32.mrf.mxu0
      %2676 = vmatprep.mubr.bf16.mxu0 0
      %2677 = vmatmul.mubr.bf16.gmra.mxu0 %v1661
      %v2678 = vpop.f32.mrf.mxu0
      %v2679 = vadd.f32 0.0, %v2678
      %v2680 = vpop.f32.mrf.mxu0
      %v2681 = vpop.f32.mrf.mxu0
      %v2682 = vadd.f32 0.0, %v2681
      %v2683 = vpop.f32.mrf.mxu0
      %2684 = vmatprep.mubr.bf16.mxu0 0
      %2685 = vmatmul.mubr.bf16.gmra.mxu0 %v1662
      %v2686 = vpop.f32.mrf.mxu0
      %v2687 = vadd.f32 0.0, %v2686
      %v2688 = vpop.f32.mrf.mxu0
      %v2689 = vpop.f32.mrf.mxu0
      %v2690 = vadd.f32 0.0, %v2689
      %v2691 = vpop.f32.mrf.mxu0
      %2692 = vmatprep.mubr.bf16.mxu0 0
      %2693 = vmatmul.mubr.bf16.gmra.mxu0 %v1663
      %v2694 = vpop.f32.mrf.mxu0
      %v2695 = vadd.f32 0.0, %v2694
      %v2696 = vpop.f32.mrf.mxu0
      %v2697 = vpop.f32.mrf.mxu0
      %v2698 = vadd.f32 0.0, %v2697
      %v2699 = vpop.f32.mrf.mxu0
      %2700 = vmatprep.mubr.bf16.mxu0 0
      %2701 = vmatmul.mubr.bf16.gmra.mxu0 %v1664
      %v2702 = vpop.f32.mrf.mxu0
      %v2703 = vadd.f32 0.0, %v2702
      %v2704 = vpop.f32.mrf.mxu0
      %v2705 = vpop.f32.mrf.mxu0
      %v2706 = vadd.f32 0.0, %v2705
      %v2707 = vpop.f32.mrf.mxu0
      %2708 = vmatprep.mubr.bf16.mxu0 0
      %2709 = vmatmul.mubr.bf16.gmra.mxu0 %v1665
      %v2710 = vpop.f32.mrf.mxu0
      %v2711 = vadd.f32 0.0, %v2710
      %v2712 = vpop.f32.mrf.mxu0
      %v2713 = vpop.f32.mrf.mxu0
      %v2714 = vadd.f32 0.0, %v2713
      %v2715 = vpop.f32.mrf.mxu0
      %2716 = vmatprep.mubr.bf16.mxu0 0
      %2717 = vmatmul.mubr.bf16.gmra.mxu0 %v1666
      %v2718 = vpop.f32.mrf.mxu0
      %v2719 = vadd.f32 0.0, %v2718
      %v2720 = vpop.f32.mrf.mxu0
      %v2721 = vpop.f32.mrf.mxu0
      %v2722 = vadd.f32 0.0, %v2721
      %v2723 = vpop.f32.mrf.mxu0
      %2724 = vmatprep.mubr.bf16.mxu0 0
      %2725 = vmatmul.mubr.bf16.gmra.mxu0 %v1667
      %v2726 = vpop.f32.mrf.mxu0
      %v2727 = vadd.f32 0.0, %v2726
      %v2728 = vpop.f32.mrf.mxu0
      %v2729 = vpop.f32.mrf.mxu0
      %v2730 = vadd.f32 0.0, %v2729
      %v2731 = vpop.f32.mrf.mxu0
      %2732 = vmatprep.mubr.bf16.mxu0 0
      %2733 = vmatmul.mubr.bf16.gmra.mxu0 %v1668
      %v2734 = vpop.f32.mrf.mxu0
      %v2735 = vadd.f32 0.0, %v2734
      %v2736 = vpop.f32.mrf.mxu0
      %v2737 = vpop.f32.mrf.mxu0
      %v2738 = vadd.f32 0.0, %v2737
      %v2739 = vpop.f32.mrf.mxu0
      %2740 = vmatprep.mubr.bf16.mxu0 0
      %2741 = vmatmul.mubr.bf16.gmra.mxu0 %v1669
      %v2742 = vpop.f32.mrf.mxu0
      %v2743 = vadd.f32 0.0, %v2742
      %v2744 = vpop.f32.mrf.mxu0
      %v2745 = vpop.f32.mrf.mxu0
      %v2746 = vadd.f32 0.0, %v2745
      %v2747 = vpop.f32.mrf.mxu0
      %2748 = vmatprep.mubr.bf16.mxu0 0
      %2749 = vmatmul.mubr.bf16.gmra.mxu0 %v1670
      %v2750 = vpop.f32.mrf.mxu0
      %v2751 = vadd.f32 0.0, %v2750
      %v2752 = vpop.f32.mrf.mxu0
      %v2753 = vpop.f32.mrf.mxu0
      %v2754 = vadd.f32 0.0, %v2753
      %v2755 = vpop.f32.mrf.mxu0
      %2756 = vmatprep.mubr.bf16.mxu0 0
      %2757 = vmatmul.mubr.bf16.gmra.mxu0 %v1671
      %v2758 = vpop.f32.mrf.mxu0
      %v2759 = vadd.f32 0.0, %v2758
      %v2760 = vpop.f32.mrf.mxu0
      %v2761 = vpop.f32.mrf.mxu0
      %v2762 = vadd.f32 0.0, %v2761
      %v2763 = vpop.f32.mrf.mxu0
      %2764 = vmatprep.mubr.bf16.mxu0 0
      %2765 = vmatmul.mubr.bf16.gmra.mxu0 %v1672
      %v2766 = vpop.f32.mrf.mxu0
      %v2767 = vadd.f32 0.0, %v2766
      %v2768 = vpop.f32.mrf.mxu0
      %v2769 = vpop.f32.mrf.mxu0
      %v2770 = vadd.f32 0.0, %v2769
      %v2771 = vpop.f32.mrf.mxu0
      %2772 = vmatprep.mubr.bf16.mxu0 0
      %2773 = vmatmul.mubr.bf16.gmra.mxu0 %v1673
      %v2774 = vpop.f32.mrf.mxu0
      %v2775 = vadd.f32 0.0, %v2774
      %v2776 = vpop.f32.mrf.mxu0
      %v2777 = vpop.f32.mrf.mxu0
      %v2778 = vadd.f32 0.0, %v2777
      %v2779 = vpop.f32.mrf.mxu0
      %2780 = vmatprep.mubr.bf16.mxu0 0
      %2781 = vmatmul.mubr.bf16.gmra.mxu0 %v1674
      %v2782 = vpop.f32.mrf.mxu0
      %v2783 = vadd.f32 0.0, %v2782
      %v2784 = vpop.f32.mrf.mxu0
      %v2785 = vpop.f32.mrf.mxu0
      %v2786 = vadd.f32 0.0, %v2785
      %v2787 = vpop.f32.mrf.mxu0
      %2788 = vmatprep.mubr.bf16.mxu0 0
      %2789 = vmatmul.mubr.bf16.gmra.mxu0 %v1675
      %v2790 = vpop.f32.mrf.mxu0
      %v2791 = vadd.f32 0.0, %v2790
      %v2792 = vpop.f32.mrf.mxu0
      %v2793 = vpop.f32.mrf.mxu0
      %v2794 = vadd.f32 0.0, %v2793
      %v2795 = vpop.f32.mrf.mxu0
      %2796 = vmatprep.mubr.bf16.mxu0 0
      %2797 = vmatmul.mubr.bf16.gmra.mxu0 %v1676
      %v2798 = vpop.f32.mrf.mxu0
      %v2799 = vadd.f32 0.0, %v2798
      %v2800 = vpop.f32.mrf.mxu0
      %v2801 = vpop.f32.mrf.mxu0
      %v2802 = vadd.f32 0.0, %v2801
      %v2803 = vpop.f32.mrf.mxu0
      %2804 = vmatprep.mubr.bf16.mxu0 0
      %2805 = vmatmul.mubr.bf16.gmra.mxu0 %v1677
      %v2806 = vpop.f32.mrf.mxu0
      %v2807 = vadd.f32 0.0, %v2806
      %v2808 = vpop.f32.mrf.mxu0
      %v2809 = vpop.f32.mrf.mxu0
      %v2810 = vadd.f32 0.0, %v2809
      %v2811 = vpop.f32.mrf.mxu0
      %2812 = vmatprep.mubr.bf16.mxu0 0
      %2813 = vmatmul.mubr.bf16.gmra.mxu0 %v1678
      %v2814 = vpop.f32.mrf.mxu0
      %v2815 = vadd.f32 0.0, %v2814
      %v2816 = vpop.f32.mrf.mxu0
      %v2817 = vpop.f32.mrf.mxu0
      %v2818 = vadd.f32 0.0, %v2817
      %v2819 = vpop.f32.mrf.mxu0
      %2820 = vmatprep.mubr.bf16.mxu0 0
      %2821 = vmatmul.mubr.bf16.gmra.mxu0 %v1679
      %v2822 = vpop.f32.mrf.mxu0
      %v2823 = vadd.f32 0.0, %v2822
      %v2824 = vpop.f32.mrf.mxu0
      %v2825 = vpop.f32.mrf.mxu0
      %v2826 = vadd.f32 0.0, %v2825
      %v2827 = vpop.f32.mrf.mxu0
      %2828 = vmatprep.mubr.bf16.mxu0 0
      %2829 = vmatmul.mubr.bf16.gmra.mxu0 %v1680
      %v2830 = vpop.f32.mrf.mxu0
      %v2831 = vadd.f32 0.0, %v2830
      %v2832 = vpop.f32.mrf.mxu0
      %v2833 = vpop.f32.mrf.mxu0
      %v2834 = vadd.f32 0.0, %v2833
      %v2835 = vpop.f32.mrf.mxu0
      %2836 = vmatprep.mubr.bf16.mxu0 0
      %2837 = vmatmul.mubr.bf16.gmra.mxu0 %v1681
      %v2838 = vpop.f32.mrf.mxu0
      %v2839 = vadd.f32 0.0, %v2838
      %v2840 = vpop.f32.mrf.mxu0
      %v2841 = vpop.f32.mrf.mxu0
      %v2842 = vadd.f32 0.0, %v2841
      %v2843 = vpop.f32.mrf.mxu0
      %2844 = vmatprep.mubr.bf16.mxu0 0
      %2845 = vmatmul.mubr.bf16.gmra.mxu0 %v1682
      %v2846 = vpop.f32.mrf.mxu0
      %v2847 = vadd.f32 0.0, %v2846
      %v2848 = vpop.f32.mrf.mxu0
      %v2849 = vpop.f32.mrf.mxu0
      %v2850 = vadd.f32 0.0, %v2849
      %v2851 = vpop.f32.mrf.mxu0
      %2852 = vmatprep.mubr.bf16.mxu0 0
      %2853 = vmatmul.mubr.bf16.gmra.mxu0 %v1683
      %v2854 = vpop.f32.mrf.mxu0
      %v2855 = vadd.f32 0.0, %v2854
      %v2856 = vpop.f32.mrf.mxu0
      %v2857 = vpop.f32.mrf.mxu0
      %v2858 = vadd.f32 0.0, %v2857
      %v2859 = vpop.f32.mrf.mxu0
      %2860 = vmatprep.mubr.bf16.mxu0 0
      %2861 = vmatmul.mubr.bf16.gmra.mxu0 %v1684
      %v2862 = vpop.f32.mrf.mxu0
      %v2863 = vadd.f32 0.0, %v2862
      %v2864 = vpop.f32.mrf.mxu0
      %v2865 = vpop.f32.mrf.mxu0
      %v2866 = vadd.f32 0.0, %v2865
      %v2867 = vpop.f32.mrf.mxu0
      %2868 = vmatprep.mubr.bf16.mxu0 0
      %2869 = vmatmul.mubr.bf16.gmra.mxu0 %v1685
      %v2870 = vpop.f32.mrf.mxu0
      %v2871 = vadd.f32 0.0, %v2870
      %v2872 = vpop.f32.mrf.mxu0
      %v2873 = vpop.f32.mrf.mxu0
      %v2874 = vadd.f32 0.0, %v2873
      %v2875 = vpop.f32.mrf.mxu0
      %2876 = vmatprep.mubr.bf16.mxu0 0
      %2877 = vmatmul.mubr.bf16.gmra.mxu0 %v1686
      %v2878 = vpop.f32.mrf.mxu0
      %v2879 = vadd.f32 0.0, %v2878
      %v2880 = vpop.f32.mrf.mxu0
      %v2881 = vpop.f32.mrf.mxu0
      %v2882 = vadd.f32 0.0, %v2881
      %v2883 = vpop.f32.mrf.mxu0
      %2884 = vmatprep.mubr.bf16.mxu0 0
      %2885 = vmatmul.mubr.bf16.gmra.mxu0 %v1687
      %v2886 = vpop.f32.mrf.mxu0
      %v2887 = vadd.f32 0.0, %v2886
      %v2888 = vpop.f32.mrf.mxu0
      %v2889 = vpop.f32.mrf.mxu0
      %v2890 = vadd.f32 0.0, %v2889
      %v2891 = vpop.f32.mrf.mxu0
      %2892 = vmatprep.mubr.bf16.mxu0 0
      %2893 = vmatmul.mubr.bf16.gmra.mxu0 %v1688
      %v2894 = vpop.f32.mrf.mxu0
      %v2895 = vadd.f32 0.0, %v2894
      %v2896 = vpop.f32.mrf.mxu0
      %v2897 = vpop.f32.mrf.mxu0
      %v2898 = vadd.f32 0.0, %v2897
      %v2899 = vpop.f32.mrf.mxu0
      %2900 = vmatprep.mubr.bf16.mxu0 0
      %2901 = vmatmul.mubr.bf16.gmra.mxu0 %v1689
      %v2902 = vpop.f32.mrf.mxu0
      %v2903 = vadd.f32 0.0, %v2902
      %v2904 = vpop.f32.mrf.mxu0
      %v2905 = vpop.f32.mrf.mxu0
      %v2906 = vadd.f32 0.0, %v2905
      %v2907 = vpop.f32.mrf.mxu0
      %2908 = vmatprep.mubr.bf16.mxu0 0
      %2909 = vmatmul.mubr.bf16.gmra.mxu0 %v1690
      %v2910 = vpop.f32.mrf.mxu0
      %v2911 = vadd.f32 0.0, %v2910
      %v2912 = vpop.f32.mrf.mxu0
      %v2913 = vpop.f32.mrf.mxu0
      %v2914 = vadd.f32 0.0, %v2913
      %v2915 = vpop.f32.mrf.mxu0
      %2916 = vmatprep.mubr.bf16.mxu0 0
      %2917 = vmatmul.mubr.bf16.gmra.mxu0 %v1691
      %v2918 = vpop.f32.mrf.mxu0
      %v2919 = vadd.f32 0.0, %v2918
      %v2920 = vpop.f32.mrf.mxu0
      %v2921 = vpop.f32.mrf.mxu0
      %v2922 = vadd.f32 0.0, %v2921
      %v2923 = vpop.f32.mrf.mxu0
      %2924 = vdwg.mxu0
      %v2925 = vadd.f32 %v524, %v1903
      %v2926 = vadd.f32 %v525, %v1906
      %v2927 = vadd.f32 %v526, %v1911
      %v2928 = vadd.f32 %v527, %v1914
      %v2929 = vadd.f32 %v528, %v1919
      %v2930 = vadd.f32 %v529, %v1922
      %v2931 = vadd.f32 %v530, %v1927
      %v2932 = vadd.f32 %v531, %v1930
      %v2933 = vadd.f32 %v532, %v1935
      %v2934 = vadd.f32 %v533, %v1938
      %v2935 = vadd.f32 %v534, %v1943
      %v2936 = vadd.f32 %v535, %v1946
      %v2937 = vadd.f32 %v536, %v1951
      %v2938 = vadd.f32 %v537, %v1954
      %v2939 = vadd.f32 %v538, %v1959
      %v2940 = vadd.f32 %v539, %v1962
      %v2941 = vadd.f32 %v540, %v1967
      %v2942 = vadd.f32 %v541, %v1970
      %v2943 = vadd.f32 %v542, %v1975
      %v2944 = vadd.f32 %v543, %v1978
      %v2945 = vadd.f32 %v544, %v1983
      %v2946 = vadd.f32 %v545, %v1986
      %v2947 = vadd.f32 %v546, %v1991
      %v2948 = vadd.f32 %v547, %v1994
      %v2949 = vadd.f32 %v548, %v1999
      %v2950 = vadd.f32 %v549, %v2002
      %v2951 = vadd.f32 %v550, %v2007
      %v2952 = vadd.f32 %v551, %v2010
      %v2953 = vadd.f32 %v552, %v2015
      %v2954 = vadd.f32 %v553, %v2018
      %v2955 = vadd.f32 %v554, %v2023
      %v2956 = vadd.f32 %v555, %v2026
      %v2957 = vadd.f32 %v556, %v2031
      %v2958 = vadd.f32 %v557, %v2034
      %v2959 = vadd.f32 %v558, %v2039
      %v2960 = vadd.f32 %v559, %v2042
      %v2961 = vadd.f32 %v560, %v2047
      %v2962 = vadd.f32 %v561, %v2050
      %v2963 = vadd.f32 %v562, %v2055
      %v2964 = vadd.f32 %v563, %v2058
      %v2965 = vadd.f32 %v564, %v2063
      %v2966 = vadd.f32 %v565, %v2066
      %v2967 = vadd.f32 %v566, %v2071
      %v2968 = vadd.f32 %v567, %v2074
      %v2969 = vadd.f32 %v568, %v2079
      %v2970 = vadd.f32 %v569, %v2082
      %v2971 = vadd.f32 %v570, %v2087
      %v2972 = vadd.f32 %v571, %v2090
      %v2973 = vadd.f32 %v572, %v2095
      %v2974 = vadd.f32 %v573, %v2098
      %v2975 = vadd.f32 %v574, %v2103
      %v2976 = vadd.f32 %v575, %v2106
      %v2977 = vadd.f32 %v576, %v2111
      %v2978 = vadd.f32 %v577, %v2114
      %v2979 = vadd.f32 %v578, %v2119
      %v2980 = vadd.f32 %v579, %v2122
      %v2981 = vadd.f32 %v580, %v2127
      %v2982 = vadd.f32 %v581, %v2130
      %v2983 = vadd.f32 %v582, %v2135
      %v2984 = vadd.f32 %v583, %v2138
      %v2985 = vadd.f32 %v584, %v2143
      %v2986 = vadd.f32 %v585, %v2146
      %v2987 = vadd.f32 %v586, %v2151
      %v2988 = vadd.f32 %v587, %v2154
      %v2989 = vadd.f32 %v588, %v2159
      %v2990 = vadd.f32 %v589, %v2162
      %v2991 = vadd.f32 %v590, %v2167
      %v2992 = vadd.f32 %v591, %v2170
      %v2993 = vadd.f32 %v592, %v2175
      %v2994 = vadd.f32 %v593, %v2178
      %v2995 = vadd.f32 %v594, %v2183
      %v2996 = vadd.f32 %v595, %v2186
      %v2997 = vadd.f32 %v596, %v2191
      %v2998 = vadd.f32 %v597, %v2194
      %v2999 = vadd.f32 %v598, %v2199
      %v3000 = vadd.f32 %v599, %v2202
      %v3001 = vadd.f32 %v600, %v2207
      %v3002 = vadd.f32 %v601, %v2210
      %v3003 = vadd.f32 %v602, %v2215
      %v3004 = vadd.f32 %v603, %v2218
      %v3005 = vadd.f32 %v604, %v2223
      %v3006 = vadd.f32 %v605, %v2226
      %v3007 = vadd.f32 %v606, %v2231
      %v3008 = vadd.f32 %v607, %v2234
      %v3009 = vadd.f32 %v608, %v2239
      %v3010 = vadd.f32 %v609, %v2242
      %v3011 = vadd.f32 %v610, %v2247
      %v3012 = vadd.f32 %v611, %v2250
      %v3013 = vadd.f32 %v612, %v2255
      %v3014 = vadd.f32 %v613, %v2258
      %v3015 = vadd.f32 %v614, %v2263
      %v3016 = vadd.f32 %v615, %v2266
      %v3017 = vadd.f32 %v616, %v2271
      %v3018 = vadd.f32 %v617, %v2274
      %v3019 = vadd.f32 %v618, %v2279
      %v3020 = vadd.f32 %v619, %v2282
      %v3021 = vadd.f32 %v620, %v2287
      %v3022 = vadd.f32 %v621, %v2290
      %v3023 = vadd.f32 %v622, %v2295
      %v3024 = vadd.f32 %v623, %v2298
      %v3025 = vadd.f32 %v624, %v2303
      %v3026 = vadd.f32 %v625, %v2306
      %v3027 = vadd.f32 %v626, %v2311
      %v3028 = vadd.f32 %v627, %v2314
      %v3029 = vadd.f32 %v628, %v2319
      %v3030 = vadd.f32 %v629, %v2322
      %v3031 = vadd.f32 %v630, %v2327
      %v3032 = vadd.f32 %v631, %v2330
      %v3033 = vadd.f32 %v632, %v2335
      %v3034 = vadd.f32 %v633, %v2338
      %v3035 = vadd.f32 %v634, %v2343
      %v3036 = vadd.f32 %v635, %v2346
      %v3037 = vadd.f32 %v636, %v2351
      %v3038 = vadd.f32 %v637, %v2354
      %v3039 = vadd.f32 %v638, %v2359
      %v3040 = vadd.f32 %v639, %v2362
      %v3041 = vadd.f32 %v640, %v2367
      %v3042 = vadd.f32 %v641, %v2370
      %v3043 = vadd.f32 %v642, %v2375
      %v3044 = vadd.f32 %v643, %v2378
      %v3045 = vadd.f32 %v644, %v2383
      %v3046 = vadd.f32 %v645, %v2386
      %v3047 = vadd.f32 %v646, %v2391
      %v3048 = vadd.f32 %v647, %v2394
      %v3049 = vadd.f32 %v648, %v2399
      %v3050 = vadd.f32 %v649, %v2402
      %v3051 = vadd.f32 %v650, %v2407
      %v3052 = vadd.f32 %v651, %v2410
      %v3053 = vadd.f32 %v652, %v2415
      %v3054 = vadd.f32 %v653, %v2418
      %v3055 = vadd.f32 %v654, %v2423
      %v3056 = vadd.f32 %v655, %v2426
      %v3057 = vadd.f32 %v656, %v2431
      %v3058 = vadd.f32 %v657, %v2434
      %v3059 = vadd.f32 %v658, %v2439
      %v3060 = vadd.f32 %v659, %v2442
      %v3061 = vadd.f32 %v660, %v2447
      %v3062 = vadd.f32 %v661, %v2450
      %v3063 = vadd.f32 %v662, %v2455
      %v3064 = vadd.f32 %v663, %v2458
      %v3065 = vadd.f32 %v664, %v2463
      %v3066 = vadd.f32 %v665, %v2466
      %v3067 = vadd.f32 %v666, %v2471
      %v3068 = vadd.f32 %v667, %v2474
      %v3069 = vadd.f32 %v668, %v2479
      %v3070 = vadd.f32 %v669, %v2482
      %v3071 = vadd.f32 %v670, %v2487
      %v3072 = vadd.f32 %v671, %v2490
      %v3073 = vadd.f32 %v672, %v2495
      %v3074 = vadd.f32 %v673, %v2498
      %v3075 = vadd.f32 %v674, %v2503
      %v3076 = vadd.f32 %v675, %v2506
      %v3077 = vadd.f32 %v676, %v2511
      %v3078 = vadd.f32 %v677, %v2514
      %v3079 = vadd.f32 %v678, %v2519
      %v3080 = vadd.f32 %v679, %v2522
      %v3081 = vadd.f32 %v680, %v2527
      %v3082 = vadd.f32 %v681, %v2530
      %v3083 = vadd.f32 %v682, %v2535
      %v3084 = vadd.f32 %v683, %v2538
      %v3085 = vadd.f32 %v684, %v2543
      %v3086 = vadd.f32 %v685, %v2546
      %v3087 = vadd.f32 %v686, %v2551
      %v3088 = vadd.f32 %v687, %v2554
      %v3089 = vadd.f32 %v688, %v2559
      %v3090 = vadd.f32 %v689, %v2562
      %v3091 = vadd.f32 %v690, %v2567
      %v3092 = vadd.f32 %v691, %v2570
      %v3093 = vadd.f32 %v692, %v2575
      %v3094 = vadd.f32 %v693, %v2578
      %v3095 = vadd.f32 %v694, %v2583
      %v3096 = vadd.f32 %v695, %v2586
      %v3097 = vadd.f32 %v696, %v2591
      %v3098 = vadd.f32 %v697, %v2594
      %v3099 = vadd.f32 %v698, %v2599
      %v3100 = vadd.f32 %v699, %v2602
      %v3101 = vadd.f32 %v700, %v2607
      %v3102 = vadd.f32 %v701, %v2610
      %v3103 = vadd.f32 %v702, %v2615
      %v3104 = vadd.f32 %v703, %v2618
      %v3105 = vadd.f32 %v704, %v2623
      %v3106 = vadd.f32 %v705, %v2626
      %v3107 = vadd.f32 %v706, %v2631
      %v3108 = vadd.f32 %v707, %v2634
      %v3109 = vadd.f32 %v708, %v2639
      %v3110 = vadd.f32 %v709, %v2642
      %v3111 = vadd.f32 %v710, %v2647
      %v3112 = vadd.f32 %v711, %v2650
      %v3113 = vadd.f32 %v712, %v2655
      %v3114 = vadd.f32 %v713, %v2658
      %v3115 = vadd.f32 %v714, %v2663
      %v3116 = vadd.f32 %v715, %v2666
      %v3117 = vadd.f32 %v716, %v2671
      %v3118 = vadd.f32 %v717, %v2674
      %v3119 = vadd.f32 %v718, %v2679
      %v3120 = vadd.f32 %v719, %v2682
      %v3121 = vadd.f32 %v720, %v2687
      %v3122 = vadd.f32 %v721, %v2690
      %v3123 = vadd.f32 %v722, %v2695
      %v3124 = vadd.f32 %v723, %v2698
      %v3125 = vadd.f32 %v724, %v2703
      %v3126 = vadd.f32 %v725, %v2706
      %v3127 = vadd.f32 %v726, %v2711
      %v3128 = vadd.f32 %v727, %v2714
      %v3129 = vadd.f32 %v728, %v2719
      %v3130 = vadd.f32 %v729, %v2722
      %v3131 = vadd.f32 %v730, %v2727
      %v3132 = vadd.f32 %v731, %v2730
      %v3133 = vadd.f32 %v732, %v2735
      %v3134 = vadd.f32 %v733, %v2738
      %v3135 = vadd.f32 %v734, %v2743
      %v3136 = vadd.f32 %v735, %v2746
      %v3137 = vadd.f32 %v736, %v2751
      %v3138 = vadd.f32 %v737, %v2754
      %v3139 = vadd.f32 %v738, %v2759
      %v3140 = vadd.f32 %v739, %v2762
      %v3141 = vadd.f32 %v740, %v2767
      %v3142 = vadd.f32 %v741, %v2770
      %v3143 = vadd.f32 %v742, %v2775
      %v3144 = vadd.f32 %v743, %v2778
      %v3145 = vadd.f32 %v744, %v2783
      %v3146 = vadd.f32 %v745, %v2786
      %v3147 = vadd.f32 %v746, %v2791
      %v3148 = vadd.f32 %v747, %v2794
      %v3149 = vadd.f32 %v748, %v2799
      %v3150 = vadd.f32 %v749, %v2802
      %v3151 = vadd.f32 %v750, %v2807
      %v3152 = vadd.f32 %v751, %v2810
      %v3153 = vadd.f32 %v752, %v2815
      %v3154 = vadd.f32 %v753, %v2818
      %v3155 = vadd.f32 %v754, %v2823
      %v3156 = vadd.f32 %v755, %v2826
      %v3157 = vadd.f32 %v756, %v2831
      %v3158 = vadd.f32 %v757, %v2834
      %v3159 = vadd.f32 %v758, %v2839
      %v3160 = vadd.f32 %v759, %v2842
      %v3161 = vadd.f32 %v760, %v2847
      %v3162 = vadd.f32 %v761, %v2850
      %v3163 = vadd.f32 %v762, %v2855
      %v3164 = vadd.f32 %v763, %v2858
      %v3165 = vadd.f32 %v764, %v2863
      %v3166 = vadd.f32 %v765, %v2866
      %v3167 = vadd.f32 %v766, %v2871
      %v3168 = vadd.f32 %v767, %v2874
      %v3169 = vadd.f32 %v768, %v2879
      %v3170 = vadd.f32 %v769, %v2882
      %v3171 = vadd.f32 %v770, %v2887
      %v3172 = vadd.f32 %v771, %v2890
      %v3173 = vadd.f32 %v772, %v2895
      %v3174 = vadd.f32 %v773, %v2898
      %v3175 = vadd.f32 %v774, %v2903
      %v3176 = vadd.f32 %v775, %v2906
      %v3177 = vadd.f32 %v776, %v2911
      %v3178 = vadd.f32 %v777, %v2914
      %v3179 = vadd.f32 %v778, %v2919
      %v3180 = vadd.f32 %v779, %v2922
      %3181 = vst [vmem:[#allocation2] sm:$0xff] %v2925
      %3182 = vst [vmem:[#allocation2 + $0x8] sm:$0xff] %v2926
      %3183 = vst [vmem:[#allocation2 + $0x10] sm:$0xff] %v2927
      %3184 = vst [vmem:[#allocation2 + $0x18] sm:$0xff] %v2928
      %3185 = vst [vmem:[#allocation2 + $0x20] sm:$0xff] %v2929
      %3186 = vst [vmem:[#allocation2 + $0x28] sm:$0xff] %v2930
      %3187 = vst [vmem:[#allocation2 + $0x30] sm:$0xff] %v2931
      %3188 = vst [vmem:[#allocation2 + $0x38] sm:$0xff] %v2932
      %3189 = vst [vmem:[#allocation2 + $0x40] sm:$0xff] %v2933
      %3190 = vst [vmem:[#allocation2 + $0x48] sm:$0xff] %v2934
      %3191 = vst [vmem:[#allocation2 + $0x50] sm:$0xff] %v2935
      %3192 = vst [vmem:[#allocation2 + $0x58] sm:$0xff] %v2936
      %3193 = vst [vmem:[#allocation2 + $0x60] sm:$0xff] %v2937
      %3194 = vst [vmem:[#allocation2 + $0x68] sm:$0xff] %v2938
      %3195 = vst [vmem:[#allocation2 + $0x70] sm:$0xff] %v2939
      %3196 = vst [vmem:[#allocation2 + $0x78] sm:$0xff] %v2940
      %3197 = vst [vmem:[#allocation2 + $0x80] sm:$0xff] %v2941
      %3198 = vst [vmem:[#allocation2 + $0x88] sm:$0xff] %v2942
      %3199 = vst [vmem:[#allocation2 + $0x90] sm:$0xff] %v2943
      %3200 = vst [vmem:[#allocation2 + $0x98] sm:$0xff] %v2944
      %3201 = vst [vmem:[#allocation2 + $0xa0] sm:$0xff] %v2945
      %3202 = vst [vmem:[#allocation2 + $0xa8] sm:$0xff] %v2946
      %3203 = vst [vmem:[#allocation2 + $0xb0] sm:$0xff] %v2947
      %3204 = vst [vmem:[#allocation2 + $0xb8] sm:$0xff] %v2948
      %3205 = vst [vmem:[#allocation2 + $0xc0] sm:$0xff] %v2949
      %3206 = vst [vmem:[#allocation2 + $0xc8] sm:$0xff] %v2950
      %3207 = vst [vmem:[#allocation2 + $0xd0] sm:$0xff] %v2951
      %3208 = vst [vmem:[#allocation2 + $0xd8] sm:$0xff] %v2952
      %3209 = vst [vmem:[#allocation2 + $0xe0] sm:$0xff] %v2953
      %3210 = vst [vmem:[#allocation2 + $0xe8] sm:$0xff] %v2954
      %3211 = vst [vmem:[#allocation2 + $0xf0] sm:$0xff] %v2955
      %3212 = vst [vmem:[#allocation2 + $0xf8] sm:$0xff] %v2956
      %3213 = vst [vmem:[#allocation2 + $0x100] sm:$0xff] %v2957
      %3214 = vst [vmem:[#allocation2 + $0x108] sm:$0xff] %v2958
      %3215 = vst [vmem:[#allocation2 + $0x110] sm:$0xff] %v2959
      %3216 = vst [vmem:[#allocation2 + $0x118] sm:$0xff] %v2960
      %3217 = vst [vmem:[#allocation2 + $0x120] sm:$0xff] %v2961
      %3218 = vst [vmem:[#allocation2 + $0x128] sm:$0xff] %v2962
      %3219 = vst [vmem:[#allocation2 + $0x130] sm:$0xff] %v2963
      %3220 = vst [vmem:[#allocation2 + $0x138] sm:$0xff] %v2964
      %3221 = vst [vmem:[#allocation2 + $0x140] sm:$0xff] %v2965
      %3222 = vst [vmem:[#allocation2 + $0x148] sm:$0xff] %v2966
      %3223 = vst [vmem:[#allocation2 + $0x150] sm:$0xff] %v2967
      %3224 = vst [vmem:[#allocation2 + $0x158] sm:$0xff] %v2968
      %3225 = vst [vmem:[#allocation2 + $0x160] sm:$0xff] %v2969
      %3226 = vst [vmem:[#allocation2 + $0x168] sm:$0xff] %v2970
      %3227 = vst [vmem:[#allocation2 + $0x170] sm:$0xff] %v2971
      %3228 = vst [vmem:[#allocation2 + $0x178] sm:$0xff] %v2972
      %3229 = vst [vmem:[#allocation2 + $0x180] sm:$0xff] %v2973
      %3230 = vst [vmem:[#allocation2 + $0x188] sm:$0xff] %v2974
      %3231 = vst [vmem:[#allocation2 + $0x190] sm:$0xff] %v2975
      %3232 = vst [vmem:[#allocation2 + $0x198] sm:$0xff] %v2976
      %3233 = vst [vmem:[#allocation2 + $0x1a0] sm:$0xff] %v2977
      %3234 = vst [vmem:[#allocation2 + $0x1a8] sm:$0xff] %v2978
      %3235 = vst [vmem:[#allocation2 + $0x1b0] sm:$0xff] %v2979
      %3236 = vst [vmem:[#allocation2 + $0x1b8] sm:$0xff] %v2980
      %3237 = vst [vmem:[#allocation2 + $0x1c0] sm:$0xff] %v2981
      %3238 = vst [vmem:[#allocation2 + $0x1c8] sm:$0xff] %v2982
      %3239 = vst [vmem:[#allocation2 + $0x1d0] sm:$0xff] %v2983
      %3240 = vst [vmem:[#allocation2 + $0x1d8] sm:$0xff] %v2984
      %3241 = vst [vmem:[#allocation2 + $0x1e0] sm:$0xff] %v2985
      %3242 = vst [vmem:[#allocation2 + $0x1e8] sm:$0xff] %v2986
      %3243 = vst [vmem:[#allocation2 + $0x1f0] sm:$0xff] %v2987
      %3244 = vst [vmem:[#allocation2 + $0x1f8] sm:$0xff] %v2988
      %3245 = vst [vmem:[#allocation2 + $0x200] sm:$0xff] %v2989
      %3246 = vst [vmem:[#allocation2 + $0x208] sm:$0xff] %v2990
      %3247 = vst [vmem:[#allocation2 + $0x210] sm:$0xff] %v2991
      %3248 = vst [vmem:[#allocation2 + $0x218] sm:$0xff] %v2992
      %3249 = vst [vmem:[#allocation2 + $0x220] sm:$0xff] %v2993
      %3250 = vst [vmem:[#allocation2 + $0x228] sm:$0xff] %v2994
      %3251 = vst [vmem:[#allocation2 + $0x230] sm:$0xff] %v2995
      %3252 = vst [vmem:[#allocation2 + $0x238] sm:$0xff] %v2996
      %3253 = vst [vmem:[#allocation2 + $0x240] sm:$0xff] %v2997
      %3254 = vst [vmem:[#allocation2 + $0x248] sm:$0xff] %v2998
      %3255 = vst [vmem:[#allocation2 + $0x250] sm:$0xff] %v2999
      %3256 = vst [vmem:[#allocation2 + $0x258] sm:$0xff] %v3000
      %3257 = vst [vmem:[#allocation2 + $0x260] sm:$0xff] %v3001
      %3258 = vst [vmem:[#allocation2 + $0x268] sm:$0xff] %v3002
      %3259 = vst [vmem:[#allocation2 + $0x270] sm:$0xff] %v3003
      %3260 = vst [vmem:[#allocation2 + $0x278] sm:$0xff] %v3004
      %3261 = vst [vmem:[#allocation2 + $0x280] sm:$0xff] %v3005
      %3262 = vst [vmem:[#allocation2 + $0x288] sm:$0xff] %v3006
      %3263 = vst [vmem:[#allocation2 + $0x290] sm:$0xff] %v3007
      %3264 = vst [vmem:[#allocation2 + $0x298] sm:$0xff] %v3008
      %3265 = vst [vmem:[#allocation2 + $0x2a0] sm:$0xff] %v3009
      %3266 = vst [vmem:[#allocation2 + $0x2a8] sm:$0xff] %v3010
      %3267 = vst [vmem:[#allocation2 + $0x2b0] sm:$0xff] %v3011
      %3268 = vst [vmem:[#allocation2 + $0x2b8] sm:$0xff] %v3012
      %3269 = vst [vmem:[#allocation2 + $0x2c0] sm:$0xff] %v3013
      %3270 = vst [vmem:[#allocation2 + $0x2c8] sm:$0xff] %v3014
      %3271 = vst [vmem:[#allocation2 + $0x2d0] sm:$0xff] %v3015
      %3272 = vst [vmem:[#allocation2 + $0x2d8] sm:$0xff] %v3016
      %3273 = vst [vmem:[#allocation2 + $0x2e0] sm:$0xff] %v3017
      %3274 = vst [vmem:[#allocation2 + $0x2e8] sm:$0xff] %v3018
      %3275 = vst [vmem:[#allocation2 + $0x2f0] sm:$0xff] %v3019
      %3276 = vst [vmem:[#allocation2 + $0x2f8] sm:$0xff] %v3020
      %3277 = vst [vmem:[#allocation2 + $0x300] sm:$0xff] %v3021
      %3278 = vst [vmem:[#allocation2 + $0x308] sm:$0xff] %v3022
      %3279 = vst [vmem:[#allocation2 + $0x310] sm:$0xff] %v3023
      %3280 = vst [vmem:[#allocation2 + $0x318] sm:$0xff] %v3024
      %3281 = vst [vmem:[#allocation2 + $0x320] sm:$0xff] %v3025
      %3282 = vst [vmem:[#allocation2 + $0x328] sm:$0xff] %v3026
      %3283 = vst [vmem:[#allocation2 + $0x330] sm:$0xff] %v3027
      %3284 = vst [vmem:[#allocation2 + $0x338] sm:$0xff] %v3028
      %3285 = vst [vmem:[#allocation2 + $0x340] sm:$0xff] %v3029
      %3286 = vst [vmem:[#allocation2 + $0x348] sm:$0xff] %v3030
      %3287 = vst [vmem:[#allocation2 + $0x350] sm:$0xff] %v3031
      %3288 = vst [vmem:[#allocation2 + $0x358] sm:$0xff] %v3032
      %3289 = vst [vmem:[#allocation2 + $0x360] sm:$0xff] %v3033
      %3290 = vst [vmem:[#allocation2 + $0x368] sm:$0xff] %v3034
      %3291 = vst [vmem:[#allocation2 + $0x370] sm:$0xff] %v3035
      %3292 = vst [vmem:[#allocation2 + $0x378] sm:$0xff] %v3036
      %3293 = vst [vmem:[#allocation2 + $0x380] sm:$0xff] %v3037
      %3294 = vst [vmem:[#allocation2 + $0x388] sm:$0xff] %v3038
      %3295 = vst [vmem:[#allocation2 + $0x390] sm:$0xff] %v3039
      %3296 = vst [vmem:[#allocation2 + $0x398] sm:$0xff] %v3040
      %3297 = vst [vmem:[#allocation2 + $0x3a0] sm:$0xff] %v3041
      %3298 = vst [vmem:[#allocation2 + $0x3a8] sm:$0xff] %v3042
      %3299 = vst [vmem:[#allocation2 + $0x3b0] sm:$0xff] %v3043
      %3300 = vst [vmem:[#allocation2 + $0x3b8] sm:$0xff] %v3044
      %3301 = vst [vmem:[#allocation2 + $0x3c0] sm:$0xff] %v3045
      %3302 = vst [vmem:[#allocation2 + $0x3c8] sm:$0xff] %v3046
      %3303 = vst [vmem:[#allocation2 + $0x3d0] sm:$0xff] %v3047
      %3304 = vst [vmem:[#allocation2 + $0x3d8] sm:$0xff] %v3048
      %3305 = vst [vmem:[#allocation2 + $0x3e0] sm:$0xff] %v3049
      %3306 = vst [vmem:[#allocation2 + $0x3e8] sm:$0xff] %v3050
      %3307 = vst [vmem:[#allocation2 + $0x3f0] sm:$0xff] %v3051
      %3308 = vst [vmem:[#allocation2 + $0x3f8] sm:$0xff] %v3052
      %3309 = vst [vmem:[#allocation2 + $0x400] sm:$0xff] %v3053
      %3310 = vst [vmem:[#allocation2 + $0x408] sm:$0xff] %v3054
      %3311 = vst [vmem:[#allocation2 + $0x410] sm:$0xff] %v3055
      %3312 = vst [vmem:[#allocation2 + $0x418] sm:$0xff] %v3056
      %3313 = vst [vmem:[#allocation2 + $0x420] sm:$0xff] %v3057
      %3314 = vst [vmem:[#allocation2 + $0x428] sm:$0xff] %v3058
      %3315 = vst [vmem:[#allocation2 + $0x430] sm:$0xff] %v3059
      %3316 = vst [vmem:[#allocation2 + $0x438] sm:$0xff] %v3060
      %3317 = vst [vmem:[#allocation2 + $0x440] sm:$0xff] %v3061
      %3318 = vst [vmem:[#allocation2 + $0x448] sm:$0xff] %v3062
      %3319 = vst [vmem:[#allocation2 + $0x450] sm:$0xff] %v3063
      %3320 = vst [vmem:[#allocation2 + $0x458] sm:$0xff] %v3064
      %3321 = vst [vmem:[#allocation2 + $0x460] sm:$0xff] %v3065
      %3322 = vst [vmem:[#allocation2 + $0x468] sm:$0xff] %v3066
      %3323 = vst [vmem:[#allocation2 + $0x470] sm:$0xff] %v3067
      %3324 = vst [vmem:[#allocation2 + $0x478] sm:$0xff] %v3068
      %3325 = vst [vmem:[#allocation2 + $0x480] sm:$0xff] %v3069
      %3326 = vst [vmem:[#allocation2 + $0x488] sm:$0xff] %v3070
      %3327 = vst [vmem:[#allocation2 + $0x490] sm:$0xff] %v3071
      %3328 = vst [vmem:[#allocation2 + $0x498] sm:$0xff] %v3072
      %3329 = vst [vmem:[#allocation2 + $0x4a0] sm:$0xff] %v3073
      %3330 = vst [vmem:[#allocation2 + $0x4a8] sm:$0xff] %v3074
      %3331 = vst [vmem:[#allocation2 + $0x4b0] sm:$0xff] %v3075
      %3332 = vst [vmem:[#allocation2 + $0x4b8] sm:$0xff] %v3076
      %3333 = vst [vmem:[#allocation2 + $0x4c0] sm:$0xff] %v3077
      %3334 = vst [vmem:[#allocation2 + $0x4c8] sm:$0xff] %v3078
      %3335 = vst [vmem:[#allocation2 + $0x4d0] sm:$0xff] %v3079
      %3336 = vst [vmem:[#allocation2 + $0x4d8] sm:$0xff] %v3080
      %3337 = vst [vmem:[#allocation2 + $0x4e0] sm:$0xff] %v3081
      %3338 = vst [vmem:[#allocation2 + $0x4e8] sm:$0xff] %v3082
      %3339 = vst [vmem:[#allocation2 + $0x4f0] sm:$0xff] %v3083
      %3340 = vst [vmem:[#allocation2 + $0x4f8] sm:$0xff] %v3084
      %3341 = vst [vmem:[#allocation2 + $0x500] sm:$0xff] %v3085
      %3342 = vst [vmem:[#allocation2 + $0x508] sm:$0xff] %v3086
      %3343 = vst [vmem:[#allocation2 + $0x510] sm:$0xff] %v3087
      %3344 = vst [vmem:[#allocation2 + $0x518] sm:$0xff] %v3088
      %3345 = vst [vmem:[#allocation2 + $0x520] sm:$0xff] %v3089
      %3346 = vst [vmem:[#allocation2 + $0x528] sm:$0xff] %v3090
      %3347 = vst [vmem:[#allocation2 + $0x530] sm:$0xff] %v3091
      %3348 = vst [vmem:[#allocation2 + $0x538] sm:$0xff] %v3092
      %3349 = vst [vmem:[#allocation2 + $0x540] sm:$0xff] %v3093
      %3350 = vst [vmem:[#allocation2 + $0x548] sm:$0xff] %v3094
      %3351 = vst [vmem:[#allocation2 + $0x550] sm:$0xff] %v3095
      %3352 = vst [vmem:[#allocation2 + $0x558] sm:$0xff] %v3096
      %3353 = vst [vmem:[#allocation2 + $0x560] sm:$0xff] %v3097
      %3354 = vst [vmem:[#allocation2 + $0x568] sm:$0xff] %v3098
      %3355 = vst [vmem:[#allocation2 + $0x570] sm:$0xff] %v3099
      %3356 = vst [vmem:[#allocation2 + $0x578] sm:$0xff] %v3100
      %3357 = vst [vmem:[#allocation2 + $0x580] sm:$0xff] %v3101
      %3358 = vst [vmem:[#allocation2 + $0x588] sm:$0xff] %v3102
      %3359 = vst [vmem:[#allocation2 + $0x590] sm:$0xff] %v3103
      %3360 = vst [vmem:[#allocation2 + $0x598] sm:$0xff] %v3104
      %3361 = vst [vmem:[#allocation2 + $0x5a0] sm:$0xff] %v3105
      %3362 = vst [vmem:[#allocation2 + $0x5a8] sm:$0xff] %v3106
      %3363 = vst [vmem:[#allocation2 + $0x5b0] sm:$0xff] %v3107
      %3364 = vst [vmem:[#allocation2 + $0x5b8] sm:$0xff] %v3108
      %3365 = vst [vmem:[#allocation2 + $0x5c0] sm:$0xff] %v3109
      %3366 = vst [vmem:[#allocation2 + $0x5c8] sm:$0xff] %v3110
      %3367 = vst [vmem:[#allocation2 + $0x5d0] sm:$0xff] %v3111
      %3368 = vst [vmem:[#allocation2 + $0x5d8] sm:$0xff] %v3112
      %3369 = vst [vmem:[#allocation2 + $0x5e0] sm:$0xff] %v3113
      %3370 = vst [vmem:[#allocation2 + $0x5e8] sm:$0xff] %v3114
      %3371 = vst [vmem:[#allocation2 + $0x5f0] sm:$0xff] %v3115
      %3372 = vst [vmem:[#allocation2 + $0x5f8] sm:$0xff] %v3116
      %3373 = vst [vmem:[#allocation2 + $0x600] sm:$0xff] %v3117
      %3374 = vst [vmem:[#allocation2 + $0x608] sm:$0xff] %v3118
      %3375 = vst [vmem:[#allocation2 + $0x610] sm:$0xff] %v3119
      %3376 = vst [vmem:[#allocation2 + $0x618] sm:$0xff] %v3120
      %3377 = vst [vmem:[#allocation2 + $0x620] sm:$0xff] %v3121
      %3378 = vst [vmem:[#allocation2 + $0x628] sm:$0xff] %v3122
      %3379 = vst [vmem:[#allocation2 + $0x630] sm:$0xff] %v3123
      %3380 = vst [vmem:[#allocation2 + $0x638] sm:$0xff] %v3124
      %3381 = vst [vmem:[#allocation2 + $0x640] sm:$0xff] %v3125
      %3382 = vst [vmem:[#allocation2 + $0x648] sm:$0xff] %v3126
      %3383 = vst [vmem:[#allocation2 + $0x650] sm:$0xff] %v3127
      %3384 = vst [vmem:[#allocation2 + $0x658] sm:$0xff] %v3128
      %3385 = vst [vmem:[#allocation2 + $0x660] sm:$0xff] %v3129
      %3386 = vst [vmem:[#allocation2 + $0x668] sm:$0xff] %v3130
      %3387 = vst [vmem:[#allocation2 + $0x670] sm:$0xff] %v3131
      %3388 = vst [vmem:[#allocation2 + $0x678] sm:$0xff] %v3132
      %3389 = vst [vmem:[#allocation2 + $0x680] sm:$0xff] %v3133
      %3390 = vst [vmem:[#allocation2 + $0x688] sm:$0xff] %v3134
      %3391 = vst [vmem:[#allocation2 + $0x690] sm:$0xff] %v3135
      %3392 = vst [vmem:[#allocation2 + $0x698] sm:$0xff] %v3136
      %3393 = vst [vmem:[#allocation2 + $0x6a0] sm:$0xff] %v3137
      %3394 = vst [vmem:[#allocation2 + $0x6a8] sm:$0xff] %v3138
      %3395 = vst [vmem:[#allocation2 + $0x6b0] sm:$0xff] %v3139
      %3396 = vst [vmem:[#allocation2 + $0x6b8] sm:$0xff] %v3140
      %3397 = vst [vmem:[#allocation2 + $0x6c0] sm:$0xff] %v3141
      %3398 = vst [vmem:[#allocation2 + $0x6c8] sm:$0xff] %v3142
      %3399 = vst [vmem:[#allocation2 + $0x6d0] sm:$0xff] %v3143
      %3400 = vst [vmem:[#allocation2 + $0x6d8] sm:$0xff] %v3144
      %3401 = vst [vmem:[#allocation2 + $0x6e0] sm:$0xff] %v3145
      %3402 = vst [vmem:[#allocation2 + $0x6e8] sm:$0xff] %v3146
      %3403 = vst [vmem:[#allocation2 + $0x6f0] sm:$0xff] %v3147
      %3404 = vst [vmem:[#allocation2 + $0x6f8] sm:$0xff] %v3148
      %3405 = vst [vmem:[#allocation2 + $0x700] sm:$0xff] %v3149
      %3406 = vst [vmem:[#allocation2 + $0x708] sm:$0xff] %v3150
      %3407 = vst [vmem:[#allocation2 + $0x710] sm:$0xff] %v3151
      %3408 = vst [vmem:[#allocation2 + $0x718] sm:$0xff] %v3152
      %3409 = vst [vmem:[#allocation2 + $0x720] sm:$0xff] %v3153
      %3410 = vst [vmem:[#allocation2 + $0x728] sm:$0xff] %v3154
      %3411 = vst [vmem:[#allocation2 + $0x730] sm:$0xff] %v3155
      %3412 = vst [vmem:[#allocation2 + $0x738] sm:$0xff] %v3156
      %3413 = vst [vmem:[#allocation2 + $0x740] sm:$0xff] %v3157
      %3414 = vst [vmem:[#allocation2 + $0x748] sm:$0xff] %v3158
      %3415 = vst [vmem:[#allocation2 + $0x750] sm:$0xff] %v3159
      %3416 = vst [vmem:[#allocation2 + $0x758] sm:$0xff] %v3160
      %3417 = vst [vmem:[#allocation2 + $0x760] sm:$0xff] %v3161
      %3418 = vst [vmem:[#allocation2 + $0x768] sm:$0xff] %v3162
      %3419 = vst [vmem:[#allocation2 + $0x770] sm:$0xff] %v3163
      %3420 = vst [vmem:[#allocation2 + $0x778] sm:$0xff] %v3164
      %3421 = vst [vmem:[#allocation2 + $0x780] sm:$0xff] %v3165
      %3422 = vst [vmem:[#allocation2 + $0x788] sm:$0xff] %v3166
      %3423 = vst [vmem:[#allocation2 + $0x790] sm:$0xff] %v3167
      %3424 = vst [vmem:[#allocation2 + $0x798] sm:$0xff] %v3168
      %3425 = vst [vmem:[#allocation2 + $0x7a0] sm:$0xff] %v3169
      %3426 = vst [vmem:[#allocation2 + $0x7a8] sm:$0xff] %v3170
      %3427 = vst [vmem:[#allocation2 + $0x7b0] sm:$0xff] %v3171
      %3428 = vst [vmem:[#allocation2 + $0x7b8] sm:$0xff] %v3172
      %3429 = vst [vmem:[#allocation2 + $0x7c0] sm:$0xff] %v3173
      %3430 = vst [vmem:[#allocation2 + $0x7c8] sm:$0xff] %v3174
      %3431 = vst [vmem:[#allocation2 + $0x7d0] sm:$0xff] %v3175
      %3432 = vst [vmem:[#allocation2 + $0x7d8] sm:$0xff] %v3176
      %3433 = vst [vmem:[#allocation2 + $0x7e0] sm:$0xff] %v3177
      %3434 = vst [vmem:[#allocation2 + $0x7e8] sm:$0xff] %v3178
      %3435 = vst [vmem:[#allocation2 + $0x7f0] sm:$0xff] %v3179
      %3436 = vst [vmem:[#allocation2 + $0x7f8] sm:$0xff] %v3180
      // Predicated region
      $region33: #{matmul_g.1} parent=27 // pred_check
        %p3437 = pneg %p264
      $region34: #{matmul_g.1} parent=27 // pred_check_branch
        %3439 = sbr.rel (%p3437) target = $region36
      $region35: #{matmul_g.1} parent=27 // pred_region
        %v3440 = vld [vmem:[#allocation2] sm:$0xff]
        %v3441 = vld [vmem:[#allocation2 + $0x8] sm:$0xff]
        %v3442 = vld [vmem:[#allocation2 + $0x10] sm:$0xff]
        %v3443 = vld [vmem:[#allocation2 + $0x18] sm:$0xff]
        %v3444 = vld [vmem:[#allocation2 + $0x20] sm:$0xff]
        %v3445 = vld [vmem:[#allocation2 + $0x28] sm:$0xff]
        %v3446 = vld [vmem:[#allocation2 + $0x30] sm:$0xff]
        %v3447 = vld [vmem:[#allocation2 + $0x38] sm:$0xff]
        %v3448 = vld [vmem:[#allocation2 + $0x40] sm:$0xff]
        %v3449 = vld [vmem:[#allocation2 + $0x48] sm:$0xff]
        %v3450 = vld [vmem:[#allocation2 + $0x50] sm:$0xff]
        %v3451 = vld [vmem:[#allocation2 + $0x58] sm:$0xff]
        %v3452 = vld [vmem:[#allocation2 + $0x60] sm:$0xff]
        %v3453 = vld [vmem:[#allocation2 + $0x68] sm:$0xff]
        %v3454 = vld [vmem:[#allocation2 + $0x70] sm:$0xff]
        %v3455 = vld [vmem:[#allocation2 + $0x78] sm:$0xff]
        %v3456 = vld [vmem:[#allocation2 + $0x80] sm:$0xff]
        %v3457 = vld [vmem:[#allocation2 + $0x88] sm:$0xff]
        %v3458 = vld [vmem:[#allocation2 + $0x90] sm:$0xff]
        %v3459 = vld [vmem:[#allocation2 + $0x98] sm:$0xff]
        %v3460 = vld [vmem:[#allocation2 + $0xa0] sm:$0xff]
        %v3461 = vld [vmem:[#allocation2 + $0xa8] sm:$0xff]
        %v3462 = vld [vmem:[#allocation2 + $0xb0] sm:$0xff]
        %v3463 = vld [vmem:[#allocation2 + $0xb8] sm:$0xff]
        %v3464 = vld [vmem:[#allocation2 + $0xc0] sm:$0xff]
        %v3465 = vld [vmem:[#allocation2 + $0xc8] sm:$0xff]
        %v3466 = vld [vmem:[#allocation2 + $0xd0] sm:$0xff]
        %v3467 = vld [vmem:[#allocation2 + $0xd8] sm:$0xff]
        %v3468 = vld [vmem:[#allocation2 + $0xe0] sm:$0xff]
        %v3469 = vld [vmem:[#allocation2 + $0xe8] sm:$0xff]
        %v3470 = vld [vmem:[#allocation2 + $0xf0] sm:$0xff]
        %v3471 = vld [vmem:[#allocation2 + $0xf8] sm:$0xff]
        %v3472 = vld [vmem:[#allocation2 + $0x100] sm:$0xff]
        %v3473 = vld [vmem:[#allocation2 + $0x108] sm:$0xff]
        %v3474 = vld [vmem:[#allocation2 + $0x110] sm:$0xff]
        %v3475 = vld [vmem:[#allocation2 + $0x118] sm:$0xff]
        %v3476 = vld [vmem:[#allocation2 + $0x120] sm:$0xff]
        %v3477 = vld [vmem:[#allocation2 + $0x128] sm:$0xff]
        %v3478 = vld [vmem:[#allocation2 + $0x130] sm:$0xff]
        %v3479 = vld [vmem:[#allocation2 + $0x138] sm:$0xff]
        %v3480 = vld [vmem:[#allocation2 + $0x140] sm:$0xff]
        %v3481 = vld [vmem:[#allocation2 + $0x148] sm:$0xff]
        %v3482 = vld [vmem:[#allocation2 + $0x150] sm:$0xff]
        %v3483 = vld [vmem:[#allocation2 + $0x158] sm:$0xff]
        %v3484 = vld [vmem:[#allocation2 + $0x160] sm:$0xff]
        %v3485 = vld [vmem:[#allocation2 + $0x168] sm:$0xff]
        %v3486 = vld [vmem:[#allocation2 + $0x170] sm:$0xff]
        %v3487 = vld [vmem:[#allocation2 + $0x178] sm:$0xff]
        %v3488 = vld [vmem:[#allocation2 + $0x180] sm:$0xff]
        %v3489 = vld [vmem:[#allocation2 + $0x188] sm:$0xff]
        %v3490 = vld [vmem:[#allocation2 + $0x190] sm:$0xff]
        %v3491 = vld [vmem:[#allocation2 + $0x198] sm:$0xff]
        %v3492 = vld [vmem:[#allocation2 + $0x1a0] sm:$0xff]
        %v3493 = vld [vmem:[#allocation2 + $0x1a8] sm:$0xff]
        %v3494 = vld [vmem:[#allocation2 + $0x1b0] sm:$0xff]
        %v3495 = vld [vmem:[#allocation2 + $0x1b8] sm:$0xff]
        %v3496 = vld [vmem:[#allocation2 + $0x1c0] sm:$0xff]
        %v3497 = vld [vmem:[#allocation2 + $0x1c8] sm:$0xff]
        %v3498 = vld [vmem:[#allocation2 + $0x1d0] sm:$0xff]
        %v3499 = vld [vmem:[#allocation2 + $0x1d8] sm:$0xff]
        %v3500 = vld [vmem:[#allocation2 + $0x1e0] sm:$0xff]
        %v3501 = vld [vmem:[#allocation2 + $0x1e8] sm:$0xff]
        %v3502 = vld [vmem:[#allocation2 + $0x1f0] sm:$0xff]
        %v3503 = vld [vmem:[#allocation2 + $0x1f8] sm:$0xff]
        %v3504 = vld [vmem:[#allocation2 + $0x200] sm:$0xff]
        %v3505 = vld [vmem:[#allocation2 + $0x208] sm:$0xff]
        %v3506 = vld [vmem:[#allocation2 + $0x210] sm:$0xff]
        %v3507 = vld [vmem:[#allocation2 + $0x218] sm:$0xff]
        %v3508 = vld [vmem:[#allocation2 + $0x220] sm:$0xff]
        %v3509 = vld [vmem:[#allocation2 + $0x228] sm:$0xff]
        %v3510 = vld [vmem:[#allocation2 + $0x230] sm:$0xff]
        %v3511 = vld [vmem:[#allocation2 + $0x238] sm:$0xff]
        %v3512 = vld [vmem:[#allocation2 + $0x240] sm:$0xff]
        %v3513 = vld [vmem:[#allocation2 + $0x248] sm:$0xff]
        %v3514 = vld [vmem:[#allocation2 + $0x250] sm:$0xff]
        %v3515 = vld [vmem:[#allocation2 + $0x258] sm:$0xff]
        %v3516 = vld [vmem:[#allocation2 + $0x260] sm:$0xff]
        %v3517 = vld [vmem:[#allocation2 + $0x268] sm:$0xff]
        %v3518 = vld [vmem:[#allocation2 + $0x270] sm:$0xff]
        %v3519 = vld [vmem:[#allocation2 + $0x278] sm:$0xff]
        %v3520 = vld [vmem:[#allocation2 + $0x280] sm:$0xff]
        %v3521 = vld [vmem:[#allocation2 + $0x288] sm:$0xff]
        %v3522 = vld [vmem:[#allocation2 + $0x290] sm:$0xff]
        %v3523 = vld [vmem:[#allocation2 + $0x298] sm:$0xff]
        %v3524 = vld [vmem:[#allocation2 + $0x2a0] sm:$0xff]
        %v3525 = vld [vmem:[#allocation2 + $0x2a8] sm:$0xff]
        %v3526 = vld [vmem:[#allocation2 + $0x2b0] sm:$0xff]
        %v3527 = vld [vmem:[#allocation2 + $0x2b8] sm:$0xff]
        %v3528 = vld [vmem:[#allocation2 + $0x2c0] sm:$0xff]
        %v3529 = vld [vmem:[#allocation2 + $0x2c8] sm:$0xff]
        %v3530 = vld [vmem:[#allocation2 + $0x2d0] sm:$0xff]
        %v3531 = vld [vmem:[#allocation2 + $0x2d8] sm:$0xff]
        %v3532 = vld [vmem:[#allocation2 + $0x2e0] sm:$0xff]
        %v3533 = vld [vmem:[#allocation2 + $0x2e8] sm:$0xff]
        %v3534 = vld [vmem:[#allocation2 + $0x2f0] sm:$0xff]
        %v3535 = vld [vmem:[#allocation2 + $0x2f8] sm:$0xff]
        %v3536 = vld [vmem:[#allocation2 + $0x300] sm:$0xff]
        %v3537 = vld [vmem:[#allocation2 + $0x308] sm:$0xff]
        %v3538 = vld [vmem:[#allocation2 + $0x310] sm:$0xff]
        %v3539 = vld [vmem:[#allocation2 + $0x318] sm:$0xff]
        %v3540 = vld [vmem:[#allocation2 + $0x320] sm:$0xff]
        %v3541 = vld [vmem:[#allocation2 + $0x328] sm:$0xff]
        %v3542 = vld [vmem:[#allocation2 + $0x330] sm:$0xff]
        %v3543 = vld [vmem:[#allocation2 + $0x338] sm:$0xff]
        %v3544 = vld [vmem:[#allocation2 + $0x340] sm:$0xff]
        %v3545 = vld [vmem:[#allocation2 + $0x348] sm:$0xff]
        %v3546 = vld [vmem:[#allocation2 + $0x350] sm:$0xff]
        %v3547 = vld [vmem:[#allocation2 + $0x358] sm:$0xff]
        %v3548 = vld [vmem:[#allocation2 + $0x360] sm:$0xff]
        %v3549 = vld [vmem:[#allocation2 + $0x368] sm:$0xff]
        %v3550 = vld [vmem:[#allocation2 + $0x370] sm:$0xff]
        %v3551 = vld [vmem:[#allocation2 + $0x378] sm:$0xff]
        %v3552 = vld [vmem:[#allocation2 + $0x380] sm:$0xff]
        %v3553 = vld [vmem:[#allocation2 + $0x388] sm:$0xff]
        %v3554 = vld [vmem:[#allocation2 + $0x390] sm:$0xff]
        %v3555 = vld [vmem:[#allocation2 + $0x398] sm:$0xff]
        %v3556 = vld [vmem:[#allocation2 + $0x3a0] sm:$0xff]
        %v3557 = vld [vmem:[#allocation2 + $0x3a8] sm:$0xff]
        %v3558 = vld [vmem:[#allocation2 + $0x3b0] sm:$0xff]
        %v3559 = vld [vmem:[#allocation2 + $0x3b8] sm:$0xff]
        %v3560 = vld [vmem:[#allocation2 + $0x3c0] sm:$0xff]
        %v3561 = vld [vmem:[#allocation2 + $0x3c8] sm:$0xff]
        %v3562 = vld [vmem:[#allocation2 + $0x3d0] sm:$0xff]
        %v3563 = vld [vmem:[#allocation2 + $0x3d8] sm:$0xff]
        %v3564 = vld [vmem:[#allocation2 + $0x3e0] sm:$0xff]
        %v3565 = vld [vmem:[#allocation2 + $0x3e8] sm:$0xff]
        %v3566 = vld [vmem:[#allocation2 + $0x3f0] sm:$0xff]
        %v3567 = vld [vmem:[#allocation2 + $0x3f8] sm:$0xff]
        %v3568 = vld [vmem:[#allocation2 + $0x400] sm:$0xff]
        %v3569 = vld [vmem:[#allocation2 + $0x408] sm:$0xff]
        %v3570 = vld [vmem:[#allocation2 + $0x410] sm:$0xff]
        %v3571 = vld [vmem:[#allocation2 + $0x418] sm:$0xff]
        %v3572 = vld [vmem:[#allocation2 + $0x420] sm:$0xff]
        %v3573 = vld [vmem:[#allocation2 + $0x428] sm:$0xff]
        %v3574 = vld [vmem:[#allocation2 + $0x430] sm:$0xff]
        %v3575 = vld [vmem:[#allocation2 + $0x438] sm:$0xff]
        %v3576 = vld [vmem:[#allocation2 + $0x440] sm:$0xff]
        %v3577 = vld [vmem:[#allocation2 + $0x448] sm:$0xff]
        %v3578 = vld [vmem:[#allocation2 + $0x450] sm:$0xff]
        %v3579 = vld [vmem:[#allocation2 + $0x458] sm:$0xff]
        %v3580 = vld [vmem:[#allocation2 + $0x460] sm:$0xff]
        %v3581 = vld [vmem:[#allocation2 + $0x468] sm:$0xff]
        %v3582 = vld [vmem:[#allocation2 + $0x470] sm:$0xff]
        %v3583 = vld [vmem:[#allocation2 + $0x478] sm:$0xff]
        %v3584 = vld [vmem:[#allocation2 + $0x480] sm:$0xff]
        %v3585 = vld [vmem:[#allocation2 + $0x488] sm:$0xff]
        %v3586 = vld [vmem:[#allocation2 + $0x490] sm:$0xff]
        %v3587 = vld [vmem:[#allocation2 + $0x498] sm:$0xff]
        %v3588 = vld [vmem:[#allocation2 + $0x4a0] sm:$0xff]
        %v3589 = vld [vmem:[#allocation2 + $0x4a8] sm:$0xff]
        %v3590 = vld [vmem:[#allocation2 + $0x4b0] sm:$0xff]
        %v3591 = vld [vmem:[#allocation2 + $0x4b8] sm:$0xff]
        %v3592 = vld [vmem:[#allocation2 + $0x4c0] sm:$0xff]
        %v3593 = vld [vmem:[#allocation2 + $0x4c8] sm:$0xff]
        %v3594 = vld [vmem:[#allocation2 + $0x4d0] sm:$0xff]
        %v3595 = vld [vmem:[#allocation2 + $0x4d8] sm:$0xff]
        %v3596 = vld [vmem:[#allocation2 + $0x4e0] sm:$0xff]
        %v3597 = vld [vmem:[#allocation2 + $0x4e8] sm:$0xff]
        %v3598 = vld [vmem:[#allocation2 + $0x4f0] sm:$0xff]
        %v3599 = vld [vmem:[#allocation2 + $0x4f8] sm:$0xff]
        %v3600 = vld [vmem:[#allocation2 + $0x500] sm:$0xff]
        %v3601 = vld [vmem:[#allocation2 + $0x508] sm:$0xff]
        %v3602 = vld [vmem:[#allocation2 + $0x510] sm:$0xff]
        %v3603 = vld [vmem:[#allocation2 + $0x518] sm:$0xff]
        %v3604 = vld [vmem:[#allocation2 + $0x520] sm:$0xff]
        %v3605 = vld [vmem:[#allocation2 + $0x528] sm:$0xff]
        %v3606 = vld [vmem:[#allocation2 + $0x530] sm:$0xff]
        %v3607 = vld [vmem:[#allocation2 + $0x538] sm:$0xff]
        %v3608 = vld [vmem:[#allocation2 + $0x540] sm:$0xff]
        %v3609 = vld [vmem:[#allocation2 + $0x548] sm:$0xff]
        %v3610 = vld [vmem:[#allocation2 + $0x550] sm:$0xff]
        %v3611 = vld [vmem:[#allocation2 + $0x558] sm:$0xff]
        %v3612 = vld [vmem:[#allocation2 + $0x560] sm:$0xff]
        %v3613 = vld [vmem:[#allocation2 + $0x568] sm:$0xff]
        %v3614 = vld [vmem:[#allocation2 + $0x570] sm:$0xff]
        %v3615 = vld [vmem:[#allocation2 + $0x578] sm:$0xff]
        %v3616 = vld [vmem:[#allocation2 + $0x580] sm:$0xff]
        %v3617 = vld [vmem:[#allocation2 + $0x588] sm:$0xff]
        %v3618 = vld [vmem:[#allocation2 + $0x590] sm:$0xff]
        %v3619 = vld [vmem:[#allocation2 + $0x598] sm:$0xff]
        %v3620 = vld [vmem:[#allocation2 + $0x5a0] sm:$0xff]
        %v3621 = vld [vmem:[#allocation2 + $0x5a8] sm:$0xff]
        %v3622 = vld [vmem:[#allocation2 + $0x5b0] sm:$0xff]
        %v3623 = vld [vmem:[#allocation2 + $0x5b8] sm:$0xff]
        %v3624 = vld [vmem:[#allocation2 + $0x5c0] sm:$0xff]
        %v3625 = vld [vmem:[#allocation2 + $0x5c8] sm:$0xff]
        %v3626 = vld [vmem:[#allocation2 + $0x5d0] sm:$0xff]
        %v3627 = vld [vmem:[#allocation2 + $0x5d8] sm:$0xff]
        %v3628 = vld [vmem:[#allocation2 + $0x5e0] sm:$0xff]
        %v3629 = vld [vmem:[#allocation2 + $0x5e8] sm:$0xff]
        %v3630 = vld [vmem:[#allocation2 + $0x5f0] sm:$0xff]
        %v3631 = vld [vmem:[#allocation2 + $0x5f8] sm:$0xff]
        %v3632 = vld [vmem:[#allocation2 + $0x600] sm:$0xff]
        %v3633 = vld [vmem:[#allocation2 + $0x608] sm:$0xff]
        %v3634 = vld [vmem:[#allocation2 + $0x610] sm:$0xff]
        %v3635 = vld [vmem:[#allocation2 + $0x618] sm:$0xff]
        %v3636 = vld [vmem:[#allocation2 + $0x620] sm:$0xff]
        %v3637 = vld [vmem:[#allocation2 + $0x628] sm:$0xff]
        %v3638 = vld [vmem:[#allocation2 + $0x630] sm:$0xff]
        %v3639 = vld [vmem:[#allocation2 + $0x638] sm:$0xff]
        %v3640 = vld [vmem:[#allocation2 + $0x640] sm:$0xff]
        %v3641 = vld [vmem:[#allocation2 + $0x648] sm:$0xff]
        %v3642 = vld [vmem:[#allocation2 + $0x650] sm:$0xff]
        %v3643 = vld [vmem:[#allocation2 + $0x658] sm:$0xff]
        %v3644 = vld [vmem:[#allocation2 + $0x660] sm:$0xff]
        %v3645 = vld [vmem:[#allocation2 + $0x668] sm:$0xff]
        %v3646 = vld [vmem:[#allocation2 + $0x670] sm:$0xff]
        %v3647 = vld [vmem:[#allocation2 + $0x678] sm:$0xff]
        %v3648 = vld [vmem:[#allocation2 + $0x680] sm:$0xff]
        %v3649 = vld [vmem:[#allocation2 + $0x688] sm:$0xff]
        %v3650 = vld [vmem:[#allocation2 + $0x690] sm:$0xff]
        %v3651 = vld [vmem:[#allocation2 + $0x698] sm:$0xff]
        %v3652 = vld [vmem:[#allocation2 + $0x6a0] sm:$0xff]
        %v3653 = vld [vmem:[#allocation2 + $0x6a8] sm:$0xff]
        %v3654 = vld [vmem:[#allocation2 + $0x6b0] sm:$0xff]
        %v3655 = vld [vmem:[#allocation2 + $0x6b8] sm:$0xff]
        %v3656 = vld [vmem:[#allocation2 + $0x6c0] sm:$0xff]
        %v3657 = vld [vmem:[#allocation2 + $0x6c8] sm:$0xff]
        %v3658 = vld [vmem:[#allocation2 + $0x6d0] sm:$0xff]
        %v3659 = vld [vmem:[#allocation2 + $0x6d8] sm:$0xff]
        %v3660 = vld [vmem:[#allocation2 + $0x6e0] sm:$0xff]
        %v3661 = vld [vmem:[#allocation2 + $0x6e8] sm:$0xff]
        %v3662 = vld [vmem:[#allocation2 + $0x6f0] sm:$0xff]
        %v3663 = vld [vmem:[#allocation2 + $0x6f8] sm:$0xff]
        %v3664 = vld [vmem:[#allocation2 + $0x700] sm:$0xff]
        %v3665 = vld [vmem:[#allocation2 + $0x708] sm:$0xff]
        %v3666 = vld [vmem:[#allocation2 + $0x710] sm:$0xff]
        %v3667 = vld [vmem:[#allocation2 + $0x718] sm:$0xff]
        %v3668 = vld [vmem:[#allocation2 + $0x720] sm:$0xff]
        %v3669 = vld [vmem:[#allocation2 + $0x728] sm:$0xff]
        %v3670 = vld [vmem:[#allocation2 + $0x730] sm:$0xff]
        %v3671 = vld [vmem:[#allocation2 + $0x738] sm:$0xff]
        %v3672 = vld [vmem:[#allocation2 + $0x740] sm:$0xff]
        %v3673 = vld [vmem:[#allocation2 + $0x748] sm:$0xff]
        %v3674 = vld [vmem:[#allocation2 + $0x750] sm:$0xff]
        %v3675 = vld [vmem:[#allocation2 + $0x758] sm:$0xff]
        %v3676 = vld [vmem:[#allocation2 + $0x760] sm:$0xff]
        %v3677 = vld [vmem:[#allocation2 + $0x768] sm:$0xff]
        %v3678 = vld [vmem:[#allocation2 + $0x770] sm:$0xff]
        %v3679 = vld [vmem:[#allocation2 + $0x778] sm:$0xff]
        %v3680 = vld [vmem:[#allocation2 + $0x780] sm:$0xff]
        %v3681 = vld [vmem:[#allocation2 + $0x788] sm:$0xff]
        %v3682 = vld [vmem:[#allocation2 + $0x790] sm:$0xff]
        %v3683 = vld [vmem:[#allocation2 + $0x798] sm:$0xff]
        %v3684 = vld [vmem:[#allocation2 + $0x7a0] sm:$0xff]
        %v3685 = vld [vmem:[#allocation2 + $0x7a8] sm:$0xff]
        %v3686 = vld [vmem:[#allocation2 + $0x7b0] sm:$0xff]
        %v3687 = vld [vmem:[#allocation2 + $0x7b8] sm:$0xff]
        %v3688 = vld [vmem:[#allocation2 + $0x7c0] sm:$0xff]
        %v3689 = vld [vmem:[#allocation2 + $0x7c8] sm:$0xff]
        %v3690 = vld [vmem:[#allocation2 + $0x7d0] sm:$0xff]
        %v3691 = vld [vmem:[#allocation2 + $0x7d8] sm:$0xff]
        %v3692 = vld [vmem:[#allocation2 + $0x7e0] sm:$0xff]
        %v3693 = vld [vmem:[#allocation2 + $0x7e8] sm:$0xff]
        %v3694 = vld [vmem:[#allocation2 + $0x7f0] sm:$0xff]
        %v3695 = vld [vmem:[#allocation2 + $0x7f8] sm:$0xff]
        %vm3696 = vcmp.ge.f32.partialorder %v3440, 0.0
        %vm3697 = vcmp.ge.f32.partialorder %v3441, 0.0
        %vm3698 = vcmp.ge.f32.partialorder %v3442, 0.0
        %vm3699 = vcmp.ge.f32.partialorder %v3443, 0.0
        %vm3700 = vcmp.ge.f32.partialorder %v3444, 0.0
        %vm3701 = vcmp.ge.f32.partialorder %v3445, 0.0
        %vm3702 = vcmp.ge.f32.partialorder %v3446, 0.0
        %vm3703 = vcmp.ge.f32.partialorder %v3447, 0.0
        %vm3704 = vcmp.ge.f32.partialorder %v3448, 0.0
        %vm3705 = vcmp.ge.f32.partialorder %v3449, 0.0
        %vm3706 = vcmp.ge.f32.partialorder %v3450, 0.0
        %vm3707 = vcmp.ge.f32.partialorder %v3451, 0.0
        %vm3708 = vcmp.ge.f32.partialorder %v3452, 0.0
        %vm3709 = vcmp.ge.f32.partialorder %v3453, 0.0
        %vm3710 = vcmp.ge.f32.partialorder %v3454, 0.0
        %vm3711 = vcmp.ge.f32.partialorder %v3455, 0.0
        %vm3712 = vcmp.ge.f32.partialorder %v3456, 0.0
        %vm3713 = vcmp.ge.f32.partialorder %v3457, 0.0
        %vm3714 = vcmp.ge.f32.partialorder %v3458, 0.0
        %vm3715 = vcmp.ge.f32.partialorder %v3459, 0.0
        %vm3716 = vcmp.ge.f32.partialorder %v3460, 0.0
        %vm3717 = vcmp.ge.f32.partialorder %v3461, 0.0
        %vm3718 = vcmp.ge.f32.partialorder %v3462, 0.0
        %vm3719 = vcmp.ge.f32.partialorder %v3463, 0.0
        %vm3720 = vcmp.ge.f32.partialorder %v3464, 0.0
        %vm3721 = vcmp.ge.f32.partialorder %v3465, 0.0
        %vm3722 = vcmp.ge.f32.partialorder %v3466, 0.0
        %vm3723 = vcmp.ge.f32.partialorder %v3467, 0.0
        %vm3724 = vcmp.ge.f32.partialorder %v3468, 0.0
        %vm3725 = vcmp.ge.f32.partialorder %v3469, 0.0
        %vm3726 = vcmp.ge.f32.partialorder %v3470, 0.0
        %vm3727 = vcmp.ge.f32.partialorder %v3471, 0.0
        %vm3728 = vcmp.ge.f32.partialorder %v3472, 0.0
        %vm3729 = vcmp.ge.f32.partialorder %v3473, 0.0
        %vm3730 = vcmp.ge.f32.partialorder %v3474, 0.0
        %vm3731 = vcmp.ge.f32.partialorder %v3475, 0.0
        %vm3732 = vcmp.ge.f32.partialorder %v3476, 0.0
        %vm3733 = vcmp.ge.f32.partialorder %v3477, 0.0
        %vm3734 = vcmp.ge.f32.partialorder %v3478, 0.0
        %vm3735 = vcmp.ge.f32.partialorder %v3479, 0.0
        %vm3736 = vcmp.ge.f32.partialorder %v3480, 0.0
        %vm3737 = vcmp.ge.f32.partialorder %v3481, 0.0
        %vm3738 = vcmp.ge.f32.partialorder %v3482, 0.0
        %vm3739 = vcmp.ge.f32.partialorder %v3483, 0.0
        %vm3740 = vcmp.ge.f32.partialorder %v3484, 0.0
        %vm3741 = vcmp.ge.f32.partialorder %v3485, 0.0
        %vm3742 = vcmp.ge.f32.partialorder %v3486, 0.0
        %vm3743 = vcmp.ge.f32.partialorder %v3487, 0.0
        %vm3744 = vcmp.ge.f32.partialorder %v3488, 0.0
        %vm3745 = vcmp.ge.f32.partialorder %v3489, 0.0
        %vm3746 = vcmp.ge.f32.partialorder %v3490, 0.0
        %vm3747 = vcmp.ge.f32.partialorder %v3491, 0.0
        %vm3748 = vcmp.ge.f32.partialorder %v3492, 0.0
        %vm3749 = vcmp.ge.f32.partialorder %v3493, 0.0
        %vm3750 = vcmp.ge.f32.partialorder %v3494, 0.0
        %vm3751 = vcmp.ge.f32.partialorder %v3495, 0.0
        %vm3752 = vcmp.ge.f32.partialorder %v3496, 0.0
        %vm3753 = vcmp.ge.f32.partialorder %v3497, 0.0
        %vm3754 = vcmp.ge.f32.partialorder %v3498, 0.0
        %vm3755 = vcmp.ge.f32.partialorder %v3499, 0.0
        %vm3756 = vcmp.ge.f32.partialorder %v3500, 0.0
        %vm3757 = vcmp.ge.f32.partialorder %v3501, 0.0
        %vm3758 = vcmp.ge.f32.partialorder %v3502, 0.0
        %vm3759 = vcmp.ge.f32.partialorder %v3503, 0.0
        %vm3760 = vcmp.ge.f32.partialorder %v3504, 0.0
        %vm3761 = vcmp.ge.f32.partialorder %v3505, 0.0
        %vm3762 = vcmp.ge.f32.partialorder %v3506, 0.0
        %vm3763 = vcmp.ge.f32.partialorder %v3507, 0.0
        %vm3764 = vcmp.ge.f32.partialorder %v3508, 0.0
        %vm3765 = vcmp.ge.f32.partialorder %v3509, 0.0
        %vm3766 = vcmp.ge.f32.partialorder %v3510, 0.0
        %vm3767 = vcmp.ge.f32.partialorder %v3511, 0.0
        %vm3768 = vcmp.ge.f32.partialorder %v3512, 0.0
        %vm3769 = vcmp.ge.f32.partialorder %v3513, 0.0
        %vm3770 = vcmp.ge.f32.partialorder %v3514, 0.0
        %vm3771 = vcmp.ge.f32.partialorder %v3515, 0.0
        %vm3772 = vcmp.ge.f32.partialorder %v3516, 0.0
        %vm3773 = vcmp.ge.f32.partialorder %v3517, 0.0
        %vm3774 = vcmp.ge.f32.partialorder %v3518, 0.0
        %vm3775 = vcmp.ge.f32.partialorder %v3519, 0.0
        %vm3776 = vcmp.ge.f32.partialorder %v3520, 0.0
        %vm3777 = vcmp.ge.f32.partialorder %v3521, 0.0
        %vm3778 = vcmp.ge.f32.partialorder %v3522, 0.0
        %vm3779 = vcmp.ge.f32.partialorder %v3523, 0.0
        %vm3780 = vcmp.ge.f32.partialorder %v3524, 0.0
        %vm3781 = vcmp.ge.f32.partialorder %v3525, 0.0
        %vm3782 = vcmp.ge.f32.partialorder %v3526, 0.0
        %vm3783 = vcmp.ge.f32.partialorder %v3527, 0.0
        %vm3784 = vcmp.ge.f32.partialorder %v3528, 0.0
        %vm3785 = vcmp.ge.f32.partialorder %v3529, 0.0
        %vm3786 = vcmp.ge.f32.partialorder %v3530, 0.0
        %vm3787 = vcmp.ge.f32.partialorder %v3531, 0.0
        %vm3788 = vcmp.ge.f32.partialorder %v3532, 0.0
        %vm3789 = vcmp.ge.f32.partialorder %v3533, 0.0
        %vm3790 = vcmp.ge.f32.partialorder %v3534, 0.0
        %vm3791 = vcmp.ge.f32.partialorder %v3535, 0.0
        %vm3792 = vcmp.ge.f32.partialorder %v3536, 0.0
        %vm3793 = vcmp.ge.f32.partialorder %v3537, 0.0
        %vm3794 = vcmp.ge.f32.partialorder %v3538, 0.0
        %vm3795 = vcmp.ge.f32.partialorder %v3539, 0.0
        %vm3796 = vcmp.ge.f32.partialorder %v3540, 0.0
        %vm3797 = vcmp.ge.f32.partialorder %v3541, 0.0
        %vm3798 = vcmp.ge.f32.partialorder %v3542, 0.0
        %vm3799 = vcmp.ge.f32.partialorder %v3543, 0.0
        %vm3800 = vcmp.ge.f32.partialorder %v3544, 0.0
        %vm3801 = vcmp.ge.f32.partialorder %v3545, 0.0
        %vm3802 = vcmp.ge.f32.partialorder %v3546, 0.0
        %vm3803 = vcmp.ge.f32.partialorder %v3547, 0.0
        %vm3804 = vcmp.ge.f32.partialorder %v3548, 0.0
        %vm3805 = vcmp.ge.f32.partialorder %v3549, 0.0
        %vm3806 = vcmp.ge.f32.partialorder %v3550, 0.0
        %vm3807 = vcmp.ge.f32.partialorder %v3551, 0.0
        %vm3808 = vcmp.ge.f32.partialorder %v3552, 0.0
        %vm3809 = vcmp.ge.f32.partialorder %v3553, 0.0
        %vm3810 = vcmp.ge.f32.partialorder %v3554, 0.0
        %vm3811 = vcmp.ge.f32.partialorder %v3555, 0.0
        %vm3812 = vcmp.ge.f32.partialorder %v3556, 0.0
        %vm3813 = vcmp.ge.f32.partialorder %v3557, 0.0
        %vm3814 = vcmp.ge.f32.partialorder %v3558, 0.0
        %vm3815 = vcmp.ge.f32.partialorder %v3559, 0.0
        %vm3816 = vcmp.ge.f32.partialorder %v3560, 0.0
        %vm3817 = vcmp.ge.f32.partialorder %v3561, 0.0
        %vm3818 = vcmp.ge.f32.partialorder %v3562, 0.0
        %vm3819 = vcmp.ge.f32.partialorder %v3563, 0.0
        %vm3820 = vcmp.ge.f32.partialorder %v3564, 0.0
        %vm3821 = vcmp.ge.f32.partialorder %v3565, 0.0
        %vm3822 = vcmp.ge.f32.partialorder %v3566, 0.0
        %vm3823 = vcmp.ge.f32.partialorder %v3567, 0.0
        %vm3824 = vcmp.ge.f32.partialorder %v3568, 0.0
        %vm3825 = vcmp.ge.f32.partialorder %v3569, 0.0
        %vm3826 = vcmp.ge.f32.partialorder %v3570, 0.0
        %vm3827 = vcmp.ge.f32.partialorder %v3571, 0.0
        %vm3828 = vcmp.ge.f32.partialorder %v3572, 0.0
        %vm3829 = vcmp.ge.f32.partialorder %v3573, 0.0
        %vm3830 = vcmp.ge.f32.partialorder %v3574, 0.0
        %vm3831 = vcmp.ge.f32.partialorder %v3575, 0.0
        %vm3832 = vcmp.ge.f32.partialorder %v3576, 0.0
        %vm3833 = vcmp.ge.f32.partialorder %v3577, 0.0
        %vm3834 = vcmp.ge.f32.partialorder %v3578, 0.0
        %vm3835 = vcmp.ge.f32.partialorder %v3579, 0.0
        %vm3836 = vcmp.ge.f32.partialorder %v3580, 0.0
        %vm3837 = vcmp.ge.f32.partialorder %v3581, 0.0
        %vm3838 = vcmp.ge.f32.partialorder %v3582, 0.0
        %vm3839 = vcmp.ge.f32.partialorder %v3583, 0.0
        %vm3840 = vcmp.ge.f32.partialorder %v3584, 0.0
        %vm3841 = vcmp.ge.f32.partialorder %v3585, 0.0
        %vm3842 = vcmp.ge.f32.partialorder %v3586, 0.0
        %vm3843 = vcmp.ge.f32.partialorder %v3587, 0.0
        %vm3844 = vcmp.ge.f32.partialorder %v3588, 0.0
        %vm3845 = vcmp.ge.f32.partialorder %v3589, 0.0
        %vm3846 = vcmp.ge.f32.partialorder %v3590, 0.0
        %vm3847 = vcmp.ge.f32.partialorder %v3591, 0.0
        %vm3848 = vcmp.ge.f32.partialorder %v3592, 0.0
        %vm3849 = vcmp.ge.f32.partialorder %v3593, 0.0
        %vm3850 = vcmp.ge.f32.partialorder %v3594, 0.0
        %vm3851 = vcmp.ge.f32.partialorder %v3595, 0.0
        %vm3852 = vcmp.ge.f32.partialorder %v3596, 0.0
        %vm3853 = vcmp.ge.f32.partialorder %v3597, 0.0
        %vm3854 = vcmp.ge.f32.partialorder %v3598, 0.0
        %vm3855 = vcmp.ge.f32.partialorder %v3599, 0.0
        %vm3856 = vcmp.ge.f32.partialorder %v3600, 0.0
        %vm3857 = vcmp.ge.f32.partialorder %v3601, 0.0
        %vm3858 = vcmp.ge.f32.partialorder %v3602, 0.0
        %vm3859 = vcmp.ge.f32.partialorder %v3603, 0.0
        %vm3860 = vcmp.ge.f32.partialorder %v3604, 0.0
        %vm3861 = vcmp.ge.f32.partialorder %v3605, 0.0
        %vm3862 = vcmp.ge.f32.partialorder %v3606, 0.0
        %vm3863 = vcmp.ge.f32.partialorder %v3607, 0.0
        %vm3864 = vcmp.ge.f32.partialorder %v3608, 0.0
        %vm3865 = vcmp.ge.f32.partialorder %v3609, 0.0
        %vm3866 = vcmp.ge.f32.partialorder %v3610, 0.0
        %vm3867 = vcmp.ge.f32.partialorder %v3611, 0.0
        %vm3868 = vcmp.ge.f32.partialorder %v3612, 0.0
        %vm3869 = vcmp.ge.f32.partialorder %v3613, 0.0
        %vm3870 = vcmp.ge.f32.partialorder %v3614, 0.0
        %vm3871 = vcmp.ge.f32.partialorder %v3615, 0.0
        %vm3872 = vcmp.ge.f32.partialorder %v3616, 0.0
        %vm3873 = vcmp.ge.f32.partialorder %v3617, 0.0
        %vm3874 = vcmp.ge.f32.partialorder %v3618, 0.0
        %vm3875 = vcmp.ge.f32.partialorder %v3619, 0.0
        %vm3876 = vcmp.ge.f32.partialorder %v3620, 0.0
        %vm3877 = vcmp.ge.f32.partialorder %v3621, 0.0
        %vm3878 = vcmp.ge.f32.partialorder %v3622, 0.0
        %vm3879 = vcmp.ge.f32.partialorder %v3623, 0.0
        %vm3880 = vcmp.ge.f32.partialorder %v3624, 0.0
        %vm3881 = vcmp.ge.f32.partialorder %v3625, 0.0
        %vm3882 = vcmp.ge.f32.partialorder %v3626, 0.0
        %vm3883 = vcmp.ge.f32.partialorder %v3627, 0.0
        %vm3884 = vcmp.ge.f32.partialorder %v3628, 0.0
        %vm3885 = vcmp.ge.f32.partialorder %v3629, 0.0
        %vm3886 = vcmp.ge.f32.partialorder %v3630, 0.0
        %vm3887 = vcmp.ge.f32.partialorder %v3631, 0.0
        %vm3888 = vcmp.ge.f32.partialorder %v3632, 0.0
        %vm3889 = vcmp.ge.f32.partialorder %v3633, 0.0
        %vm3890 = vcmp.ge.f32.partialorder %v3634, 0.0
        %vm3891 = vcmp.ge.f32.partialorder %v3635, 0.0
        %vm3892 = vcmp.ge.f32.partialorder %v3636, 0.0
        %vm3893 = vcmp.ge.f32.partialorder %v3637, 0.0
        %vm3894 = vcmp.ge.f32.partialorder %v3638, 0.0
        %vm3895 = vcmp.ge.f32.partialorder %v3639, 0.0
        %vm3896 = vcmp.ge.f32.partialorder %v3640, 0.0
        %vm3897 = vcmp.ge.f32.partialorder %v3641, 0.0
        %vm3898 = vcmp.ge.f32.partialorder %v3642, 0.0
        %vm3899 = vcmp.ge.f32.partialorder %v3643, 0.0
        %vm3900 = vcmp.ge.f32.partialorder %v3644, 0.0
        %vm3901 = vcmp.ge.f32.partialorder %v3645, 0.0
        %vm3902 = vcmp.ge.f32.partialorder %v3646, 0.0
        %vm3903 = vcmp.ge.f32.partialorder %v3647, 0.0
        %vm3904 = vcmp.ge.f32.partialorder %v3648, 0.0
        %vm3905 = vcmp.ge.f32.partialorder %v3649, 0.0
        %vm3906 = vcmp.ge.f32.partialorder %v3650, 0.0
        %vm3907 = vcmp.ge.f32.partialorder %v3651, 0.0
        %vm3908 = vcmp.ge.f32.partialorder %v3652, 0.0
        %vm3909 = vcmp.ge.f32.partialorder %v3653, 0.0
        %vm3910 = vcmp.ge.f32.partialorder %v3654, 0.0
        %vm3911 = vcmp.ge.f32.partialorder %v3655, 0.0
        %vm3912 = vcmp.ge.f32.partialorder %v3656, 0.0
        %vm3913 = vcmp.ge.f32.partialorder %v3657, 0.0
        %vm3914 = vcmp.ge.f32.partialorder %v3658, 0.0
        %vm3915 = vcmp.ge.f32.partialorder %v3659, 0.0
        %vm3916 = vcmp.ge.f32.partialorder %v3660, 0.0
        %vm3917 = vcmp.ge.f32.partialorder %v3661, 0.0
        %vm3918 = vcmp.ge.f32.partialorder %v3662, 0.0
        %vm3919 = vcmp.ge.f32.partialorder %v3663, 0.0
        %vm3920 = vcmp.ge.f32.partialorder %v3664, 0.0
        %vm3921 = vcmp.ge.f32.partialorder %v3665, 0.0
        %vm3922 = vcmp.ge.f32.partialorder %v3666, 0.0
        %vm3923 = vcmp.ge.f32.partialorder %v3667, 0.0
        %vm3924 = vcmp.ge.f32.partialorder %v3668, 0.0
        %vm3925 = vcmp.ge.f32.partialorder %v3669, 0.0
        %vm3926 = vcmp.ge.f32.partialorder %v3670, 0.0
        %vm3927 = vcmp.ge.f32.partialorder %v3671, 0.0
        %vm3928 = vcmp.ge.f32.partialorder %v3672, 0.0
        %vm3929 = vcmp.ge.f32.partialorder %v3673, 0.0
        %vm3930 = vcmp.ge.f32.partialorder %v3674, 0.0
        %vm3931 = vcmp.ge.f32.partialorder %v3675, 0.0
        %vm3932 = vcmp.ge.f32.partialorder %v3676, 0.0
        %vm3933 = vcmp.ge.f32.partialorder %v3677, 0.0
        %vm3934 = vcmp.ge.f32.partialorder %v3678, 0.0
        %vm3935 = vcmp.ge.f32.partialorder %v3679, 0.0
        %vm3936 = vcmp.ge.f32.partialorder %v3680, 0.0
        %vm3937 = vcmp.ge.f32.partialorder %v3681, 0.0
        %vm3938 = vcmp.ge.f32.partialorder %v3682, 0.0
        %vm3939 = vcmp.ge.f32.partialorder %v3683, 0.0
        %vm3940 = vcmp.ge.f32.partialorder %v3684, 0.0
        %vm3941 = vcmp.ge.f32.partialorder %v3685, 0.0
        %vm3942 = vcmp.ge.f32.partialorder %v3686, 0.0
        %vm3943 = vcmp.ge.f32.partialorder %v3687, 0.0
        %vm3944 = vcmp.ge.f32.partialorder %v3688, 0.0
        %vm3945 = vcmp.ge.f32.partialorder %v3689, 0.0
        %vm3946 = vcmp.ge.f32.partialorder %v3690, 0.0
        %vm3947 = vcmp.ge.f32.partialorder %v3691, 0.0
        %vm3948 = vcmp.ge.f32.partialorder %v3692, 0.0
        %vm3949 = vcmp.ge.f32.partialorder %v3693, 0.0
        %vm3950 = vcmp.ge.f32.partialorder %v3694, 0.0
        %vm3951 = vcmp.ge.f32.partialorder %v3695, 0.0
        %v3952 = vmul.f32 %v3440, 0.2
        %v3953 = vmul.f32 %v3441, 0.2
        %v3954 = vmul.f32 %v3442, 0.2
        %v3955 = vmul.f32 %v3443, 0.2
        %v3956 = vmul.f32 %v3444, 0.2
        %v3957 = vmul.f32 %v3445, 0.2
        %v3958 = vmul.f32 %v3446, 0.2
        %v3959 = vmul.f32 %v3447, 0.2
        %v3960 = vmul.f32 %v3448, 0.2
        %v3961 = vmul.f32 %v3449, 0.2
        %v3962 = vmul.f32 %v3450, 0.2
        %v3963 = vmul.f32 %v3451, 0.2
        %v3964 = vmul.f32 %v3452, 0.2
        %v3965 = vmul.f32 %v3453, 0.2
        %v3966 = vmul.f32 %v3454, 0.2
        %v3967 = vmul.f32 %v3455, 0.2
        %v3968 = vmul.f32 %v3456, 0.2
        %v3969 = vmul.f32 %v3457, 0.2
        %v3970 = vmul.f32 %v3458, 0.2
        %v3971 = vmul.f32 %v3459, 0.2
        %v3972 = vmul.f32 %v3460, 0.2
        %v3973 = vmul.f32 %v3461, 0.2
        %v3974 = vmul.f32 %v3462, 0.2
        %v3975 = vmul.f32 %v3463, 0.2
        %v3976 = vmul.f32 %v3464, 0.2
        %v3977 = vmul.f32 %v3465, 0.2
        %v3978 = vmul.f32 %v3466, 0.2
        %v3979 = vmul.f32 %v3467, 0.2
        %v3980 = vmul.f32 %v3468, 0.2
        %v3981 = vmul.f32 %v3469, 0.2
        %v3982 = vmul.f32 %v3470, 0.2
        %v3983 = vmul.f32 %v3471, 0.2
        %v3984 = vmul.f32 %v3472, 0.2
        %v3985 = vmul.f32 %v3473, 0.2
        %v3986 = vmul.f32 %v3474, 0.2
        %v3987 = vmul.f32 %v3475, 0.2
        %v3988 = vmul.f32 %v3476, 0.2
        %v3989 = vmul.f32 %v3477, 0.2
        %v3990 = vmul.f32 %v3478, 0.2
        %v3991 = vmul.f32 %v3479, 0.2
        %v3992 = vmul.f32 %v3480, 0.2
        %v3993 = vmul.f32 %v3481, 0.2
        %v3994 = vmul.f32 %v3482, 0.2
        %v3995 = vmul.f32 %v3483, 0.2
        %v3996 = vmul.f32 %v3484, 0.2
        %v3997 = vmul.f32 %v3485, 0.2
        %v3998 = vmul.f32 %v3486, 0.2
        %v3999 = vmul.f32 %v3487, 0.2
        %v4000 = vmul.f32 %v3488, 0.2
        %v4001 = vmul.f32 %v3489, 0.2
        %v4002 = vmul.f32 %v3490, 0.2
        %v4003 = vmul.f32 %v3491, 0.2
        %v4004 = vmul.f32 %v3492, 0.2
        %v4005 = vmul.f32 %v3493, 0.2
        %v4006 = vmul.f32 %v3494, 0.2
        %v4007 = vmul.f32 %v3495, 0.2
        %v4008 = vmul.f32 %v3496, 0.2
        %v4009 = vmul.f32 %v3497, 0.2
        %v4010 = vmul.f32 %v3498, 0.2
        %v4011 = vmul.f32 %v3499, 0.2
        %v4012 = vmul.f32 %v3500, 0.2
        %v4013 = vmul.f32 %v3501, 0.2
        %v4014 = vmul.f32 %v3502, 0.2
        %v4015 = vmul.f32 %v3503, 0.2
        %v4016 = vmul.f32 %v3504, 0.2
        %v4017 = vmul.f32 %v3505, 0.2
        %v4018 = vmul.f32 %v3506, 0.2
        %v4019 = vmul.f32 %v3507, 0.2
        %v4020 = vmul.f32 %v3508, 0.2
        %v4021 = vmul.f32 %v3509, 0.2
        %v4022 = vmul.f32 %v3510, 0.2
        %v4023 = vmul.f32 %v3511, 0.2
        %v4024 = vmul.f32 %v3512, 0.2
        %v4025 = vmul.f32 %v3513, 0.2
        %v4026 = vmul.f32 %v3514, 0.2
        %v4027 = vmul.f32 %v3515, 0.2
        %v4028 = vmul.f32 %v3516, 0.2
        %v4029 = vmul.f32 %v3517, 0.2
        %v4030 = vmul.f32 %v3518, 0.2
        %v4031 = vmul.f32 %v3519, 0.2
        %v4032 = vmul.f32 %v3520, 0.2
        %v4033 = vmul.f32 %v3521, 0.2
        %v4034 = vmul.f32 %v3522, 0.2
        %v4035 = vmul.f32 %v3523, 0.2
        %v4036 = vmul.f32 %v3524, 0.2
        %v4037 = vmul.f32 %v3525, 0.2
        %v4038 = vmul.f32 %v3526, 0.2
        %v4039 = vmul.f32 %v3527, 0.2
        %v4040 = vmul.f32 %v3528, 0.2
        %v4041 = vmul.f32 %v3529, 0.2
        %v4042 = vmul.f32 %v3530, 0.2
        %v4043 = vmul.f32 %v3531, 0.2
        %v4044 = vmul.f32 %v3532, 0.2
        %v4045 = vmul.f32 %v3533, 0.2
        %v4046 = vmul.f32 %v3534, 0.2
        %v4047 = vmul.f32 %v3535, 0.2
        %v4048 = vmul.f32 %v3536, 0.2
        %v4049 = vmul.f32 %v3537, 0.2
        %v4050 = vmul.f32 %v3538, 0.2
        %v4051 = vmul.f32 %v3539, 0.2
        %v4052 = vmul.f32 %v3540, 0.2
        %v4053 = vmul.f32 %v3541, 0.2
        %v4054 = vmul.f32 %v3542, 0.2
        %v4055 = vmul.f32 %v3543, 0.2
        %v4056 = vmul.f32 %v3544, 0.2
        %v4057 = vmul.f32 %v3545, 0.2
        %v4058 = vmul.f32 %v3546, 0.2
        %v4059 = vmul.f32 %v3547, 0.2
        %v4060 = vmul.f32 %v3548, 0.2
        %v4061 = vmul.f32 %v3549, 0.2
        %v4062 = vmul.f32 %v3550, 0.2
        %v4063 = vmul.f32 %v3551, 0.2
        %v4064 = vmul.f32 %v3552, 0.2
        %v4065 = vmul.f32 %v3553, 0.2
        %v4066 = vmul.f32 %v3554, 0.2
        %v4067 = vmul.f32 %v3555, 0.2
        %v4068 = vmul.f32 %v3556, 0.2
        %v4069 = vmul.f32 %v3557, 0.2
        %v4070 = vmul.f32 %v3558, 0.2
        %v4071 = vmul.f32 %v3559, 0.2
        %v4072 = vmul.f32 %v3560, 0.2
        %v4073 = vmul.f32 %v3561, 0.2
        %v4074 = vmul.f32 %v3562, 0.2
        %v4075 = vmul.f32 %v3563, 0.2
        %v4076 = vmul.f32 %v3564, 0.2
        %v4077 = vmul.f32 %v3565, 0.2
        %v4078 = vmul.f32 %v3566, 0.2
        %v4079 = vmul.f32 %v3567, 0.2
        %v4080 = vmul.f32 %v3568, 0.2
        %v4081 = vmul.f32 %v3569, 0.2
        %v4082 = vmul.f32 %v3570, 0.2
        %v4083 = vmul.f32 %v3571, 0.2
        %v4084 = vmul.f32 %v3572, 0.2
        %v4085 = vmul.f32 %v3573, 0.2
        %v4086 = vmul.f32 %v3574, 0.2
        %v4087 = vmul.f32 %v3575, 0.2
        %v4088 = vmul.f32 %v3576, 0.2
        %v4089 = vmul.f32 %v3577, 0.2
        %v4090 = vmul.f32 %v3578, 0.2
        %v4091 = vmul.f32 %v3579, 0.2
        %v4092 = vmul.f32 %v3580, 0.2
        %v4093 = vmul.f32 %v3581, 0.2
        %v4094 = vmul.f32 %v3582, 0.2
        %v4095 = vmul.f32 %v3583, 0.2
        %v4096 = vmul.f32 %v3584, 0.2
        %v4097 = vmul.f32 %v3585, 0.2
        %v4098 = vmul.f32 %v3586, 0.2
        %v4099 = vmul.f32 %v3587, 0.2
        %v4100 = vmul.f32 %v3588, 0.2
        %v4101 = vmul.f32 %v3589, 0.2
        %v4102 = vmul.f32 %v3590, 0.2
        %v4103 = vmul.f32 %v3591, 0.2
        %v4104 = vmul.f32 %v3592, 0.2
        %v4105 = vmul.f32 %v3593, 0.2
        %v4106 = vmul.f32 %v3594, 0.2
        %v4107 = vmul.f32 %v3595, 0.2
        %v4108 = vmul.f32 %v3596, 0.2
        %v4109 = vmul.f32 %v3597, 0.2
        %v4110 = vmul.f32 %v3598, 0.2
        %v4111 = vmul.f32 %v3599, 0.2
        %v4112 = vmul.f32 %v3600, 0.2
        %v4113 = vmul.f32 %v3601, 0.2
        %v4114 = vmul.f32 %v3602, 0.2
        %v4115 = vmul.f32 %v3603, 0.2
        %v4116 = vmul.f32 %v3604, 0.2
        %v4117 = vmul.f32 %v3605, 0.2
        %v4118 = vmul.f32 %v3606, 0.2
        %v4119 = vmul.f32 %v3607, 0.2
        %v4120 = vmul.f32 %v3608, 0.2
        %v4121 = vmul.f32 %v3609, 0.2
        %v4122 = vmul.f32 %v3610, 0.2
        %v4123 = vmul.f32 %v3611, 0.2
        %v4124 = vmul.f32 %v3612, 0.2
        %v4125 = vmul.f32 %v3613, 0.2
        %v4126 = vmul.f32 %v3614, 0.2
        %v4127 = vmul.f32 %v3615, 0.2
        %v4128 = vmul.f32 %v3616, 0.2
        %v4129 = vmul.f32 %v3617, 0.2
        %v4130 = vmul.f32 %v3618, 0.2
        %v4131 = vmul.f32 %v3619, 0.2
        %v4132 = vmul.f32 %v3620, 0.2
        %v4133 = vmul.f32 %v3621, 0.2
        %v4134 = vmul.f32 %v3622, 0.2
        %v4135 = vmul.f32 %v3623, 0.2
        %v4136 = vmul.f32 %v3624, 0.2
        %v4137 = vmul.f32 %v3625, 0.2
        %v4138 = vmul.f32 %v3626, 0.2
        %v4139 = vmul.f32 %v3627, 0.2
        %v4140 = vmul.f32 %v3628, 0.2
        %v4141 = vmul.f32 %v3629, 0.2
        %v4142 = vmul.f32 %v3630, 0.2
        %v4143 = vmul.f32 %v3631, 0.2
        %v4144 = vmul.f32 %v3632, 0.2
        %v4145 = vmul.f32 %v3633, 0.2
        %v4146 = vmul.f32 %v3634, 0.2
        %v4147 = vmul.f32 %v3635, 0.2
        %v4148 = vmul.f32 %v3636, 0.2
        %v4149 = vmul.f32 %v3637, 0.2
        %v4150 = vmul.f32 %v3638, 0.2
        %v4151 = vmul.f32 %v3639, 0.2
        %v4152 = vmul.f32 %v3640, 0.2
        %v4153 = vmul.f32 %v3641, 0.2
        %v4154 = vmul.f32 %v3642, 0.2
        %v4155 = vmul.f32 %v3643, 0.2
        %v4156 = vmul.f32 %v3644, 0.2
        %v4157 = vmul.f32 %v3645, 0.2
        %v4158 = vmul.f32 %v3646, 0.2
        %v4159 = vmul.f32 %v3647, 0.2
        %v4160 = vmul.f32 %v3648, 0.2
        %v4161 = vmul.f32 %v3649, 0.2
        %v4162 = vmul.f32 %v3650, 0.2
        %v4163 = vmul.f32 %v3651, 0.2
        %v4164 = vmul.f32 %v3652, 0.2
        %v4165 = vmul.f32 %v3653, 0.2
        %v4166 = vmul.f32 %v3654, 0.2
        %v4167 = vmul.f32 %v3655, 0.2
        %v4168 = vmul.f32 %v3656, 0.2
        %v4169 = vmul.f32 %v3657, 0.2
        %v4170 = vmul.f32 %v3658, 0.2
        %v4171 = vmul.f32 %v3659, 0.2
        %v4172 = vmul.f32 %v3660, 0.2
        %v4173 = vmul.f32 %v3661, 0.2
        %v4174 = vmul.f32 %v3662, 0.2
        %v4175 = vmul.f32 %v3663, 0.2
        %v4176 = vmul.f32 %v3664, 0.2
        %v4177 = vmul.f32 %v3665, 0.2
        %v4178 = vmul.f32 %v3666, 0.2
        %v4179 = vmul.f32 %v3667, 0.2
        %v4180 = vmul.f32 %v3668, 0.2
        %v4181 = vmul.f32 %v3669, 0.2
        %v4182 = vmul.f32 %v3670, 0.2
        %v4183 = vmul.f32 %v3671, 0.2
        %v4184 = vmul.f32 %v3672, 0.2
        %v4185 = vmul.f32 %v3673, 0.2
        %v4186 = vmul.f32 %v3674, 0.2
        %v4187 = vmul.f32 %v3675, 0.2
        %v4188 = vmul.f32 %v3676, 0.2
        %v4189 = vmul.f32 %v3677, 0.2
        %v4190 = vmul.f32 %v3678, 0.2
        %v4191 = vmul.f32 %v3679, 0.2
        %v4192 = vmul.f32 %v3680, 0.2
        %v4193 = vmul.f32 %v3681, 0.2
        %v4194 = vmul.f32 %v3682, 0.2
        %v4195 = vmul.f32 %v3683, 0.2
        %v4196 = vmul.f32 %v3684, 0.2
        %v4197 = vmul.f32 %v3685, 0.2
        %v4198 = vmul.f32 %v3686, 0.2
        %v4199 = vmul.f32 %v3687, 0.2
        %v4200 = vmul.f32 %v3688, 0.2
        %v4201 = vmul.f32 %v3689, 0.2
        %v4202 = vmul.f32 %v3690, 0.2
        %v4203 = vmul.f32 %v3691, 0.2
        %v4204 = vmul.f32 %v3692, 0.2
        %v4205 = vmul.f32 %v3693, 0.2
        %v4206 = vmul.f32 %v3694, 0.2
        %v4207 = vmul.f32 %v3695, 0.2
        %v4208 = vsel %vm3696, %v3440, %v3952
        %v4209 = vsel %vm3697, %v3441, %v3953
        %v4210 = vsel %vm3698, %v3442, %v3954
        %v4211 = vsel %vm3699, %v3443, %v3955
        %v4212 = vsel %vm3700, %v3444, %v3956
        %v4213 = vsel %vm3701, %v3445, %v3957
        %v4214 = vsel %vm3702, %v3446, %v3958
        %v4215 = vsel %vm3703, %v3447, %v3959
        %v4216 = vsel %vm3704, %v3448, %v3960
        %v4217 = vsel %vm3705, %v3449, %v3961
        %v4218 = vsel %vm3706, %v3450, %v3962
        %v4219 = vsel %vm3707, %v3451, %v3963
        %v4220 = vsel %vm3708, %v3452, %v3964
        %v4221 = vsel %vm3709, %v3453, %v3965
        %v4222 = vsel %vm3710, %v3454, %v3966
        %v4223 = vsel %vm3711, %v3455, %v3967
        %v4224 = vsel %vm3712, %v3456, %v3968
        %v4225 = vsel %vm3713, %v3457, %v3969
        %v4226 = vsel %vm3714, %v3458, %v3970
        %v4227 = vsel %vm3715, %v3459, %v3971
        %v4228 = vsel %vm3716, %v3460, %v3972
        %v4229 = vsel %vm3717, %v3461, %v3973
        %v4230 = vsel %vm3718, %v3462, %v3974
        %v4231 = vsel %vm3719, %v3463, %v3975
        %v4232 = vsel %vm3720, %v3464, %v3976
        %v4233 = vsel %vm3721, %v3465, %v3977
        %v4234 = vsel %vm3722, %v3466, %v3978
        %v4235 = vsel %vm3723, %v3467, %v3979
        %v4236 = vsel %vm3724, %v3468, %v3980
        %v4237 = vsel %vm3725, %v3469, %v3981
        %v4238 = vsel %vm3726, %v3470, %v3982
        %v4239 = vsel %vm3727, %v3471, %v3983
        %v4240 = vsel %vm3728, %v3472, %v3984
        %v4241 = vsel %vm3729, %v3473, %v3985
        %v4242 = vsel %vm3730, %v3474, %v3986
        %v4243 = vsel %vm3731, %v3475, %v3987
        %v4244 = vsel %vm3732, %v3476, %v3988
        %v4245 = vsel %vm3733, %v3477, %v3989
        %v4246 = vsel %vm3734, %v3478, %v3990
        %v4247 = vsel %vm3735, %v3479, %v3991
        %v4248 = vsel %vm3736, %v3480, %v3992
        %v4249 = vsel %vm3737, %v3481, %v3993
        %v4250 = vsel %vm3738, %v3482, %v3994
        %v4251 = vsel %vm3739, %v3483, %v3995
        %v4252 = vsel %vm3740, %v3484, %v3996
        %v4253 = vsel %vm3741, %v3485, %v3997
        %v4254 = vsel %vm3742, %v3486, %v3998
        %v4255 = vsel %vm3743, %v3487, %v3999
        %v4256 = vsel %vm3744, %v3488, %v4000
        %v4257 = vsel %vm3745, %v3489, %v4001
        %v4258 = vsel %vm3746, %v3490, %v4002
        %v4259 = vsel %vm3747, %v3491, %v4003
        %v4260 = vsel %vm3748, %v3492, %v4004
        %v4261 = vsel %vm3749, %v3493, %v4005
        %v4262 = vsel %vm3750, %v3494, %v4006
        %v4263 = vsel %vm3751, %v3495, %v4007
        %v4264 = vsel %vm3752, %v3496, %v4008
        %v4265 = vsel %vm3753, %v3497, %v4009
        %v4266 = vsel %vm3754, %v3498, %v4010
        %v4267 = vsel %vm3755, %v3499, %v4011
        %v4268 = vsel %vm3756, %v3500, %v4012
        %v4269 = vsel %vm3757, %v3501, %v4013
        %v4270 = vsel %vm3758, %v3502, %v4014
        %v4271 = vsel %vm3759, %v3503, %v4015
        %v4272 = vsel %vm3760, %v3504, %v4016
        %v4273 = vsel %vm3761, %v3505, %v4017
        %v4274 = vsel %vm3762, %v3506, %v4018
        %v4275 = vsel %vm3763, %v3507, %v4019
        %v4276 = vsel %vm3764, %v3508, %v4020
        %v4277 = vsel %vm3765, %v3509, %v4021
        %v4278 = vsel %vm3766, %v3510, %v4022
        %v4279 = vsel %vm3767, %v3511, %v4023
        %v4280 = vsel %vm3768, %v3512, %v4024
        %v4281 = vsel %vm3769, %v3513, %v4025
        %v4282 = vsel %vm3770, %v3514, %v4026
        %v4283 = vsel %vm3771, %v3515, %v4027
        %v4284 = vsel %vm3772, %v3516, %v4028
        %v4285 = vsel %vm3773, %v3517, %v4029
        %v4286 = vsel %vm3774, %v3518, %v4030
        %v4287 = vsel %vm3775, %v3519, %v4031
        %v4288 = vsel %vm3776, %v3520, %v4032
        %v4289 = vsel %vm3777, %v3521, %v4033
        %v4290 = vsel %vm3778, %v3522, %v4034
        %v4291 = vsel %vm3779, %v3523, %v4035
        %v4292 = vsel %vm3780, %v3524, %v4036
        %v4293 = vsel %vm3781, %v3525, %v4037
        %v4294 = vsel %vm3782, %v3526, %v4038
        %v4295 = vsel %vm3783, %v3527, %v4039
        %v4296 = vsel %vm3784, %v3528, %v4040
        %v4297 = vsel %vm3785, %v3529, %v4041
        %v4298 = vsel %vm3786, %v3530, %v4042
        %v4299 = vsel %vm3787, %v3531, %v4043
        %v4300 = vsel %vm3788, %v3532, %v4044
        %v4301 = vsel %vm3789, %v3533, %v4045
        %v4302 = vsel %vm3790, %v3534, %v4046
        %v4303 = vsel %vm3791, %v3535, %v4047
        %v4304 = vsel %vm3792, %v3536, %v4048
        %v4305 = vsel %vm3793, %v3537, %v4049
        %v4306 = vsel %vm3794, %v3538, %v4050
        %v4307 = vsel %vm3795, %v3539, %v4051
        %v4308 = vsel %vm3796, %v3540, %v4052
        %v4309 = vsel %vm3797, %v3541, %v4053
        %v4310 = vsel %vm3798, %v3542, %v4054
        %v4311 = vsel %vm3799, %v3543, %v4055
        %v4312 = vsel %vm3800, %v3544, %v4056
        %v4313 = vsel %vm3801, %v3545, %v4057
        %v4314 = vsel %vm3802, %v3546, %v4058
        %v4315 = vsel %vm3803, %v3547, %v4059
        %v4316 = vsel %vm3804, %v3548, %v4060
        %v4317 = vsel %vm3805, %v3549, %v4061
        %v4318 = vsel %vm3806, %v3550, %v4062
        %v4319 = vsel %vm3807, %v3551, %v4063
        %v4320 = vsel %vm3808, %v3552, %v4064
        %v4321 = vsel %vm3809, %v3553, %v4065
        %v4322 = vsel %vm3810, %v3554, %v4066
        %v4323 = vsel %vm3811, %v3555, %v4067
        %v4324 = vsel %vm3812, %v3556, %v4068
        %v4325 = vsel %vm3813, %v3557, %v4069
        %v4326 = vsel %vm3814, %v3558, %v4070
        %v4327 = vsel %vm3815, %v3559, %v4071
        %v4328 = vsel %vm3816, %v3560, %v4072
        %v4329 = vsel %vm3817, %v3561, %v4073
        %v4330 = vsel %vm3818, %v3562, %v4074
        %v4331 = vsel %vm3819, %v3563, %v4075
        %v4332 = vsel %vm3820, %v3564, %v4076
        %v4333 = vsel %vm3821, %v3565, %v4077
        %v4334 = vsel %vm3822, %v3566, %v4078
        %v4335 = vsel %vm3823, %v3567, %v4079
        %v4336 = vsel %vm3824, %v3568, %v4080
        %v4337 = vsel %vm3825, %v3569, %v4081
        %v4338 = vsel %vm3826, %v3570, %v4082
        %v4339 = vsel %vm3827, %v3571, %v4083
        %v4340 = vsel %vm3828, %v3572, %v4084
        %v4341 = vsel %vm3829, %v3573, %v4085
        %v4342 = vsel %vm3830, %v3574, %v4086
        %v4343 = vsel %vm3831, %v3575, %v4087
        %v4344 = vsel %vm3832, %v3576, %v4088
        %v4345 = vsel %vm3833, %v3577, %v4089
        %v4346 = vsel %vm3834, %v3578, %v4090
        %v4347 = vsel %vm3835, %v3579, %v4091
        %v4348 = vsel %vm3836, %v3580, %v4092
        %v4349 = vsel %vm3837, %v3581, %v4093
        %v4350 = vsel %vm3838, %v3582, %v4094
        %v4351 = vsel %vm3839, %v3583, %v4095
        %v4352 = vsel %vm3840, %v3584, %v4096
        %v4353 = vsel %vm3841, %v3585, %v4097
        %v4354 = vsel %vm3842, %v3586, %v4098
        %v4355 = vsel %vm3843, %v3587, %v4099
        %v4356 = vsel %vm3844, %v3588, %v4100
        %v4357 = vsel %vm3845, %v3589, %v4101
        %v4358 = vsel %vm3846, %v3590, %v4102
        %v4359 = vsel %vm3847, %v3591, %v4103
        %v4360 = vsel %vm3848, %v3592, %v4104
        %v4361 = vsel %vm3849, %v3593, %v4105
        %v4362 = vsel %vm3850, %v3594, %v4106
        %v4363 = vsel %vm3851, %v3595, %v4107
        %v4364 = vsel %vm3852, %v3596, %v4108
        %v4365 = vsel %vm3853, %v3597, %v4109
        %v4366 = vsel %vm3854, %v3598, %v4110
        %v4367 = vsel %vm3855, %v3599, %v4111
        %v4368 = vsel %vm3856, %v3600, %v4112
        %v4369 = vsel %vm3857, %v3601, %v4113
        %v4370 = vsel %vm3858, %v3602, %v4114
        %v4371 = vsel %vm3859, %v3603, %v4115
        %v4372 = vsel %vm3860, %v3604, %v4116
        %v4373 = vsel %vm3861, %v3605, %v4117
        %v4374 = vsel %vm3862, %v3606, %v4118
        %v4375 = vsel %vm3863, %v3607, %v4119
        %v4376 = vsel %vm3864, %v3608, %v4120
        %v4377 = vsel %vm3865, %v3609, %v4121
        %v4378 = vsel %vm3866, %v3610, %v4122
        %v4379 = vsel %vm3867, %v3611, %v4123
        %v4380 = vsel %vm3868, %v3612, %v4124
        %v4381 = vsel %vm3869, %v3613, %v4125
        %v4382 = vsel %vm3870, %v3614, %v4126
        %v4383 = vsel %vm3871, %v3615, %v4127
        %v4384 = vsel %vm3872, %v3616, %v4128
        %v4385 = vsel %vm3873, %v3617, %v4129
        %v4386 = vsel %vm3874, %v3618, %v4130
        %v4387 = vsel %vm3875, %v3619, %v4131
        %v4388 = vsel %vm3876, %v3620, %v4132
        %v4389 = vsel %vm3877, %v3621, %v4133
        %v4390 = vsel %vm3878, %v3622, %v4134
        %v4391 = vsel %vm3879, %v3623, %v4135
        %v4392 = vsel %vm3880, %v3624, %v4136
        %v4393 = vsel %vm3881, %v3625, %v4137
        %v4394 = vsel %vm3882, %v3626, %v4138
        %v4395 = vsel %vm3883, %v3627, %v4139
        %v4396 = vsel %vm3884, %v3628, %v4140
        %v4397 = vsel %vm3885, %v3629, %v4141
        %v4398 = vsel %vm3886, %v3630, %v4142
        %v4399 = vsel %vm3887, %v3631, %v4143
        %v4400 = vsel %vm3888, %v3632, %v4144
        %v4401 = vsel %vm3889, %v3633, %v4145
        %v4402 = vsel %vm3890, %v3634, %v4146
        %v4403 = vsel %vm3891, %v3635, %v4147
        %v4404 = vsel %vm3892, %v3636, %v4148
        %v4405 = vsel %vm3893, %v3637, %v4149
        %v4406 = vsel %vm3894, %v3638, %v4150
        %v4407 = vsel %vm3895, %v3639, %v4151
        %v4408 = vsel %vm3896, %v3640, %v4152
        %v4409 = vsel %vm3897, %v3641, %v4153
        %v4410 = vsel %vm3898, %v3642, %v4154
        %v4411 = vsel %vm3899, %v3643, %v4155
        %v4412 = vsel %vm3900, %v3644, %v4156
        %v4413 = vsel %vm3901, %v3645, %v4157
        %v4414 = vsel %vm3902, %v3646, %v4158
        %v4415 = vsel %vm3903, %v3647, %v4159
        %v4416 = vsel %vm3904, %v3648, %v4160
        %v4417 = vsel %vm3905, %v3649, %v4161
        %v4418 = vsel %vm3906, %v3650, %v4162
        %v4419 = vsel %vm3907, %v3651, %v4163
        %v4420 = vsel %vm3908, %v3652, %v4164
        %v4421 = vsel %vm3909, %v3653, %v4165
        %v4422 = vsel %vm3910, %v3654, %v4166
        %v4423 = vsel %vm3911, %v3655, %v4167
        %v4424 = vsel %vm3912, %v3656, %v4168
        %v4425 = vsel %vm3913, %v3657, %v4169
        %v4426 = vsel %vm3914, %v3658, %v4170
        %v4427 = vsel %vm3915, %v3659, %v4171
        %v4428 = vsel %vm3916, %v3660, %v4172
        %v4429 = vsel %vm3917, %v3661, %v4173
        %v4430 = vsel %vm3918, %v3662, %v4174
        %v4431 = vsel %vm3919, %v3663, %v4175
        %v4432 = vsel %vm3920, %v3664, %v4176
        %v4433 = vsel %vm3921, %v3665, %v4177
        %v4434 = vsel %vm3922, %v3666, %v4178
        %v4435 = vsel %vm3923, %v3667, %v4179
        %v4436 = vsel %vm3924, %v3668, %v4180
        %v4437 = vsel %vm3925, %v3669, %v4181
        %v4438 = vsel %vm3926, %v3670, %v4182
        %v4439 = vsel %vm3927, %v3671, %v4183
        %v4440 = vsel %vm3928, %v3672, %v4184
        %v4441 = vsel %vm3929, %v3673, %v4185
        %v4442 = vsel %vm3930, %v3674, %v4186
        %v4443 = vsel %vm3931, %v3675, %v4187
        %v4444 = vsel %vm3932, %v3676, %v4188
        %v4445 = vsel %vm3933, %v3677, %v4189
        %v4446 = vsel %vm3934, %v3678, %v4190
        %v4447 = vsel %vm3935, %v3679, %v4191
        %v4448 = vsel %vm3936, %v3680, %v4192
        %v4449 = vsel %vm3937, %v3681, %v4193
        %v4450 = vsel %vm3938, %v3682, %v4194
        %v4451 = vsel %vm3939, %v3683, %v4195
        %v4452 = vsel %vm3940, %v3684, %v4196
        %v4453 = vsel %vm3941, %v3685, %v4197
        %v4454 = vsel %vm3942, %v3686, %v4198
        %v4455 = vsel %vm3943, %v3687, %v4199
        %v4456 = vsel %vm3944, %v3688, %v4200
        %v4457 = vsel %vm3945, %v3689, %v4201
        %v4458 = vsel %vm3946, %v3690, %v4202
        %v4459 = vsel %vm3947, %v3691, %v4203
        %v4460 = vsel %vm3948, %v3692, %v4204
        %v4461 = vsel %vm3949, %v3693, %v4205
        %v4462 = vsel %vm3950, %v3694, %v4206
        %v4463 = vsel %vm3951, %v3695, %v4207
        %4464 = vst [vmem:[%s261] sm:$0xff] %v4208
        %4465 = vst [vmem:[%s261 + $0x8] sm:$0xff] %v4209
        %4466 = vst [vmem:[%s261 + $0x10] sm:$0xff] %v4210
        %4467 = vst [vmem:[%s261 + $0x18] sm:$0xff] %v4211
        %4468 = vst [vmem:[%s261 + $0x20] sm:$0xff] %v4212
        %4469 = vst [vmem:[%s261 + $0x28] sm:$0xff] %v4213
        %4470 = vst [vmem:[%s261 + $0x30] sm:$0xff] %v4214
        %4471 = vst [vmem:[%s261 + $0x38] sm:$0xff] %v4215
        %4472 = vst [vmem:[%s261 + $0x40] sm:$0xff] %v4216
        %4473 = vst [vmem:[%s261 + $0x48] sm:$0xff] %v4217
        %4474 = vst [vmem:[%s261 + $0x50] sm:$0xff] %v4218
        %4475 = vst [vmem:[%s261 + $0x58] sm:$0xff] %v4219
        %4476 = vst [vmem:[%s261 + $0x60] sm:$0xff] %v4220
        %4477 = vst [vmem:[%s261 + $0x68] sm:$0xff] %v4221
        %4478 = vst [vmem:[%s261 + $0x70] sm:$0xff] %v4222
        %4479 = vst [vmem:[%s261 + $0x78] sm:$0xff] %v4223
        %4480 = vst [vmem:[%s261 + $0x80] sm:$0xff] %v4224
        %4481 = vst [vmem:[%s261 + $0x88] sm:$0xff] %v4225
        %4482 = vst [vmem:[%s261 + $0x90] sm:$0xff] %v4226
        %4483 = vst [vmem:[%s261 + $0x98] sm:$0xff] %v4227
        %4484 = vst [vmem:[%s261 + $0xa0] sm:$0xff] %v4228
        %4485 = vst [vmem:[%s261 + $0xa8] sm:$0xff] %v4229
        %4486 = vst [vmem:[%s261 + $0xb0] sm:$0xff] %v4230
        %4487 = vst [vmem:[%s261 + $0xb8] sm:$0xff] %v4231
        %4488 = vst [vmem:[%s261 + $0xc0] sm:$0xff] %v4232
        %4489 = vst [vmem:[%s261 + $0xc8] sm:$0xff] %v4233
        %4490 = vst [vmem:[%s261 + $0xd0] sm:$0xff] %v4234
        %4491 = vst [vmem:[%s261 + $0xd8] sm:$0xff] %v4235
        %4492 = vst [vmem:[%s261 + $0xe0] sm:$0xff] %v4236
        %4493 = vst [vmem:[%s261 + $0xe8] sm:$0xff] %v4237
        %4494 = vst [vmem:[%s261 + $0xf0] sm:$0xff] %v4238
        %4495 = vst [vmem:[%s261 + $0xf8] sm:$0xff] %v4239
        %4496 = vst [vmem:[%s261 + $0x100] sm:$0xff] %v4240
        %4497 = vst [vmem:[%s261 + $0x108] sm:$0xff] %v4241
        %4498 = vst [vmem:[%s261 + $0x110] sm:$0xff] %v4242
        %4499 = vst [vmem:[%s261 + $0x118] sm:$0xff] %v4243
        %4500 = vst [vmem:[%s261 + $0x120] sm:$0xff] %v4244
        %4501 = vst [vmem:[%s261 + $0x128] sm:$0xff] %v4245
        %4502 = vst [vmem:[%s261 + $0x130] sm:$0xff] %v4246
        %4503 = vst [vmem:[%s261 + $0x138] sm:$0xff] %v4247
        %4504 = vst [vmem:[%s261 + $0x140] sm:$0xff] %v4248
        %4505 = vst [vmem:[%s261 + $0x148] sm:$0xff] %v4249
        %4506 = vst [vmem:[%s261 + $0x150] sm:$0xff] %v4250
        %4507 = vst [vmem:[%s261 + $0x158] sm:$0xff] %v4251
        %4508 = vst [vmem:[%s261 + $0x160] sm:$0xff] %v4252
        %4509 = vst [vmem:[%s261 + $0x168] sm:$0xff] %v4253
        %4510 = vst [vmem:[%s261 + $0x170] sm:$0xff] %v4254
        %4511 = vst [vmem:[%s261 + $0x178] sm:$0xff] %v4255
        %4512 = vst [vmem:[%s261 + $0x180] sm:$0xff] %v4256
        %4513 = vst [vmem:[%s261 + $0x188] sm:$0xff] %v4257
        %4514 = vst [vmem:[%s261 + $0x190] sm:$0xff] %v4258
        %4515 = vst [vmem:[%s261 + $0x198] sm:$0xff] %v4259
        %4516 = vst [vmem:[%s261 + $0x1a0] sm:$0xff] %v4260
        %4517 = vst [vmem:[%s261 + $0x1a8] sm:$0xff] %v4261
        %4518 = vst [vmem:[%s261 + $0x1b0] sm:$0xff] %v4262
        %4519 = vst [vmem:[%s261 + $0x1b8] sm:$0xff] %v4263
        %4520 = vst [vmem:[%s261 + $0x1c0] sm:$0xff] %v4264
        %4521 = vst [vmem:[%s261 + $0x1c8] sm:$0xff] %v4265
        %4522 = vst [vmem:[%s261 + $0x1d0] sm:$0xff] %v4266
        %4523 = vst [vmem:[%s261 + $0x1d8] sm:$0xff] %v4267
        %4524 = vst [vmem:[%s261 + $0x1e0] sm:$0xff] %v4268
        %4525 = vst [vmem:[%s261 + $0x1e8] sm:$0xff] %v4269
        %4526 = vst [vmem:[%s261 + $0x1f0] sm:$0xff] %v4270
        %4527 = vst [vmem:[%s261 + $0x1f8] sm:$0xff] %v4271
        %4528 = vst [vmem:[%s261 + $0x200] sm:$0xff] %v4272
        %4529 = vst [vmem:[%s261 + $0x208] sm:$0xff] %v4273
        %4530 = vst [vmem:[%s261 + $0x210] sm:$0xff] %v4274
        %4531 = vst [vmem:[%s261 + $0x218] sm:$0xff] %v4275
        %4532 = vst [vmem:[%s261 + $0x220] sm:$0xff] %v4276
        %4533 = vst [vmem:[%s261 + $0x228] sm:$0xff] %v4277
        %4534 = vst [vmem:[%s261 + $0x230] sm:$0xff] %v4278
        %4535 = vst [vmem:[%s261 + $0x238] sm:$0xff] %v4279
        %4536 = vst [vmem:[%s261 + $0x240] sm:$0xff] %v4280
        %4537 = vst [vmem:[%s261 + $0x248] sm:$0xff] %v4281
        %4538 = vst [vmem:[%s261 + $0x250] sm:$0xff] %v4282
        %4539 = vst [vmem:[%s261 + $0x258] sm:$0xff] %v4283
        %4540 = vst [vmem:[%s261 + $0x260] sm:$0xff] %v4284
        %4541 = vst [vmem:[%s261 + $0x268] sm:$0xff] %v4285
        %4542 = vst [vmem:[%s261 + $0x270] sm:$0xff] %v4286
        %4543 = vst [vmem:[%s261 + $0x278] sm:$0xff] %v4287
        %4544 = vst [vmem:[%s261 + $0x280] sm:$0xff] %v4288
        %4545 = vst [vmem:[%s261 + $0x288] sm:$0xff] %v4289
        %4546 = vst [vmem:[%s261 + $0x290] sm:$0xff] %v4290
        %4547 = vst [vmem:[%s261 + $0x298] sm:$0xff] %v4291
        %4548 = vst [vmem:[%s261 + $0x2a0] sm:$0xff] %v4292
        %4549 = vst [vmem:[%s261 + $0x2a8] sm:$0xff] %v4293
        %4550 = vst [vmem:[%s261 + $0x2b0] sm:$0xff] %v4294
        %4551 = vst [vmem:[%s261 + $0x2b8] sm:$0xff] %v4295
        %4552 = vst [vmem:[%s261 + $0x2c0] sm:$0xff] %v4296
        %4553 = vst [vmem:[%s261 + $0x2c8] sm:$0xff] %v4297
        %4554 = vst [vmem:[%s261 + $0x2d0] sm:$0xff] %v4298
        %4555 = vst [vmem:[%s261 + $0x2d8] sm:$0xff] %v4299
        %4556 = vst [vmem:[%s261 + $0x2e0] sm:$0xff] %v4300
        %4557 = vst [vmem:[%s261 + $0x2e8] sm:$0xff] %v4301
        %4558 = vst [vmem:[%s261 + $0x2f0] sm:$0xff] %v4302
        %4559 = vst [vmem:[%s261 + $0x2f8] sm:$0xff] %v4303
        %4560 = vst [vmem:[%s261 + $0x300] sm:$0xff] %v4304
        %4561 = vst [vmem:[%s261 + $0x308] sm:$0xff] %v4305
        %4562 = vst [vmem:[%s261 + $0x310] sm:$0xff] %v4306
        %4563 = vst [vmem:[%s261 + $0x318] sm:$0xff] %v4307
        %4564 = vst [vmem:[%s261 + $0x320] sm:$0xff] %v4308
        %4565 = vst [vmem:[%s261 + $0x328] sm:$0xff] %v4309
        %4566 = vst [vmem:[%s261 + $0x330] sm:$0xff] %v4310
        %4567 = vst [vmem:[%s261 + $0x338] sm:$0xff] %v4311
        %4568 = vst [vmem:[%s261 + $0x340] sm:$0xff] %v4312
        %4569 = vst [vmem:[%s261 + $0x348] sm:$0xff] %v4313
        %4570 = vst [vmem:[%s261 + $0x350] sm:$0xff] %v4314
        %4571 = vst [vmem:[%s261 + $0x358] sm:$0xff] %v4315
        %4572 = vst [vmem:[%s261 + $0x360] sm:$0xff] %v4316
        %4573 = vst [vmem:[%s261 + $0x368] sm:$0xff] %v4317
        %4574 = vst [vmem:[%s261 + $0x370] sm:$0xff] %v4318
        %4575 = vst [vmem:[%s261 + $0x378] sm:$0xff] %v4319
        %4576 = vst [vmem:[%s261 + $0x380] sm:$0xff] %v4320
        %4577 = vst [vmem:[%s261 + $0x388] sm:$0xff] %v4321
        %4578 = vst [vmem:[%s261 + $0x390] sm:$0xff] %v4322
        %4579 = vst [vmem:[%s261 + $0x398] sm:$0xff] %v4323
        %4580 = vst [vmem:[%s261 + $0x3a0] sm:$0xff] %v4324
        %4581 = vst [vmem:[%s261 + $0x3a8] sm:$0xff] %v4325
        %4582 = vst [vmem:[%s261 + $0x3b0] sm:$0xff] %v4326
        %4583 = vst [vmem:[%s261 + $0x3b8] sm:$0xff] %v4327
        %4584 = vst [vmem:[%s261 + $0x3c0] sm:$0xff] %v4328
        %4585 = vst [vmem:[%s261 + $0x3c8] sm:$0xff] %v4329
        %4586 = vst [vmem:[%s261 + $0x3d0] sm:$0xff] %v4330
        %4587 = vst [vmem:[%s261 + $0x3d8] sm:$0xff] %v4331
        %4588 = vst [vmem:[%s261 + $0x3e0] sm:$0xff] %v4332
        %4589 = vst [vmem:[%s261 + $0x3e8] sm:$0xff] %v4333
        %4590 = vst [vmem:[%s261 + $0x3f0] sm:$0xff] %v4334
        %4591 = vst [vmem:[%s261 + $0x3f8] sm:$0xff] %v4335
        %4592 = vst [vmem:[%s261 + $0x400] sm:$0xff] %v4336
        %4593 = vst [vmem:[%s261 + $0x408] sm:$0xff] %v4337
        %4594 = vst [vmem:[%s261 + $0x410] sm:$0xff] %v4338
        %4595 = vst [vmem:[%s261 + $0x418] sm:$0xff] %v4339
        %4596 = vst [vmem:[%s261 + $0x420] sm:$0xff] %v4340
        %4597 = vst [vmem:[%s261 + $0x428] sm:$0xff] %v4341
        %4598 = vst [vmem:[%s261 + $0x430] sm:$0xff] %v4342
        %4599 = vst [vmem:[%s261 + $0x438] sm:$0xff] %v4343
        %4600 = vst [vmem:[%s261 + $0x440] sm:$0xff] %v4344
        %4601 = vst [vmem:[%s261 + $0x448] sm:$0xff] %v4345
        %4602 = vst [vmem:[%s261 + $0x450] sm:$0xff] %v4346
        %4603 = vst [vmem:[%s261 + $0x458] sm:$0xff] %v4347
        %4604 = vst [vmem:[%s261 + $0x460] sm:$0xff] %v4348
        %4605 = vst [vmem:[%s261 + $0x468] sm:$0xff] %v4349
        %4606 = vst [vmem:[%s261 + $0x470] sm:$0xff] %v4350
        %4607 = vst [vmem:[%s261 + $0x478] sm:$0xff] %v4351
        %4608 = vst [vmem:[%s261 + $0x480] sm:$0xff] %v4352
        %4609 = vst [vmem:[%s261 + $0x488] sm:$0xff] %v4353
        %4610 = vst [vmem:[%s261 + $0x490] sm:$0xff] %v4354
        %4611 = vst [vmem:[%s261 + $0x498] sm:$0xff] %v4355
        %4612 = vst [vmem:[%s261 + $0x4a0] sm:$0xff] %v4356
        %4613 = vst [vmem:[%s261 + $0x4a8] sm:$0xff] %v4357
        %4614 = vst [vmem:[%s261 + $0x4b0] sm:$0xff] %v4358
        %4615 = vst [vmem:[%s261 + $0x4b8] sm:$0xff] %v4359
        %4616 = vst [vmem:[%s261 + $0x4c0] sm:$0xff] %v4360
        %4617 = vst [vmem:[%s261 + $0x4c8] sm:$0xff] %v4361
        %4618 = vst [vmem:[%s261 + $0x4d0] sm:$0xff] %v4362
        %4619 = vst [vmem:[%s261 + $0x4d8] sm:$0xff] %v4363
        %4620 = vst [vmem:[%s261 + $0x4e0] sm:$0xff] %v4364
        %4621 = vst [vmem:[%s261 + $0x4e8] sm:$0xff] %v4365
        %4622 = vst [vmem:[%s261 + $0x4f0] sm:$0xff] %v4366
        %4623 = vst [vmem:[%s261 + $0x4f8] sm:$0xff] %v4367
        %4624 = vst [vmem:[%s261 + $0x500] sm:$0xff] %v4368
        %4625 = vst [vmem:[%s261 + $0x508] sm:$0xff] %v4369
        %4626 = vst [vmem:[%s261 + $0x510] sm:$0xff] %v4370
        %4627 = vst [vmem:[%s261 + $0x518] sm:$0xff] %v4371
        %4628 = vst [vmem:[%s261 + $0x520] sm:$0xff] %v4372
        %4629 = vst [vmem:[%s261 + $0x528] sm:$0xff] %v4373
        %4630 = vst [vmem:[%s261 + $0x530] sm:$0xff] %v4374
        %4631 = vst [vmem:[%s261 + $0x538] sm:$0xff] %v4375
        %4632 = vst [vmem:[%s261 + $0x540] sm:$0xff] %v4376
        %4633 = vst [vmem:[%s261 + $0x548] sm:$0xff] %v4377
        %4634 = vst [vmem:[%s261 + $0x550] sm:$0xff] %v4378
        %4635 = vst [vmem:[%s261 + $0x558] sm:$0xff] %v4379
        %4636 = vst [vmem:[%s261 + $0x560] sm:$0xff] %v4380
        %4637 = vst [vmem:[%s261 + $0x568] sm:$0xff] %v4381
        %4638 = vst [vmem:[%s261 + $0x570] sm:$0xff] %v4382
        %4639 = vst [vmem:[%s261 + $0x578] sm:$0xff] %v4383
        %4640 = vst [vmem:[%s261 + $0x580] sm:$0xff] %v4384
        %4641 = vst [vmem:[%s261 + $0x588] sm:$0xff] %v4385
        %4642 = vst [vmem:[%s261 + $0x590] sm:$0xff] %v4386
        %4643 = vst [vmem:[%s261 + $0x598] sm:$0xff] %v4387
        %4644 = vst [vmem:[%s261 + $0x5a0] sm:$0xff] %v4388
        %4645 = vst [vmem:[%s261 + $0x5a8] sm:$0xff] %v4389
        %4646 = vst [vmem:[%s261 + $0x5b0] sm:$0xff] %v4390
        %4647 = vst [vmem:[%s261 + $0x5b8] sm:$0xff] %v4391
        %4648 = vst [vmem:[%s261 + $0x5c0] sm:$0xff] %v4392
        %4649 = vst [vmem:[%s261 + $0x5c8] sm:$0xff] %v4393
        %4650 = vst [vmem:[%s261 + $0x5d0] sm:$0xff] %v4394
        %4651 = vst [vmem:[%s261 + $0x5d8] sm:$0xff] %v4395
        %4652 = vst [vmem:[%s261 + $0x5e0] sm:$0xff] %v4396
        %4653 = vst [vmem:[%s261 + $0x5e8] sm:$0xff] %v4397
        %4654 = vst [vmem:[%s261 + $0x5f0] sm:$0xff] %v4398
        %4655 = vst [vmem:[%s261 + $0x5f8] sm:$0xff] %v4399
        %4656 = vst [vmem:[%s261 + $0x600] sm:$0xff] %v4400
        %4657 = vst [vmem:[%s261 + $0x608] sm:$0xff] %v4401
        %4658 = vst [vmem:[%s261 + $0x610] sm:$0xff] %v4402
        %4659 = vst [vmem:[%s261 + $0x618] sm:$0xff] %v4403
        %4660 = vst [vmem:[%s261 + $0x620] sm:$0xff] %v4404
        %4661 = vst [vmem:[%s261 + $0x628] sm:$0xff] %v4405
        %4662 = vst [vmem:[%s261 + $0x630] sm:$0xff] %v4406
        %4663 = vst [vmem:[%s261 + $0x638] sm:$0xff] %v4407
        %4664 = vst [vmem:[%s261 + $0x640] sm:$0xff] %v4408
        %4665 = vst [vmem:[%s261 + $0x648] sm:$0xff] %v4409
        %4666 = vst [vmem:[%s261 + $0x650] sm:$0xff] %v4410
        %4667 = vst [vmem:[%s261 + $0x658] sm:$0xff] %v4411
        %4668 = vst [vmem:[%s261 + $0x660] sm:$0xff] %v4412
        %4669 = vst [vmem:[%s261 + $0x668] sm:$0xff] %v4413
        %4670 = vst [vmem:[%s261 + $0x670] sm:$0xff] %v4414
        %4671 = vst [vmem:[%s261 + $0x678] sm:$0xff] %v4415
        %4672 = vst [vmem:[%s261 + $0x680] sm:$0xff] %v4416
        %4673 = vst [vmem:[%s261 + $0x688] sm:$0xff] %v4417
        %4674 = vst [vmem:[%s261 + $0x690] sm:$0xff] %v4418
        %4675 = vst [vmem:[%s261 + $0x698] sm:$0xff] %v4419
        %4676 = vst [vmem:[%s261 + $0x6a0] sm:$0xff] %v4420
        %4677 = vst [vmem:[%s261 + $0x6a8] sm:$0xff] %v4421
        %4678 = vst [vmem:[%s261 + $0x6b0] sm:$0xff] %v4422
        %4679 = vst [vmem:[%s261 + $0x6b8] sm:$0xff] %v4423
        %4680 = vst [vmem:[%s261 + $0x6c0] sm:$0xff] %v4424
        %4681 = vst [vmem:[%s261 + $0x6c8] sm:$0xff] %v4425
        %4682 = vst [vmem:[%s261 + $0x6d0] sm:$0xff] %v4426
        %4683 = vst [vmem:[%s261 + $0x6d8] sm:$0xff] %v4427
        %4684 = vst [vmem:[%s261 + $0x6e0] sm:$0xff] %v4428
        %4685 = vst [vmem:[%s261 + $0x6e8] sm:$0xff] %v4429
        %4686 = vst [vmem:[%s261 + $0x6f0] sm:$0xff] %v4430
        %4687 = vst [vmem:[%s261 + $0x6f8] sm:$0xff] %v4431
        %4688 = vst [vmem:[%s261 + $0x700] sm:$0xff] %v4432
        %4689 = vst [vmem:[%s261 + $0x708] sm:$0xff] %v4433
        %4690 = vst [vmem:[%s261 + $0x710] sm:$0xff] %v4434
        %4691 = vst [vmem:[%s261 + $0x718] sm:$0xff] %v4435
        %4692 = vst [vmem:[%s261 + $0x720] sm:$0xff] %v4436
        %4693 = vst [vmem:[%s261 + $0x728] sm:$0xff] %v4437
        %4694 = vst [vmem:[%s261 + $0x730] sm:$0xff] %v4438
        %4695 = vst [vmem:[%s261 + $0x738] sm:$0xff] %v4439
        %4696 = vst [vmem:[%s261 + $0x740] sm:$0xff] %v4440
        %4697 = vst [vmem:[%s261 + $0x748] sm:$0xff] %v4441
        %4698 = vst [vmem:[%s261 + $0x750] sm:$0xff] %v4442
        %4699 = vst [vmem:[%s261 + $0x758] sm:$0xff] %v4443
        %4700 = vst [vmem:[%s261 + $0x760] sm:$0xff] %v4444
        %4701 = vst [vmem:[%s261 + $0x768] sm:$0xff] %v4445
        %4702 = vst [vmem:[%s261 + $0x770] sm:$0xff] %v4446
        %4703 = vst [vmem:[%s261 + $0x778] sm:$0xff] %v4447
        %4704 = vst [vmem:[%s261 + $0x780] sm:$0xff] %v4448
        %4705 = vst [vmem:[%s261 + $0x788] sm:$0xff] %v4449
        %4706 = vst [vmem:[%s261 + $0x790] sm:$0xff] %v4450
        %4707 = vst [vmem:[%s261 + $0x798] sm:$0xff] %v4451
        %4708 = vst [vmem:[%s261 + $0x7a0] sm:$0xff] %v4452
        %4709 = vst [vmem:[%s261 + $0x7a8] sm:$0xff] %v4453
        %4710 = vst [vmem:[%s261 + $0x7b0] sm:$0xff] %v4454
        %4711 = vst [vmem:[%s261 + $0x7b8] sm:$0xff] %v4455
        %4712 = vst [vmem:[%s261 + $0x7c0] sm:$0xff] %v4456
        %4713 = vst [vmem:[%s261 + $0x7c8] sm:$0xff] %v4457
        %4714 = vst [vmem:[%s261 + $0x7d0] sm:$0xff] %v4458
        %4715 = vst [vmem:[%s261 + $0x7d8] sm:$0xff] %v4459
        %4716 = vst [vmem:[%s261 + $0x7e0] sm:$0xff] %v4460
        %4717 = vst [vmem:[%s261 + $0x7e8] sm:$0xff] %v4461
        %4718 = vst [vmem:[%s261 + $0x7f0] sm:$0xff] %v4462
        %4719 = vst [vmem:[%s261 + $0x7f8] sm:$0xff] %v4463
      $region36: #{matmul_g.1} parent=27 // pred_fallthru
        _
      %s4720 = smul.u32 256, %s20
      %p4721 = scmp.lt.s32.totalorder %s19, 1
      %s4722 = scalar_select %p4721, %s19, 1
      %p4723 = scmp.lt.s32.totalorder %s4720, 2047
      %s4724 = scalar_select %p4723, %s4720, 2047
      %p4725 = scmp.lt.s32.totalorder %s21, 0
      %s4726 = scalar_select %p4725, %s21, 0
      %s4727 = sadd.s32 %s4726, %s4724
      %s4728 = smul.addr %s4722, 2048
      %s4729 = sadd.s32 %s4727, %s4728
      %s4730 = smul.addr %s4729, 8
      %s4731 = scalar_lea.vmem %s2, %s4730
      // Predicated region
      $region37: #{matmul_g.1} parent=27 // pred_check
        %p4732 = pneg %p121
      $region38: #{matmul_g.1} parent=27 // pred_check_branch
        %4734 = sbr.rel (%p4732) target = $region40
      $region39: #{matmul_g.1} parent=27 // pred_region
        %s4735 = smul.u32 256, %s20
      $region40: #{matmul_g.1} parent=27 // pred_fallthru
        _
    $region28: #{matmul_g.1} parent=5 // pred_fallthru
      _
    %p4736 = scmp.le.s32.totalorder 2, %s8
    // Predicated region
    $region41: #{matmul_g.1} parent=5 // pred_check
      %p4737 = pneg %p4736
    $region42: #{matmul_g.1} parent=5 // pred_check_branch
      %4739 = sbr.rel (%p4737) target = $region44
    $region43: #{matmul_g.1} parent=5 // pred_region
      %s4740 = ssub.s32 %s8, 2
      // Predicated region
      $region45: #{matmul_g.1} parent=43 // pred_check
        %p4741 = pneg %p127
      $region46: #{matmul_g.1} parent=43 // pred_check_branch
        %4743 = sbr.rel (%p4741) target = $region48
      $region47: #{matmul_g.1} parent=43 // pred_region
        %s4744 = smul.u32 256, %s24
        %p4745 = scmp.lt.s32.totalorder %s23, 1
        %s4746 = scalar_select %p4745, %s23, 1
        %p4747 = scmp.lt.s32.totalorder %s4744, 2047
        %s4748 = scalar_select %p4747, %s4744, 2047
        %p4749 = scmp.lt.s32.totalorder %s25, 0
        %s4750 = scalar_select %p4749, %s25, 0
        %s4751 = sadd.s32 %s4750, %s4748
        %s4752 = smul.addr %s4746, 2048
        %s4753 = sadd.s32 %s4751, %s4752
        %s4754 = smul.addr %s4753, 8
        %s4755 = scalar_lea.vmem %s2, %s4754
      $region48: #{matmul_g.1} parent=43 // pred_fallthru
        _
    $region44: #{matmul_g.1} parent=5 // pred_fallthru
      _
  $region6: #{matmul_g.1} parent=0 // loop_footer
    %s12 = sadd.s32 1, %s8
  $region7: #{matmul_g.1} parent=0 // loop_footer_branch
    %7 = sbr.rel target = $region3
  $region8: #{matmul_g.1} parent=0 // loop_exit
    _

</llo_original>
